<compile_context>
chip_gen: v6e
topology: v6e:2x2x1
jax: 0.10.0
libtpu: 0.0.40
codegen_flags: <defaults>
</compile_context>

<pallas_src>
import functools

import jax
import jax.numpy as jnp
from jax.experimental import pallas as pl
from jax.experimental.pallas import tpu as pltpu

INPUT_SIZE = 2
HIDDEN_SIZE = 400
OUTPUT_SIZE = 2
BN_EPS = 1e-5

H_PAD = 512     # 400 padded to a multiple of 128 lanes / exact MXU tiles
OUT_PAD = 128   # lane-dense output block (sliced back to OUTPUT_SIZE outside the kernel)


def _default_group_block():
    """G_BLK groups (of 8 samples each) fused per grid step: M = 8*G_BLK matmul rows."""
    try:
        kind = jax.devices()[0].device_kind.lower()
    except Exception:
        return 16
    if any(v in kind for v in ("v2", "v3", "v4", "v5")):
        return 16   # 128-row MXU tiles -> M = 128
    return 32       # v6e / v7x: 256-row MXU -> M = 256


def generator_kernel(x_ref, w0_ref, w1_ref, w2_ref, w3_ref, w4_ref, vec_ref, o_ref):
    # vec_ref rows: 0..3 = gamma0..3, 4..7 = beta0..3, 8 = final bias (lane-padded).
    g_blk, group, _ = x_ref.shape
    m = g_blk * group

    def bn_relu(y, gamma, beta):
        # y: (g_blk, group, H_PAD) f32.  Per-group training-mode BatchNorm1d + ReLU,
        # folded into sub + FMA.  Mean subtraction exactly cancels any pre-BN bias,
        # so the Linear biases b0..b3 are never materialized.
        inv_b = 1.0 / group
        mean = jnp.sum(y, axis=1, keepdims=True) * inv_b           # sublane reduce
        d = y - mean
        var = jnp.sum(d * d, axis=1, keepdims=True) * inv_b        # two-pass variance
        s = gamma * jax.lax.rsqrt(var + BN_EPS)                    # rsqrt -> EUP slot
        return jnp.maximum(d * s + beta, 0.0)

    def dense(h, w_ref):
        # (g_blk, group, H) -> (m, H) is a pure leading-dim collapse (group == 8 rows
        # == one vreg of sublanes), so no relayout is materialized.  Activations are
        # cast to the stored weight dtype (bf16 by default); accumulation stays f32.
        h2 = h.reshape(m, h.shape[-1]).astype(w_ref.dtype)
        return jnp.dot(h2, w_ref[...], preferred_element_type=jnp.float32)

    x = x_ref[...].astype(jnp.float32)                             # (g_blk, group, 2)
    w0 = w0_ref[...]                                               # f32 (2, H_PAD)

    # Layer 0: K=2 is far too shallow for the MXU -> two VPU broadcast-FMAs.
    y = x[..., 0:1] * w0[0:1, :] + x[..., 1:2] * w0[1:2, :]        # (g_blk, group, H_PAD)
    h = bn_relu(y, vec_ref[0:1, :], vec_ref[4:5, :])

    h = bn_relu(dense(h, w1_ref).reshape(g_blk, group, H_PAD),
                vec_ref[1:2, :], vec_ref[5:6, :])
    h = bn_relu(dense(h, w2_ref).reshape(g_blk, group, H_PAD),
                vec_ref[2:3, :], vec_ref[6:7, :])
    h = bn_relu(dense(h, w3_ref).reshape(g_blk, group, H_PAD),
                vec_ref[3:4, :], vec_ref[7:8, :])

    out = dense(h, w4_ref) + vec_ref[8:9, :OUT_PAD]                # (m, OUT_PAD)
    o_ref[...] = out.reshape(g_blk, group, OUT_PAD).astype(o_ref.dtype)


def init_params(key, input_size=INPUT_SIZE, hidden_size=HIDDEN_SIZE,
                output_size=OUTPUT_SIZE):
    """PyTorch-style Linear init (uniform +/- 1/sqrt(fan_in)); BN gamma=1, beta=0.
    Weights stored transposed vs torch, i.e. (in_features, out_features)."""
    dims = [(input_size, hidden_size),
            (hidden_size, hidden_size),
            (hidden_size, hidden_size),
            (hidden_size, hidden_size),
            (hidden_size, output_size)]
    params = []
    keys = jax.random.split(key, 2 * len(dims))
    for i, (fan_in, fan_out) in enumerate(dims):
        bound = 1.0 / jnp.sqrt(jnp.float32(fan_in))
        w = jax.random.uniform(keys[2 * i], (fan_in, fan_out),
                               minval=-bound, maxval=bound, dtype=jnp.float32)
        b = jax.random.uniform(keys[2 * i + 1], (1, fan_out),
                               minval=-bound, maxval=bound, dtype=jnp.float32)
        layer = {"w": w, "b": b}
        if i < 4:
            layer["gamma"] = jnp.ones((1, fan_out), jnp.float32)
            layer["beta"] = jnp.zeros((1, fan_out), jnp.float32)
        params.append(layer)
    return params


def pack_params(params, weight_dtype=jnp.bfloat16):
    """Pad weights to (*, 512)/(512, *), cast the big matmul weights to `weight_dtype`
    (bf16 by default -> half the HBM/VMEM traffic, native MXU ingest), and pack the
    small per-feature vectors into one (9, 512) f32 array.  Pre-BN biases are dropped
    (exactly cancelled by BN mean subtraction).  Padded gamma/beta columns MUST stay 0
    so padded features remain exactly 0 through BN+ReLU."""
    H = HIDDEN_SIZE
    w0 = jnp.zeros((INPUT_SIZE, H_PAD), jnp.float32).at[:, :H].set(params[0]["w"])

    def pad_sq(w):
        return jnp.zeros((H_PAD, H_PAD), jnp.float32).at[:H, :H].set(w).astype(weight_dtype)

    w1, w2, w3 = (pad_sq(params[i]["w"]) for i in (1, 2, 3))
    w4 = (jnp.zeros((H_PAD, OUT_PAD), jnp.float32)
          .at[:H, :OUTPUT_SIZE].set(params[4]["w"]).astype(weight_dtype))

    vecs = jnp.zeros((9, H_PAD), jnp.float32)
    for i in range(4):
        vecs = vecs.at[i, :H].set(params[i]["gamma"][0])
        vecs = vecs.at[4 + i, :H].set(params[i]["beta"][0])
    vecs = vecs.at[8, :OUTPUT_SIZE].set(params[4]["b"][0])
    return (w0, w1, w2, w3, w4, vecs)


@functools.partial(jax.jit, static_argnums=(1,))
def _forward_padded(xg, g_blk, w0, w1, w2, w3, w4, vecs):
    """xg: (G_pad, batch, INPUT_SIZE) with G_pad % g_blk == 0.  BN stats are computed
    per group of `batch` samples (per-minibatch training-mode BatchNorm).  g_blk groups
    are fused into the matmul M dimension per grid step; the grid over group-blocks is
    'parallel' so independent blocks shard across TensorCores (v7x megacore)."""
    g_pad, batch, _ = xg.shape
    assert g_pad % g_blk == 0
    grid = (g_pad // g_blk,)

    m_total = g_pad * batch
    flops = int(2 * m_total * (INPUT_SIZE * H_PAD + 3 * H_PAD * H_PAD + H_PAD * OUT_PAD))
    transcendentals = int(4 * g_pad * H_PAD)                      # rsqrt per feature/group/layer
    bytes_accessed = int(
        xg.size * xg.dtype.itemsize
        + sum(w.size * w.dtype.itemsize for w in (w0, w1, w2, w3, w4, vecs))
        + m_total * OUT_PAD * 4)
    cost = pl.CostEstimate(flops=flops, transcendentals=transcendentals,
                           bytes_accessed=bytes_accessed)

    return pl.pallas_call(
        generator_kernel,
        out_shape=jax.ShapeDtypeStruct((g_pad, batch, OUT_PAD), jnp.float32),
        grid=grid,
        in_specs=[
            pl.BlockSpec((g_blk, batch, INPUT_SIZE), lambda g: (g, 0, 0)),
            pl.BlockSpec((INPUT_SIZE, H_PAD), lambda g: (0, 0)),
            pl.BlockSpec((H_PAD, H_PAD), lambda g: (0, 0)),
            pl.BlockSpec((H_PAD, H_PAD), lambda g: (0, 0)),
            pl.BlockSpec((H_PAD, H_PAD), lambda g: (0, 0)),
            pl.BlockSpec((H_PAD, OUT_PAD), lambda g: (0, 0)),
            pl.BlockSpec((9, H_PAD), lambda g: (0, 0)),
        ],
        out_specs=pl.BlockSpec((g_blk, batch, OUT_PAD), lambda g: (g, 0, 0)),
        compiler_params=pltpu.CompilerParams(dimension_semantics=("parallel",)),
        cost_estimate=cost,
    )(xg, w0, w1, w2, w3, w4, vecs)


def generator_forward_grouped(x_groups, packed_params, g_blk=None):
    """Many independent minibatches per call: (G, batch, 2) -> (G, batch, 2).
    BN statistics are computed per group; g_blk groups are fused into the matmul
    M dimension per grid step (default 16 on v5-class, 32 on v6e/v7x)."""
    g_cnt, batch, _ = x_groups.shape
    if g_blk is None:
        g_blk = _default_group_block()
    g_blk = max(1, min(g_blk, g_cnt))
    g_pad = ((g_cnt + g_blk - 1) // g_blk) * g_blk
    if g_pad != g_cnt:
        pad = jnp.zeros((g_pad - g_cnt, batch, x_groups.shape[-1]), x_groups.dtype)
        x_groups = jnp.concatenate([x_groups, pad], axis=0)
    out = _forward_padded(x_groups, g_blk, *packed_params)
    return out[:g_cnt, :, :OUTPUT_SIZE]


def generator_forward(x, packed_params):
    """Single minibatch (batch, 2) -> (batch, 2), identical to the torch module forward
    in training mode (batch-stats BatchNorm)."""
    return generator_forward_grouped(x[None], packed_params, g_blk=1)[0]


def reference_forward(x, params, matmul_dtype=jnp.float32):
    """Pure-JAX reference mirroring torch training-mode semantics (with biases).
    matmul_dtype=bfloat16 mirrors the kernel's bf16 weight storage for layers 1..4."""
    h = x.astype(jnp.float32)
    for i, layer in enumerate(params):
        w, b = layer["w"], layer["b"]
        if i == 0 or matmul_dtype == jnp.float32:
            y = h @ w + b
        else:
            y = jnp.dot(h.astype(matmul_dtype), w.astype(matmul_dtype),
                        preferred_element_type=jnp.float32) + b
        if i < 4:
            mean = jnp.mean(y, axis=0, keepdims=True)
            var = jnp.mean((y - mean) ** 2, axis=0, keepdims=True)
            y = (y - mean) * jax.lax.rsqrt(var + BN_EPS)
            y = jnp.maximum(y * layer["gamma"] + layer["beta"], 0.0)
        h = y
    return h


if __name__ == "__main__":
    key = jax.random.PRNGKey(0)
    pkey, xkey, gkey = jax.random.split(key, 3)
    params = init_params(pkey)
    packed = pack_params(params)   # bf16 matmul weights by default

    # Single 8-sample minibatch (the module's native use).
    batch = 8
    x = jax.random.normal(xkey, (batch, INPUT_SIZE), dtype=jnp.float32)
    out = jax.block_until_ready(generator_forward(x, packed))
    assert out.shape == (batch, OUTPUT_SIZE)
    ref_bf16 = reference_forward(x, params, matmul_dtype=jnp.bfloat16)
    assert jnp.allclose(out, ref_bf16, atol=2e-2, rtol=2e-2), "single-batch mismatch"
    # Loose sanity check vs the pure-f32 torch-semantics reference (bf16 weight storage
    # introduces ~1% drift; a structural bug would show up as an O(1) difference).
    ref_f32 = reference_forward(x, params)
    assert float(jnp.max(jnp.abs(out - ref_f32))) < 0.3, "f32 sanity check failed"

    # Grouped throughput path: many independent 8-sample minibatches in one pallas_call,
    # BN stats kept per group, G_BLK groups fused into the matmul M dimension.
    groups = 64
    xg = jax.random.normal(gkey, (groups, batch, INPUT_SIZE), dtype=jnp.float32)
    outg = jax.block_until_ready(generator_forward_grouped(xg, packed))
    assert outg.shape == (groups, batch, OUTPUT_SIZE)
    refg = jax.vmap(lambda xi: reference_forward(xi, params, matmul_dtype=jnp.bfloat16))(xg)
    assert jnp.allclose(outg, refg, atol=2e-2, rtol=2e-2), "grouped mismatch"

    print("KERNEL_OK")
</pallas_src>

<mosaic_0001>
module attributes {stable_mosaic.version = 11 : i64} {
  func.func @generator_kernel(%arg0: i32, %arg1: memref<1x8x2xf32, #tpu.memory_space<vmem>>, %arg2: memref<2x512xf32, #tpu.memory_space<vmem>>, %arg3: memref<512x512xbf16, #tpu.memory_space<vmem>>, %arg4: memref<512x512xbf16, #tpu.memory_space<vmem>>, %arg5: memref<512x512xbf16, #tpu.memory_space<vmem>>, %arg6: memref<512x128xbf16, #tpu.memory_space<vmem>>, %arg7: memref<9x512xf32, #tpu.memory_space<vmem>>, %arg8: memref<1x8x128xf32, #tpu.memory_space<vmem>>) attributes {dimension_semantics = [#tpu.dimension_semantics<parallel>], iteration_bounds = array<i64: 1>, scalar_prefetch = 0 : i64, scratch_operands = 0 : i64, tpu.core_type = #tpu.core_type<tc>, window_params = [{transform_indices = @transform_0, window_bounds = array<i64: 1, 8, 2>}, {pipeline_mode = #tpu.pipeline_mode<synchronous>, transform_indices = @transform_1, window_bounds = array<i64: 2, 512>}, {pipeline_mode = #tpu.pipeline_mode<synchronous>, transform_indices = @transform_2, window_bounds = array<i64: 512, 512>}, {pipeline_mode = #tpu.pipeline_mode<synchronous>, transform_indices = @transform_3, window_bounds = array<i64: 512, 512>}, {pipeline_mode = #tpu.pipeline_mode<synchronous>, transform_indices = @transform_4, window_bounds = array<i64: 512, 512>}, {pipeline_mode = #tpu.pipeline_mode<synchronous>, transform_indices = @transform_5, window_bounds = array<i64: 512, 128>}, {pipeline_mode = #tpu.pipeline_mode<synchronous>, transform_indices = @transform_6, window_bounds = array<i64: 9, 512>}, {transform_indices = @transform_7, window_bounds = array<i64: 1, 8, 128>}]} {
    %c0 = arith.constant 0 : index
    %c0_0 = arith.constant 0 : index
    %c0_1 = arith.constant 0 : index
    %0 = vector.load %arg1[%c0, %c0_0, %c0_1] : memref<1x8x2xf32, #tpu.memory_space<vmem>>, vector<1x8x2xf32>
    %c0_2 = arith.constant 0 : index
    %c0_3 = arith.constant 0 : index
    %1 = vector.load %arg2[%c0_2, %c0_3] : memref<2x512xf32, #tpu.memory_space<vmem>>, vector<2x512xf32>
    %2 = vector.extract_strided_slice %0 {offsets = [0, 0, 0], sizes = [1, 8, 1], strides = [1, 1, 1]} : vector<1x8x2xf32> to vector<1x8x1xf32>
    %3 = vector.extract_strided_slice %1 {offsets = [0, 0], sizes = [1, 512], strides = [1, 1]} : vector<2x512xf32> to vector<1x512xf32>
    %4 = vector.shape_cast %3 : vector<1x512xf32> to vector<1x1x512xf32>
    %5 = vector.broadcast %2 : vector<1x8x1xf32> to vector<1x8x512xf32>
    %6 = vector.broadcast %4 : vector<1x1x512xf32> to vector<1x8x512xf32>
    %7 = arith.mulf %5, %6 : vector<1x8x512xf32>
    %8 = vector.extract_strided_slice %0 {offsets = [0, 0, 1], sizes = [1, 8, 1], strides = [1, 1, 1]} : vector<1x8x2xf32> to vector<1x8x1xf32>
    %9 = vector.extract_strided_slice %1 {offsets = [1, 0], sizes = [1, 512], strides = [1, 1]} : vector<2x512xf32> to vector<1x512xf32>
    %10 = vector.shape_cast %9 : vector<1x512xf32> to vector<1x1x512xf32>
    %11 = vector.broadcast %8 : vector<1x8x1xf32> to vector<1x8x512xf32>
    %12 = vector.broadcast %10 : vector<1x1x512xf32> to vector<1x8x512xf32>
    %13 = arith.mulf %11, %12 : vector<1x8x512xf32>
    %14 = arith.addf %7, %13 : vector<1x8x512xf32>
    %c0_4 = arith.constant 0 : index
    %c0_5 = arith.constant 0 : index
    %15 = vector.load %arg7[%c0_4, %c0_5] : memref<9x512xf32, #tpu.memory_space<vmem>>, vector<1x512xf32>
    %c4 = arith.constant 4 : index
    %c0_6 = arith.constant 0 : index
    %16 = vector.load %arg7[%c4, %c0_6] : memref<9x512xf32, #tpu.memory_space<vmem>>, vector<1x512xf32>
    %cst = arith.constant dense<0.000000e+00> : vector<1x512xf32>
    %17 = vector.multi_reduction <add>, %14, %cst [1] : vector<1x8x512xf32> to vector<1x512xf32>
    %18 = vector.shape_cast %17 : vector<1x512xf32> to vector<1x1x512xf32>
    %cst_7 = arith.constant 1.250000e-01 : f32
    %19 = vector.broadcast %cst_7 : f32 to vector<1x1x512xf32>
    %20 = arith.mulf %18, %19 : vector<1x1x512xf32>
    %21 = vector.broadcast %20 : vector<1x1x512xf32> to vector<1x8x512xf32>
    %22 = arith.subf %14, %21 : vector<1x8x512xf32>
    %23 = arith.mulf %22, %22 : vector<1x8x512xf32>
    %cst_8 = arith.constant dense<0.000000e+00> : vector<1x512xf32>
    %24 = vector.multi_reduction <add>, %23, %cst_8 [1] : vector<1x8x512xf32> to vector<1x512xf32>
    %25 = vector.shape_cast %24 : vector<1x512xf32> to vector<1x1x512xf32>
    %cst_9 = arith.constant 1.250000e-01 : f32
    %26 = vector.broadcast %cst_9 : f32 to vector<1x1x512xf32>
    %27 = arith.mulf %25, %26 : vector<1x1x512xf32>
    %cst_10 = arith.constant 9.99999974E-6 : f32
    %28 = vector.broadcast %cst_10 : f32 to vector<1x1x512xf32>
    %29 = arith.addf %27, %28 : vector<1x1x512xf32>
    %30 = math.rsqrt %29 : vector<1x1x512xf32>
    %31 = vector.shape_cast %15 : vector<1x512xf32> to vector<1x1x512xf32>
    %32 = arith.mulf %31, %30 : vector<1x1x512xf32>
    %33 = vector.broadcast %32 : vector<1x1x512xf32> to vector<1x8x512xf32>
    %34 = arith.mulf %22, %33 : vector<1x8x512xf32>
    %35 = vector.shape_cast %16 : vector<1x512xf32> to vector<1x1x512xf32>
    %36 = vector.broadcast %35 : vector<1x1x512xf32> to vector<1x8x512xf32>
    %37 = arith.addf %34, %36 : vector<1x8x512xf32>
    %cst_11 = arith.constant 0.000000e+00 : f32
    %38 = vector.broadcast %cst_11 : f32 to vector<1x8x512xf32>
    %39 = arith.maximumf %37, %38 : vector<1x8x512xf32>
    %40 = vector.shape_cast %39 : vector<1x8x512xf32> to vector<8x512xf32>
    %41 = arith.truncf %40 : vector<8x512xf32> to vector<8x512xbf16>
    %c0_12 = arith.constant 0 : index
    %c0_13 = arith.constant 0 : index
    %42 = vector.load %arg3[%c0_12, %c0_13] : memref<512x512xbf16, #tpu.memory_space<vmem>>, vector<512x512xbf16>
    %cst_14 = arith.constant dense<0.000000e+00> : vector<8x512xf32>
    %43 = tpu.matmul %41, %42, %cst_14 {dimension_numbers = #tpu.dot_dimension_numbers<[1], [0], [0], [1], [0, 0, 1, 1], [], []>} : vector<8x512xbf16>, vector<512x512xbf16>, vector<8x512xf32> -> vector<8x512xf32>
    %44 = vector.shape_cast %43 : vector<8x512xf32> to vector<1x8x512xf32>
    %c1 = arith.constant 1 : index
    %c0_15 = arith.constant 0 : index
    %45 = vector.load %arg7[%c1, %c0_15] : memref<9x512xf32, #tpu.memory_space<vmem>>, vector<1x512xf32>
    %c5 = arith.constant 5 : index
    %c0_16 = arith.constant 0 : index
    %46 = vector.load %arg7[%c5, %c0_16] : memref<9x512xf32, #tpu.memory_space<vmem>>, vector<1x512xf32>
    %cst_17 = arith.constant dense<0.000000e+00> : vector<1x512xf32>
    %47 = vector.multi_reduction <add>, %44, %cst_17 [1] : vector<1x8x512xf32> to vector<1x512xf32>
    %48 = vector.shape_cast %47 : vector<1x512xf32> to vector<1x1x512xf32>
    %cst_18 = arith.constant 1.250000e-01 : f32
    %49 = vector.broadcast %cst_18 : f32 to vector<1x1x512xf32>
    %50 = arith.mulf %48, %49 : vector<1x1x512xf32>
    %51 = vector.broadcast %50 : vector<1x1x512xf32> to vector<1x8x512xf32>
    %52 = arith.subf %44, %51 : vector<1x8x512xf32>
    %53 = arith.mulf %52, %52 : vector<1x8x512xf32>
    %cst_19 = arith.constant dense<0.000000e+00> : vector<1x512xf32>
    %54 = vector.multi_reduction <add>, %53, %cst_19 [1] : vector<1x8x512xf32> to vector<1x512xf32>
    %55 = vector.shape_cast %54 : vector<1x512xf32> to vector<1x1x512xf32>
    %cst_20 = arith.constant 1.250000e-01 : f32
    %56 = vector.broadcast %cst_20 : f32 to vector<1x1x512xf32>
    %57 = arith.mulf %55, %56 : vector<1x1x512xf32>
    %cst_21 = arith.constant 9.99999974E-6 : f32
    %58 = vector.broadcast %cst_21 : f32 to vector<1x1x512xf32>
    %59 = arith.addf %57, %58 : vector<1x1x512xf32>
    %60 = math.rsqrt %59 : vector<1x1x512xf32>
    %61 = vector.shape_cast %45 : vector<1x512xf32> to vector<1x1x512xf32>
    %62 = arith.mulf %61, %60 : vector<1x1x512xf32>
    %63 = vector.broadcast %62 : vector<1x1x512xf32> to vector<1x8x512xf32>
    %64 = arith.mulf %52, %63 : vector<1x8x512xf32>
    %65 = vector.shape_cast %46 : vector<1x512xf32> to vector<1x1x512xf32>
    %66 = vector.broadcast %65 : vector<1x1x512xf32> to vector<1x8x512xf32>
    %67 = arith.addf %64, %66 : vector<1x8x512xf32>
    %cst_22 = arith.constant 0.000000e+00 : f32
    %68 = vector.broadcast %cst_22 : f32 to vector<1x8x512xf32>
    %69 = arith.maximumf %67, %68 : vector<1x8x512xf32>
    %70 = vector.shape_cast %69 : vector<1x8x512xf32> to vector<8x512xf32>
    %71 = arith.truncf %70 : vector<8x512xf32> to vector<8x512xbf16>
    %c0_23 = arith.constant 0 : index
    %c0_24 = arith.constant 0 : index
    %72 = vector.load %arg4[%c0_23, %c0_24] : memref<512x512xbf16, #tpu.memory_space<vmem>>, vector<512x512xbf16>
    %cst_25 = arith.constant dense<0.000000e+00> : vector<8x512xf32>
    %73 = tpu.matmul %71, %72, %cst_25 {dimension_numbers = #tpu.dot_dimension_numbers<[1], [0], [0], [1], [0, 0, 1, 1], [], []>} : vector<8x512xbf16>, vector<512x512xbf16>, vector<8x512xf32> -> vector<8x512xf32>
    %74 = vector.shape_cast %73 : vector<8x512xf32> to vector<1x8x512xf32>
    %c2 = arith.constant 2 : index
    %c0_26 = arith.constant 0 : index
    %75 = vector.load %arg7[%c2, %c0_26] : memref<9x512xf32, #tpu.memory_space<vmem>>, vector<1x512xf32>
    %c6 = arith.constant 6 : index
    %c0_27 = arith.constant 0 : index
    %76 = vector.load %arg7[%c6, %c0_27] : memref<9x512xf32, #tpu.memory_space<vmem>>, vector<1x512xf32>
    %cst_28 = arith.constant dense<0.000000e+00> : vector<1x512xf32>
    %77 = vector.multi_reduction <add>, %74, %cst_28 [1] : vector<1x8x512xf32> to vector<1x512xf32>
    %78 = vector.shape_cast %77 : vector<1x512xf32> to vector<1x1x512xf32>
    %cst_29 = arith.constant 1.250000e-01 : f32
    %79 = vector.broadcast %cst_29 : f32 to vector<1x1x512xf32>
    %80 = arith.mulf %78, %79 : vector<1x1x512xf32>
    %81 = vector.broadcast %80 : vector<1x1x512xf32> to vector<1x8x512xf32>
    %82 = arith.subf %74, %81 : vector<1x8x512xf32>
    %83 = arith.mulf %82, %82 : vector<1x8x512xf32>
    %cst_30 = arith.constant dense<0.000000e+00> : vector<1x512xf32>
    %84 = vector.multi_reduction <add>, %83, %cst_30 [1] : vector<1x8x512xf32> to vector<1x512xf32>
    %85 = vector.shape_cast %84 : vector<1x512xf32> to vector<1x1x512xf32>
    %cst_31 = arith.constant 1.250000e-01 : f32
    %86 = vector.broadcast %cst_31 : f32 to vector<1x1x512xf32>
    %87 = arith.mulf %85, %86 : vector<1x1x512xf32>
    %cst_32 = arith.constant 9.99999974E-6 : f32
    %88 = vector.broadcast %cst_32 : f32 to vector<1x1x512xf32>
    %89 = arith.addf %87, %88 : vector<1x1x512xf32>
    %90 = math.rsqrt %89 : vector<1x1x512xf32>
    %91 = vector.shape_cast %75 : vector<1x512xf32> to vector<1x1x512xf32>
    %92 = arith.mulf %91, %90 : vector<1x1x512xf32>
    %93 = vector.broadcast %92 : vector<1x1x512xf32> to vector<1x8x512xf32>
    %94 = arith.mulf %82, %93 : vector<1x8x512xf32>
    %95 = vector.shape_cast %76 : vector<1x512xf32> to vector<1x1x512xf32>
    %96 = vector.broadcast %95 : vector<1x1x512xf32> to vector<1x8x512xf32>
    %97 = arith.addf %94, %96 : vector<1x8x512xf32>
    %cst_33 = arith.constant 0.000000e+00 : f32
    %98 = vector.broadcast %cst_33 : f32 to vector<1x8x512xf32>
    %99 = arith.maximumf %97, %98 : vector<1x8x512xf32>
    %100 = vector.shape_cast %99 : vector<1x8x512xf32> to vector<8x512xf32>
    %101 = arith.truncf %100 : vector<8x512xf32> to vector<8x512xbf16>
    %c0_34 = arith.constant 0 : index
    %c0_35 = arith.constant 0 : index
    %102 = vector.load %arg5[%c0_34, %c0_35] : memref<512x512xbf16, #tpu.memory_space<vmem>>, vector<512x512xbf16>
    %cst_36 = arith.constant dense<0.000000e+00> : vector<8x512xf32>
    %103 = tpu.matmul %101, %102, %cst_36 {dimension_numbers = #tpu.dot_dimension_numbers<[1], [0], [0], [1], [0, 0, 1, 1], [], []>} : vector<8x512xbf16>, vector<512x512xbf16>, vector<8x512xf32> -> vector<8x512xf32>
    %104 = vector.shape_cast %103 : vector<8x512xf32> to vector<1x8x512xf32>
    %c3 = arith.constant 3 : index
    %c0_37 = arith.constant 0 : index
    %105 = vector.load %arg7[%c3, %c0_37] : memref<9x512xf32, #tpu.memory_space<vmem>>, vector<1x512xf32>
    %c7 = arith.constant 7 : index
    %c0_38 = arith.constant 0 : index
    %106 = vector.load %arg7[%c7, %c0_38] : memref<9x512xf32, #tpu.memory_space<vmem>>, vector<1x512xf32>
    %cst_39 = arith.constant dense<0.000000e+00> : vector<1x512xf32>
    %107 = vector.multi_reduction <add>, %104, %cst_39 [1] : vector<1x8x512xf32> to vector<1x512xf32>
    %108 = vector.shape_cast %107 : vector<1x512xf32> to vector<1x1x512xf32>
    %cst_40 = arith.constant 1.250000e-01 : f32
    %109 = vector.broadcast %cst_40 : f32 to vector<1x1x512xf32>
    %110 = arith.mulf %108, %109 : vector<1x1x512xf32>
    %111 = vector.broadcast %110 : vector<1x1x512xf32> to vector<1x8x512xf32>
    %112 = arith.subf %104, %111 : vector<1x8x512xf32>
    %113 = arith.mulf %112, %112 : vector<1x8x512xf32>
    %cst_41 = arith.constant dense<0.000000e+00> : vector<1x512xf32>
    %114 = vector.multi_reduction <add>, %113, %cst_41 [1] : vector<1x8x512xf32> to vector<1x512xf32>
    %115 = vector.shape_cast %114 : vector<1x512xf32> to vector<1x1x512xf32>
    %cst_42 = arith.constant 1.250000e-01 : f32
    %116 = vector.broadcast %cst_42 : f32 to vector<1x1x512xf32>
    %117 = arith.mulf %115, %116 : vector<1x1x512xf32>
    %cst_43 = arith.constant 9.99999974E-6 : f32
    %118 = vector.broadcast %cst_43 : f32 to vector<1x1x512xf32>
    %119 = arith.addf %117, %118 : vector<1x1x512xf32>
    %120 = math.rsqrt %119 : vector<1x1x512xf32>
    %121 = vector.shape_cast %105 : vector<1x512xf32> to vector<1x1x512xf32>
    %122 = arith.mulf %121, %120 : vector<1x1x512xf32>
    %123 = vector.broadcast %122 : vector<1x1x512xf32> to vector<1x8x512xf32>
    %124 = arith.mulf %112, %123 : vector<1x8x512xf32>
    %125 = vector.shape_cast %106 : vector<1x512xf32> to vector<1x1x512xf32>
    %126 = vector.broadcast %125 : vector<1x1x512xf32> to vector<1x8x512xf32>
    %127 = arith.addf %124, %126 : vector<1x8x512xf32>
    %cst_44 = arith.constant 0.000000e+00 : f32
    %128 = vector.broadcast %cst_44 : f32 to vector<1x8x512xf32>
    %129 = arith.maximumf %127, %128 : vector<1x8x512xf32>
    %130 = vector.shape_cast %129 : vector<1x8x512xf32> to vector<8x512xf32>
    %131 = arith.truncf %130 : vector<8x512xf32> to vector<8x512xbf16>
    %c0_45 = arith.constant 0 : index
    %c0_46 = arith.constant 0 : index
    %132 = vector.load %arg6[%c0_45, %c0_46] : memref<512x128xbf16, #tpu.memory_space<vmem>>, vector<512x128xbf16>
    %cst_47 = arith.constant dense<0.000000e+00> : vector<8x128xf32>
    %133 = tpu.matmul %131, %132, %cst_47 {dimension_numbers = #tpu.dot_dimension_numbers<[1], [0], [0], [1], [0, 0, 1, 1], [], []>} : vector<8x512xbf16>, vector<512x128xbf16>, vector<8x128xf32> -> vector<8x128xf32>
    %c8 = arith.constant 8 : index
    %c0_48 = arith.constant 0 : index
    %134 = vector.load %arg7[%c8, %c0_48] : memref<9x512xf32, #tpu.memory_space<vmem>>, vector<1x128xf32>
    %135 = vector.broadcast %134 : vector<1x128xf32> to vector<8x128xf32>
    %136 = arith.addf %133, %135 : vector<8x128xf32>
    %137 = vector.shape_cast %136 : vector<8x128xf32> to vector<1x8x128xf32>
    %c0_49 = arith.constant 0 : index
    %c0_50 = arith.constant 0 : index
    %c0_51 = arith.constant 0 : index
    %138 = vector.load %arg8[%c0_49, %c0_50, %c0_51] : memref<1x8x128xf32, #tpu.memory_space<vmem>>, vector<1x8x128xf32>
    tpu.vector_store %arg8[%c0_49, %c0_50, %c0_51], %137 {strides = array<i32>} : memref<1x8x128xf32, #tpu.memory_space<vmem>>, vector<1x8x128xf32>,
    return
  }
  func.func @transform_0(%arg0: i32) -> (i32, i32, i32) {
    %c0_i32 = arith.constant 0 : i32
    %c0_i32_0 = arith.constant 0 : i32
    %c0_i32_1 = arith.constant 0 : i32
    return %arg0, %c0_i32, %c0_i32_0 : i32, i32, i32
  }
  func.func @transform_1(%arg0: i32) -> (i32, i32) {
    %c0_i32 = arith.constant 0 : i32
    %c0_i32_0 = arith.constant 0 : i32
    %c0_i32_1 = arith.constant 0 : i32
    return %c0_i32, %c0_i32_0 : i32, i32
  }
  func.func @transform_2(%arg0: i32) -> (i32, i32) {
    %c0_i32 = arith.constant 0 : i32
    %c0_i32_0 = arith.constant 0 : i32
    %c0_i32_1 = arith.constant 0 : i32
    return %c0_i32, %c0_i32_0 : i32, i32
  }
  func.func @transform_3(%arg0: i32) -> (i32, i32) {
    %c0_i32 = arith.constant 0 : i32
    %c0_i32_0 = arith.constant 0 : i32
    %c0_i32_1 = arith.constant 0 : i32
    return %c0_i32, %c0_i32_0 : i32, i32
  }
  func.func @transform_4(%arg0: i32) -> (i32, i32) {
    %c0_i32 = arith.constant 0 : i32
    %c0_i32_0 = arith.constant 0 : i32
    %c0_i32_1 = arith.constant 0 : i32
    return %c0_i32, %c0_i32_0 : i32, i32
  }
  func.func @transform_5(%arg0: i32) -> (i32, i32) {
    %c0_i32 = arith.constant 0 : i32
    %c0_i32_0 = arith.constant 0 : i32
    %c0_i32_1 = arith.constant 0 : i32
    return %c0_i32, %c0_i32_0 : i32, i32
  }
  func.func @transform_6(%arg0: i32) -> (i32, i32) {
    %c0_i32 = arith.constant 0 : i32
    %c0_i32_0 = arith.constant 0 : i32
    %c0_i32_1 = arith.constant 0 : i32
    return %c0_i32, %c0_i32_0 : i32, i32
  }
  func.func @transform_7(%arg0: i32) -> (i32, i32, i32) {
    %c0_i32 = arith.constant 0 : i32
    %c0_i32_0 = arith.constant 0 : i32
    %c0_i32_1 = arith.constant 0 : i32
    return %arg0, %c0_i32, %c0_i32_0 : i32, i32, i32
  }
}

</mosaic_0001>

<llo_original>
// kernel: _forward_padded.1
$region0: #{_forward_padded.1}
  #allocation0 [shape = 'u32[]', space=smem, size = 0x4, offset = 0x4, fixed_abs, tag = 'smem constant byte address 0x4 - core index']
  #allocation1 [shape = 'u32[144,128]{1,0:T(1,128)}', space=vmem, size = 0x12000, scoped, tag = 'internal scratch']
  %s0 = inlined_call_operand.vmem [shape: f32[1,8,2], index: 0, kind: input, shape index: {}]
  %s1 = inlined_call_operand.vmem [shape: f32[2,512], index: 1, kind: input, shape index: {}]
  %s2 = inlined_call_operand.hbm [shape: bf16[512,512], index: 2, kind: input, shape index: {}]
  %s3 = inlined_call_operand.hbm [shape: bf16[512,512], index: 3, kind: input, shape index: {}]
  %s4 = inlined_call_operand.hbm [shape: bf16[512,512], index: 4, kind: input, shape index: {}]
  %s5 = inlined_call_operand.hbm [shape: bf16[512,128], index: 5, kind: input, shape index: {}]
  %s6 = inlined_call_operand.hbm [shape: f32[9,512], index: 6, kind: input, shape index: {}]
  %s7 = inlined_call_operand.hbm [shape: f32[1,8,128], index: 7, kind: output, shape index: {}]
  %s8 = sld [smem:[#allocation0]]
  $region58: #{_forward_padded.1} parent=0
    _
  %s10 = ssub.s32 1, %s8
  %s11 = scalar_select 0, %s10, %s8
  $region1: #{_forward_padded.1} parent=0
    #allocation2 [shape = 'u8[524288]{0}', space=vmem, size = 0x80000, scoped, tag = 'input window, operand 2, single buffered']
    #allocation3 [shape = 's32[1]{0}', space=sflag, size = 0x4, scoped, tag = 'scoped memory for _forward_padded.1']
    #allocation4 [shape = 's32[1]{0}', space=sflag, size = 0x4, scoped, tag = 'scoped memory for _forward_padded.1']
    #allocation5 [shape = 'u8[524288]{0}', space=vmem, size = 0x80000, scoped, tag = 'input window, operand 3, single buffered']
    #allocation6 [shape = 's32[1]{0}', space=sflag, size = 0x4, scoped, tag = 'scoped memory for _forward_padded.1']
    #allocation7 [shape = 'u8[524288]{0}', space=vmem, size = 0x80000, scoped, tag = 'input window, operand 4, single buffered']
    #allocation8 [shape = 'u8[131072]{0}', space=vmem, size = 0x20000, scoped, tag = 'input window, operand 5, single buffered']
    #allocation9 [shape = 's32[1]{0}', space=sflag, size = 0x4, scoped, tag = 'scoped memory for _forward_padded.1']
    #allocation10 [shape = 'u8[32768]{0}', space=vmem, size = 0x8000, scoped, tag = 'input window, operand 6, single buffered']
    #allocation11 [shape = 'u8[4096]{0}', space=vmem, size = 0x1000, scoped, tag = 'output window, operand 0, single buffered']
    %12 = vsyncpa [#allocation3], 0
    %13 = vsyncpa [#allocation6], 0
    %14 = vsyncpa [#allocation9], 0
    %15 = vsyncpa [#allocation4], 0
    // Predicated region
    $region2: #{_forward_padded.1} parent=1 // pred_check
      _
    $region3: #{_forward_padded.1} parent=1 // pred_check_branch
      %17 = sbr.rel (0) target = $region5
    $region4: #{_forward_padded.1} parent=1 // pred_region
      _
    $region5: #{_forward_padded.1} parent=1 // pred_fallthru
      _
    // Predicated region
    $region6: #{_forward_padded.1} parent=1 // pred_check
      _
    $region7: #{_forward_padded.1} parent=1 // pred_check_branch
      %19 = sbr.rel (0) target = $region9
    $region8: #{_forward_padded.1} parent=1 // pred_region
      _
    $region9: #{_forward_padded.1} parent=1 // pred_fallthru
      _
    // Predicated region
    $region10: #{_forward_padded.1} parent=1 // pred_check
      _
    $region11: #{_forward_padded.1} parent=1 // pred_check_branch
      %21 = sbr.rel (0) target = $region13
    $region12: #{_forward_padded.1} parent=1 // pred_region
      %s23 = ssub.s32 16384, 16384
      %24 = vsyncadd [#allocation3], %s23
      %s25 = sshll.u32 [#allocation2], 4
      %s26 = int_to_ptr.vmem [resolvable:$true] %s25
      %31 = dma.hbm_to_vmem [thread:$0]  %s2, 16384, %s26, [#allocation3], 256, 256, 16
    $region13: #{_forward_padded.1} parent=1 // pred_fallthru
      _
    // Predicated region
    $region14: #{_forward_padded.1} parent=1 // pred_check
      _
    $region15: #{_forward_padded.1} parent=1 // pred_check_branch
      %33 = sbr.rel (0) target = $region17
    $region16: #{_forward_padded.1} parent=1 // pred_region
      %s35 = ssub.s32 16384, 16384
      %36 = vsyncadd [#allocation6], %s35
      %s37 = sshll.u32 [#allocation5], 4
      %s38 = int_to_ptr.vmem [resolvable:$true] %s37
      %43 = dma.hbm_to_vmem [thread:$0]  %s3, 16384, %s38, [#allocation6], 256, 256, 16
    $region17: #{_forward_padded.1} parent=1 // pred_fallthru
      _
    // Predicated region
    $region18: #{_forward_padded.1} parent=1 // pred_check
      _
    $region19: #{_forward_padded.1} parent=1 // pred_check_branch
      %45 = sbr.rel (0) target = $region21
    $region20: #{_forward_padded.1} parent=1 // pred_region
      %s47 = ssub.s32 16384, 16384
      %48 = vsyncadd [#allocation6], %s47
      %s49 = sshll.u32 [#allocation7], 4
      %s50 = int_to_ptr.vmem [resolvable:$true] %s49
      %55 = dma.hbm_to_vmem [thread:$0]  %s4, 16384, %s50, [#allocation6], 256, 256, 16
    $region21: #{_forward_padded.1} parent=1 // pred_fallthru
      _
    // Predicated region
    $region22: #{_forward_padded.1} parent=1 // pred_check
      _
    $region23: #{_forward_padded.1} parent=1 // pred_check_branch
      %57 = sbr.rel (0) target = $region25
    $region24: #{_forward_padded.1} parent=1 // pred_region
      %s59 = ssub.s32 4096, 4096
      %60 = vsyncadd [#allocation9], %s59
      %s61 = sshll.u32 [#allocation8], 4
      %s62 = int_to_ptr.vmem [resolvable:$true] %s61
      %67 = dma.hbm_to_vmem [thread:$0]  %s5, 4096, %s62, [#allocation9], 64, 64, 4
    $region25: #{_forward_padded.1} parent=1 // pred_fallthru
      _
    // Predicated region
    $region26: #{_forward_padded.1} parent=1 // pred_check
      _
    $region27: #{_forward_padded.1} parent=1 // pred_check_branch
      %69 = sbr.rel (0) target = $region29
    $region28: #{_forward_padded.1} parent=1 // pred_region
      %s71 = ssub.s32 1024, 1024
      %72 = vsyncadd [#allocation9], %s71
      %s73 = sshll.u32 [#allocation10], 4
      %s74 = int_to_ptr.vmem [resolvable:$true] %s73
      %79 = dma.hbm_to_vmem [thread:$0]  %s6, 1024, %s74, [#allocation9], 512, 512, 32
    $region29: #{_forward_padded.1} parent=1 // pred_fallthru
      _
    // Predicated region
    $region30: #{_forward_padded.1} parent=1 // pred_check
      _
    $region31: #{_forward_padded.1} parent=1 // pred_check_branch
      %81 = sbr.rel (0) target = $region33
    $region32: #{_forward_padded.1} parent=1 // pred_region
      %82 = dma.done [#allocation3], 16384
    $region33: #{_forward_padded.1} parent=1 // pred_fallthru
      _
    // Predicated region
    $region34: #{_forward_padded.1} parent=1 // pred_check
      _
    $region35: #{_forward_padded.1} parent=1 // pred_check_branch
      %84 = sbr.rel (0) target = $region37
    $region36: #{_forward_padded.1} parent=1 // pred_region
      %85 = dma.done [#allocation6], 16384
    $region37: #{_forward_padded.1} parent=1 // pred_fallthru
      _
    // Predicated region
    $region38: #{_forward_padded.1} parent=1 // pred_check
      _
    $region39: #{_forward_padded.1} parent=1 // pred_check_branch
      %87 = sbr.rel (0) target = $region41
    $region40: #{_forward_padded.1} parent=1 // pred_region
      %88 = dma.done [#allocation6], 16384
    $region41: #{_forward_padded.1} parent=1 // pred_fallthru
      _
    // Predicated region
    $region42: #{_forward_padded.1} parent=1 // pred_check
      _
    $region43: #{_forward_padded.1} parent=1 // pred_check_branch
      %90 = sbr.rel (0) target = $region45
    $region44: #{_forward_padded.1} parent=1 // pred_region
      %91 = dma.done [#allocation9], 4096
    $region45: #{_forward_padded.1} parent=1 // pred_fallthru
      _
    // Predicated region
    $region46: #{_forward_padded.1} parent=1 // pred_check
      _
    $region47: #{_forward_padded.1} parent=1 // pred_check_branch
      %93 = sbr.rel (0) target = $region49
    $region48: #{_forward_padded.1} parent=1 // pred_region
      %94 = dma.done [#allocation9], 1024
    $region49: #{_forward_padded.1} parent=1 // pred_fallthru
      _
    %v96 = vld [vmem:[%s0] sm:$0xff]
    %v97 = vld [vmem:[%s1] sm:$0xff]
    %99 = vset.pattern.permute.xlu0 0
    %100 = vperm.xlu0 %99, %v96
    %v101 = vpop.permute.xlu0 %100
    %v104 = vlaneseq
    %v105 = vshrl.u32 %v104, 7
    %v106 = vsub.s32 0, %v105
    %v107 = vrot.slane %v97, %v106
    %v108 = vlaneseq
    %v109 = vshrl.u32 %v108, 7
    %v110 = vsub.s32 2, %v109
    %v111 = vrot.slane %v97, %v110
    %v112 = vlaneseq
    %v113 = vshrl.u32 %v112, 7
    %v114 = vsub.s32 4, %v113
    %v115 = vrot.slane %v97, %v114
    %v116 = vlaneseq
    %v117 = vshrl.u32 %v116, 7
    %v118 = vsub.s32 6, %v117
    %v119 = vrot.slane %v97, %v118
    %v124 = vlaneseq
    %v125 = vshrl.u32 %v124, 7
    %v126 = vsub.s32 0, %v125
    %v127 = vrot.slane %v107, %v126
    %v128 = vlaneseq
    %v129 = vshrl.u32 %v128, 7
    %v130 = vsub.s32 0, %v129
    %v131 = vrot.slane %v111, %v130
    %v132 = vlaneseq
    %v133 = vshrl.u32 %v132, 7
    %v134 = vsub.s32 0, %v133
    %v135 = vrot.slane %v115, %v134
    %v136 = vlaneseq
    %v137 = vshrl.u32 %v136, 7
    %v138 = vsub.s32 0, %v137
    %v139 = vrot.slane %v119, %v138
    %v140 = vmul.f32 %v101, %v127
    %v141 = vmul.f32 %v101, %v131
    %v142 = vmul.f32 %v101, %v135
    %v143 = vmul.f32 %v101, %v139
    %144 = vset.pattern.permute.xlu0 1
    %145 = vperm.xlu0 %144, %v96
    %v146 = vpop.permute.xlu0 %145
    %v148 = vlaneseq
    %v149 = vshrl.u32 %v148, 7
    %v150 = vsub.s32 1, %v149
    %v151 = vrot.slane %v97, %v150
    %v152 = vlaneseq
    %v153 = vshrl.u32 %v152, 7
    %v154 = vsub.s32 3, %v153
    %v155 = vrot.slane %v97, %v154
    %v156 = vlaneseq
    %v157 = vshrl.u32 %v156, 7
    %v158 = vsub.s32 5, %v157
    %v159 = vrot.slane %v97, %v158
    %v160 = vlaneseq
    %v161 = vshrl.u32 %v160, 7
    %v162 = vsub.s32 7, %v161
    %v163 = vrot.slane %v97, %v162
    %v168 = vlaneseq
    %v169 = vshrl.u32 %v168, 7
    %v170 = vsub.s32 1, %v169
    %v171 = vrot.slane %v151, %v170
    %v172 = vlaneseq
    %v173 = vshrl.u32 %v172, 7
    %v174 = vsub.s32 1, %v173
    %v175 = vrot.slane %v155, %v174
    %v176 = vlaneseq
    %v177 = vshrl.u32 %v176, 7
    %v178 = vsub.s32 1, %v177
    %v179 = vrot.slane %v159, %v178
    %v180 = vlaneseq
    %v181 = vshrl.u32 %v180, 7
    %v182 = vsub.s32 1, %v181
    %v183 = vrot.slane %v163, %v182
    %v184 = vmul.f32 %v146, %v171
    %v185 = vmul.f32 %v146, %v175
    %v186 = vmul.f32 %v146, %v179
    %v187 = vmul.f32 %v146, %v183
    %v188 = vadd.f32 %v140, %v184
    %v189 = vadd.f32 %v141, %v185
    %v190 = vadd.f32 %v142, %v186
    %v191 = vadd.f32 %v143, %v187
    %v192 = vld [vmem:[#allocation10] ss:$8 sm:$0xf]
    %s193 = scalar_lea.vmem [#allocation10], 4
    %v194 = vld [vmem:[%s193] ss:$8 sm:$0xf]
    %v195 = vrot.slane %v188, 4
    %v196 = vadd.f32 %v188, %v195
    %v197 = vrot.slane %v196, 2
    %v198 = vadd.f32 %v196, %v197
    %v199 = vrot.slane %v198, 1
    %v200 = vadd.f32 %v198, %v199
    %v201 = vrot.slane %v189, 4
    %v202 = vadd.f32 %v189, %v201
    %v203 = vrot.slane %v202, 2
    %v204 = vadd.f32 %v202, %v203
    %v205 = vrot.slane %v204, 1
    %v206 = vadd.f32 %v204, %v205
    %v207 = vrot.slane %v190, 4
    %v208 = vadd.f32 %v190, %v207
    %v209 = vrot.slane %v208, 2
    %v210 = vadd.f32 %v208, %v209
    %v211 = vrot.slane %v210, 1
    %v212 = vadd.f32 %v210, %v211
    %v213 = vrot.slane %v191, 4
    %v214 = vadd.f32 %v191, %v213
    %v215 = vrot.slane %v214, 2
    %v216 = vadd.f32 %v214, %v215
    %v217 = vrot.slane %v216, 1
    %v218 = vadd.f32 %v216, %v217
    %v219 = vmul.f32 %v200, 0.125
    %v220 = vmul.f32 %v206, 0.125
    %v221 = vmul.f32 %v212, 0.125
    %v222 = vmul.f32 %v218, 0.125
    %v223 = vsub.f32 %v188, %v219
    %v224 = vsub.f32 %v189, %v220
    %v225 = vsub.f32 %v190, %v221
    %v226 = vsub.f32 %v191, %v222
    %v227 = vmul.f32 %v223, %v223
    %v228 = vmul.f32 %v224, %v224
    %v229 = vmul.f32 %v225, %v225
    %v230 = vmul.f32 %v226, %v226
    %v231 = vrot.slane %v227, 4
    %v232 = vadd.f32 %v227, %v231
    %v233 = vrot.slane %v232, 2
    %v234 = vadd.f32 %v232, %v233
    %v235 = vrot.slane %v234, 1
    %v236 = vadd.f32 %v234, %v235
    %v237 = vrot.slane %v228, 4
    %v238 = vadd.f32 %v228, %v237
    %v239 = vrot.slane %v238, 2
    %v240 = vadd.f32 %v238, %v239
    %v241 = vrot.slane %v240, 1
    %v242 = vadd.f32 %v240, %v241
    %v243 = vrot.slane %v229, 4
    %v244 = vadd.f32 %v229, %v243
    %v245 = vrot.slane %v244, 2
    %v246 = vadd.f32 %v244, %v245
    %v247 = vrot.slane %v246, 1
    %v248 = vadd.f32 %v246, %v247
    %v249 = vrot.slane %v230, 4
    %v250 = vadd.f32 %v230, %v249
    %v251 = vrot.slane %v250, 2
    %v252 = vadd.f32 %v250, %v251
    %v253 = vrot.slane %v252, 1
    %v254 = vadd.f32 %v252, %v253
    %v255 = vmul.f32 %v236, 0.125
    %v256 = vmul.f32 %v242, 0.125
    %v257 = vmul.f32 %v248, 0.125
    %v258 = vmul.f32 %v254, 0.125
    %v259 = vadd.f32 %v255, 1e-05
    %v260 = vadd.f32 %v256, 1e-05
    %v261 = vadd.f32 %v257, 1e-05
    %v262 = vadd.f32 %v258, 1e-05
    %v263 = vrsqrt.pop %v259
    %v264 = vrsqrt.pop %v260
    %v265 = vrsqrt.pop %v261
    %v266 = vrsqrt.pop %v262
    %v271 = vcombine.low %v263, %v264
    %v272 = vcombine.low %v265, %v266
    %v274 = vunpack.c.l.s4 1966171168
    %v275 = vunpack.c.0.s8 %v274
    %v276 = vlaneseq
    %v277 = vshrl.u32 %v276, 7
    %v278 = vsub.s32 %v275, %v277
    %v279 = vrot.slane %v271, %v278
    %v281 = vunpack.c.l.s4 1966171168
    %v282 = vunpack.c.0.s8 %v281
    %v283 = vlaneseq
    %v284 = vshrl.u32 %v283, 7
    %v285 = vsub.s32 %v282, %v284
    %v286 = vrot.slane %v272, %v285
    %v287 = vcombine.low %v279, %v286
    %v289 = vunpack.c.l.s4 1966171168
    %v290 = vunpack.c.0.s8 %v289
    %v291 = vlaneseq
    %v292 = vshrl.u32 %v291, 7
    %v293 = vsub.s32 %v290, %v292
    %v294 = vrot.slane %v287, %v293
    %v296 = vmul.f32 %v192, %v294
    %v298 = vlaneseq
    %v299 = vshrl.u32 %v298, 7
    %v300 = vsub.s32 0, %v299
    %v301 = vrot.slane %v296, %v300
    %v302 = vlaneseq
    %v303 = vshrl.u32 %v302, 7
    %v304 = vsub.s32 1, %v303
    %v305 = vrot.slane %v296, %v304
    %v306 = vlaneseq
    %v307 = vshrl.u32 %v306, 7
    %v308 = vsub.s32 2, %v307
    %v309 = vrot.slane %v296, %v308
    %v310 = vlaneseq
    %v311 = vshrl.u32 %v310, 7
    %v312 = vsub.s32 3, %v311
    %v313 = vrot.slane %v296, %v312
    %v318 = vmul.f32 %v223, %v301
    %v319 = vmul.f32 %v224, %v305
    %v320 = vmul.f32 %v225, %v309
    %v321 = vmul.f32 %v226, %v313
    %v323 = vlaneseq
    %v324 = vshrl.u32 %v323, 7
    %v325 = vsub.s32 0, %v324
    %v326 = vrot.slane %v194, %v325
    %v327 = vlaneseq
    %v328 = vshrl.u32 %v327, 7
    %v329 = vsub.s32 1, %v328
    %v330 = vrot.slane %v194, %v329
    %v331 = vlaneseq
    %v332 = vshrl.u32 %v331, 7
    %v333 = vsub.s32 2, %v332
    %v334 = vrot.slane %v194, %v333
    %v335 = vlaneseq
    %v336 = vshrl.u32 %v335, 7
    %v337 = vsub.s32 3, %v336
    %v338 = vrot.slane %v194, %v337
    %v343 = vadd.f32 %v318, %v326
    %v344 = vadd.f32 %v319, %v330
    %v345 = vadd.f32 %v320, %v334
    %v346 = vadd.f32 %v321, %v338
    %v347 = vmax.f32 %v343, 0.0
    %v348 = vmax.f32 %v344, 0.0
    %v349 = vmax.f32 %v345, 0.0
    %v350 = vmax.f32 %v346, 0.0
    %v351 = vpack.c.bf16 %v347, %v347
    %v352 = vpack.c.bf16 %v348, %v348
    %v353 = vpack.c.bf16 %v349, %v349
    %v354 = vpack.c.bf16 %v350, %v350
    %v355 = vld [vmem:[#allocation2] sm:$0xff]
    %v356 = vld [vmem:[#allocation2 + $0x8] sm:$0xff]
    %v357 = vld [vmem:[#allocation2 + $0x10] sm:$0xff]
    %v358 = vld [vmem:[#allocation2 + $0x18] sm:$0xff]
    %v359 = vld [vmem:[#allocation2 + $0x20] sm:$0xff]
    %v360 = vld [vmem:[#allocation2 + $0x28] sm:$0xff]
    %v361 = vld [vmem:[#allocation2 + $0x30] sm:$0xff]
    %v362 = vld [vmem:[#allocation2 + $0x38] sm:$0xff]
    %v363 = vld [vmem:[#allocation2 + $0x40] sm:$0xff]
    %v364 = vld [vmem:[#allocation2 + $0x48] sm:$0xff]
    %v365 = vld [vmem:[#allocation2 + $0x50] sm:$0xff]
    %v366 = vld [vmem:[#allocation2 + $0x58] sm:$0xff]
    %v367 = vld [vmem:[#allocation2 + $0x60] sm:$0xff]
    %v368 = vld [vmem:[#allocation2 + $0x68] sm:$0xff]
    %v369 = vld [vmem:[#allocation2 + $0x70] sm:$0xff]
    %v370 = vld [vmem:[#allocation2 + $0x78] sm:$0xff]
    %v371 = vld [vmem:[#allocation2 + $0x80] sm:$0xff]
    %v372 = vld [vmem:[#allocation2 + $0x88] sm:$0xff]
    %v373 = vld [vmem:[#allocation2 + $0x90] sm:$0xff]
    %v374 = vld [vmem:[#allocation2 + $0x98] sm:$0xff]
    %v375 = vld [vmem:[#allocation2 + $0xa0] sm:$0xff]
    %v376 = vld [vmem:[#allocation2 + $0xa8] sm:$0xff]
    %v377 = vld [vmem:[#allocation2 + $0xb0] sm:$0xff]
    %v378 = vld [vmem:[#allocation2 + $0xb8] sm:$0xff]
    %v379 = vld [vmem:[#allocation2 + $0xc0] sm:$0xff]
    %v380 = vld [vmem:[#allocation2 + $0xc8] sm:$0xff]
    %v381 = vld [vmem:[#allocation2 + $0xd0] sm:$0xff]
    %v382 = vld [vmem:[#allocation2 + $0xd8] sm:$0xff]
    %v383 = vld [vmem:[#allocation2 + $0xe0] sm:$0xff]
    %v384 = vld [vmem:[#allocation2 + $0xe8] sm:$0xff]
    %v385 = vld [vmem:[#allocation2 + $0xf0] sm:$0xff]
    %v386 = vld [vmem:[#allocation2 + $0xf8] sm:$0xff]
    %v387 = vld [vmem:[#allocation2 + $0x100] sm:$0xff]
    %v388 = vld [vmem:[#allocation2 + $0x108] sm:$0xff]
    %v389 = vld [vmem:[#allocation2 + $0x110] sm:$0xff]
    %v390 = vld [vmem:[#allocation2 + $0x118] sm:$0xff]
    %v391 = vld [vmem:[#allocation2 + $0x120] sm:$0xff]
    %v392 = vld [vmem:[#allocation2 + $0x128] sm:$0xff]
    %v393 = vld [vmem:[#allocation2 + $0x130] sm:$0xff]
    %v394 = vld [vmem:[#allocation2 + $0x138] sm:$0xff]
    %v395 = vld [vmem:[#allocation2 + $0x140] sm:$0xff]
    %v396 = vld [vmem:[#allocation2 + $0x148] sm:$0xff]
    %v397 = vld [vmem:[#allocation2 + $0x150] sm:$0xff]
    %v398 = vld [vmem:[#allocation2 + $0x158] sm:$0xff]
    %v399 = vld [vmem:[#allocation2 + $0x160] sm:$0xff]
    %v400 = vld [vmem:[#allocation2 + $0x168] sm:$0xff]
    %v401 = vld [vmem:[#allocation2 + $0x170] sm:$0xff]
    %v402 = vld [vmem:[#allocation2 + $0x178] sm:$0xff]
    %v403 = vld [vmem:[#allocation2 + $0x180] sm:$0xff]
    %v404 = vld [vmem:[#allocation2 + $0x188] sm:$0xff]
    %v405 = vld [vmem:[#allocation2 + $0x190] sm:$0xff]
    %v406 = vld [vmem:[#allocation2 + $0x198] sm:$0xff]
    %v407 = vld [vmem:[#allocation2 + $0x1a0] sm:$0xff]
    %v408 = vld [vmem:[#allocation2 + $0x1a8] sm:$0xff]
    %v409 = vld [vmem:[#allocation2 + $0x1b0] sm:$0xff]
    %v410 = vld [vmem:[#allocation2 + $0x1b8] sm:$0xff]
    %v411 = vld [vmem:[#allocation2 + $0x1c0] sm:$0xff]
    %v412 = vld [vmem:[#allocation2 + $0x1c8] sm:$0xff]
    %v413 = vld [vmem:[#allocation2 + $0x1d0] sm:$0xff]
    %v414 = vld [vmem:[#allocation2 + $0x1d8] sm:$0xff]
    %v415 = vld [vmem:[#allocation2 + $0x1e0] sm:$0xff]
    %v416 = vld [vmem:[#allocation2 + $0x1e8] sm:$0xff]
    %v417 = vld [vmem:[#allocation2 + $0x1f0] sm:$0xff]
    %v418 = vld [vmem:[#allocation2 + $0x1f8] sm:$0xff]
    %v419 = vld [vmem:[#allocation2 + $0x200] sm:$0xff]
    %v420 = vld [vmem:[#allocation2 + $0x208] sm:$0xff]
    %v421 = vld [vmem:[#allocation2 + $0x210] sm:$0xff]
    %v422 = vld [vmem:[#allocation2 + $0x218] sm:$0xff]
    %v423 = vld [vmem:[#allocation2 + $0x220] sm:$0xff]
    %v424 = vld [vmem:[#allocation2 + $0x228] sm:$0xff]
    %v425 = vld [vmem:[#allocation2 + $0x230] sm:$0xff]
    %v426 = vld [vmem:[#allocation2 + $0x238] sm:$0xff]
    %v427 = vld [vmem:[#allocation2 + $0x240] sm:$0xff]
    %v428 = vld [vmem:[#allocation2 + $0x248] sm:$0xff]
    %v429 = vld [vmem:[#allocation2 + $0x250] sm:$0xff]
    %v430 = vld [vmem:[#allocation2 + $0x258] sm:$0xff]
    %v431 = vld [vmem:[#allocation2 + $0x260] sm:$0xff]
    %v432 = vld [vmem:[#allocation2 + $0x268] sm:$0xff]
    %v433 = vld [vmem:[#allocation2 + $0x270] sm:$0xff]
    %v434 = vld [vmem:[#allocation2 + $0x278] sm:$0xff]
    %v435 = vld [vmem:[#allocation2 + $0x280] sm:$0xff]
    %v436 = vld [vmem:[#allocation2 + $0x288] sm:$0xff]
    %v437 = vld [vmem:[#allocation2 + $0x290] sm:$0xff]
    %v438 = vld [vmem:[#allocation2 + $0x298] sm:$0xff]
    %v439 = vld [vmem:[#allocation2 + $0x2a0] sm:$0xff]
    %v440 = vld [vmem:[#allocation2 + $0x2a8] sm:$0xff]
    %v441 = vld [vmem:[#allocation2 + $0x2b0] sm:$0xff]
    %v442 = vld [vmem:[#allocation2 + $0x2b8] sm:$0xff]
    %v443 = vld [vmem:[#allocation2 + $0x2c0] sm:$0xff]
    %v444 = vld [vmem:[#allocation2 + $0x2c8] sm:$0xff]
    %v445 = vld [vmem:[#allocation2 + $0x2d0] sm:$0xff]
    %v446 = vld [vmem:[#allocation2 + $0x2d8] sm:$0xff]
    %v447 = vld [vmem:[#allocation2 + $0x2e0] sm:$0xff]
    %v448 = vld [vmem:[#allocation2 + $0x2e8] sm:$0xff]
    %v449 = vld [vmem:[#allocation2 + $0x2f0] sm:$0xff]
    %v450 = vld [vmem:[#allocation2 + $0x2f8] sm:$0xff]
    %v451 = vld [vmem:[#allocation2 + $0x300] sm:$0xff]
    %v452 = vld [vmem:[#allocation2 + $0x308] sm:$0xff]
    %v453 = vld [vmem:[#allocation2 + $0x310] sm:$0xff]
    %v454 = vld [vmem:[#allocation2 + $0x318] sm:$0xff]
    %v455 = vld [vmem:[#allocation2 + $0x320] sm:$0xff]
    %v456 = vld [vmem:[#allocation2 + $0x328] sm:$0xff]
    %v457 = vld [vmem:[#allocation2 + $0x330] sm:$0xff]
    %v458 = vld [vmem:[#allocation2 + $0x338] sm:$0xff]
    %v459 = vld [vmem:[#allocation2 + $0x340] sm:$0xff]
    %v460 = vld [vmem:[#allocation2 + $0x348] sm:$0xff]
    %v461 = vld [vmem:[#allocation2 + $0x350] sm:$0xff]
    %v462 = vld [vmem:[#allocation2 + $0x358] sm:$0xff]
    %v463 = vld [vmem:[#allocation2 + $0x360] sm:$0xff]
    %v464 = vld [vmem:[#allocation2 + $0x368] sm:$0xff]
    %v465 = vld [vmem:[#allocation2 + $0x370] sm:$0xff]
    %v466 = vld [vmem:[#allocation2 + $0x378] sm:$0xff]
    %v467 = vld [vmem:[#allocation2 + $0x380] sm:$0xff]
    %v468 = vld [vmem:[#allocation2 + $0x388] sm:$0xff]
    %v469 = vld [vmem:[#allocation2 + $0x390] sm:$0xff]
    %v470 = vld [vmem:[#allocation2 + $0x398] sm:$0xff]
    %v471 = vld [vmem:[#allocation2 + $0x3a0] sm:$0xff]
    %v472 = vld [vmem:[#allocation2 + $0x3a8] sm:$0xff]
    %v473 = vld [vmem:[#allocation2 + $0x3b0] sm:$0xff]
    %v474 = vld [vmem:[#allocation2 + $0x3b8] sm:$0xff]
    %v475 = vld [vmem:[#allocation2 + $0x3c0] sm:$0xff]
    %v476 = vld [vmem:[#allocation2 + $0x3c8] sm:$0xff]
    %v477 = vld [vmem:[#allocation2 + $0x3d0] sm:$0xff]
    %v478 = vld [vmem:[#allocation2 + $0x3d8] sm:$0xff]
    %v479 = vld [vmem:[#allocation2 + $0x3e0] sm:$0xff]
    %v480 = vld [vmem:[#allocation2 + $0x3e8] sm:$0xff]
    %v481 = vld [vmem:[#allocation2 + $0x3f0] sm:$0xff]
    %v482 = vld [vmem:[#allocation2 + $0x3f8] sm:$0xff]
    %v611 = vunpack.c.l.b16 %v355
    %v612 = vunpack.c.h.b16 %v355
    %v613 = vunpack.c.l.b16 %v356
    %v614 = vunpack.c.h.b16 %v356
    %v615 = vunpack.c.l.b16 %v357
    %v616 = vunpack.c.h.b16 %v357
    %v617 = vunpack.c.l.b16 %v358
    %v618 = vunpack.c.h.b16 %v358
    %v619 = vunpack.c.l.b16 %v359
    %v620 = vunpack.c.h.b16 %v359
    %v621 = vunpack.c.l.b16 %v360
    %v622 = vunpack.c.h.b16 %v360
    %v623 = vunpack.c.l.b16 %v361
    %v624 = vunpack.c.h.b16 %v361
    %v625 = vunpack.c.l.b16 %v362
    %v626 = vunpack.c.h.b16 %v362
    %v627 = vunpack.c.l.b16 %v363
    %v628 = vunpack.c.h.b16 %v363
    %v629 = vunpack.c.l.b16 %v364
    %v630 = vunpack.c.h.b16 %v364
    %v631 = vunpack.c.l.b16 %v365
    %v632 = vunpack.c.h.b16 %v365
    %v633 = vunpack.c.l.b16 %v366
    %v634 = vunpack.c.h.b16 %v366
    %v635 = vunpack.c.l.b16 %v367
    %v636 = vunpack.c.h.b16 %v367
    %v637 = vunpack.c.l.b16 %v368
    %v638 = vunpack.c.h.b16 %v368
    %v639 = vunpack.c.l.b16 %v369
    %v640 = vunpack.c.h.b16 %v369
    %v641 = vunpack.c.l.b16 %v370
    %v642 = vunpack.c.h.b16 %v370
    %v643 = vunpack.c.l.b16 %v371
    %v644 = vunpack.c.h.b16 %v371
    %v645 = vunpack.c.l.b16 %v372
    %v646 = vunpack.c.h.b16 %v372
    %v647 = vunpack.c.l.b16 %v373
    %v648 = vunpack.c.h.b16 %v373
    %v649 = vunpack.c.l.b16 %v374
    %v650 = vunpack.c.h.b16 %v374
    %v651 = vunpack.c.l.b16 %v375
    %v652 = vunpack.c.h.b16 %v375
    %v653 = vunpack.c.l.b16 %v376
    %v654 = vunpack.c.h.b16 %v376
    %v655 = vunpack.c.l.b16 %v377
    %v656 = vunpack.c.h.b16 %v377
    %v657 = vunpack.c.l.b16 %v378
    %v658 = vunpack.c.h.b16 %v378
    %v659 = vunpack.c.l.b16 %v379
    %v660 = vunpack.c.h.b16 %v379
    %v661 = vunpack.c.l.b16 %v380
    %v662 = vunpack.c.h.b16 %v380
    %v663 = vunpack.c.l.b16 %v381
    %v664 = vunpack.c.h.b16 %v381
    %v665 = vunpack.c.l.b16 %v382
    %v666 = vunpack.c.h.b16 %v382
    %v667 = vunpack.c.l.b16 %v383
    %v668 = vunpack.c.h.b16 %v383
    %v669 = vunpack.c.l.b16 %v384
    %v670 = vunpack.c.h.b16 %v384
    %v671 = vunpack.c.l.b16 %v385
    %v672 = vunpack.c.h.b16 %v385
    %v673 = vunpack.c.l.b16 %v386
    %v674 = vunpack.c.h.b16 %v386
    %v675 = vunpack.c.l.b16 %v387
    %v676 = vunpack.c.h.b16 %v387
    %v677 = vunpack.c.l.b16 %v388
    %v678 = vunpack.c.h.b16 %v388
    %v679 = vunpack.c.l.b16 %v389
    %v680 = vunpack.c.h.b16 %v389
    %v681 = vunpack.c.l.b16 %v390
    %v682 = vunpack.c.h.b16 %v390
    %v683 = vunpack.c.l.b16 %v391
    %v684 = vunpack.c.h.b16 %v391
    %v685 = vunpack.c.l.b16 %v392
    %v686 = vunpack.c.h.b16 %v392
    %v687 = vunpack.c.l.b16 %v393
    %v688 = vunpack.c.h.b16 %v393
    %v689 = vunpack.c.l.b16 %v394
    %v690 = vunpack.c.h.b16 %v394
    %v691 = vunpack.c.l.b16 %v395
    %v692 = vunpack.c.h.b16 %v395
    %v693 = vunpack.c.l.b16 %v396
    %v694 = vunpack.c.h.b16 %v396
    %v695 = vunpack.c.l.b16 %v397
    %v696 = vunpack.c.h.b16 %v397
    %v697 = vunpack.c.l.b16 %v398
    %v698 = vunpack.c.h.b16 %v398
    %v699 = vunpack.c.l.b16 %v399
    %v700 = vunpack.c.h.b16 %v399
    %v701 = vunpack.c.l.b16 %v400
    %v702 = vunpack.c.h.b16 %v400
    %v703 = vunpack.c.l.b16 %v401
    %v704 = vunpack.c.h.b16 %v401
    %v705 = vunpack.c.l.b16 %v402
    %v706 = vunpack.c.h.b16 %v402
    %v707 = vunpack.c.l.b16 %v403
    %v708 = vunpack.c.h.b16 %v403
    %v709 = vunpack.c.l.b16 %v404
    %v710 = vunpack.c.h.b16 %v404
    %v711 = vunpack.c.l.b16 %v405
    %v712 = vunpack.c.h.b16 %v405
    %v713 = vunpack.c.l.b16 %v406
    %v714 = vunpack.c.h.b16 %v406
    %v715 = vunpack.c.l.b16 %v407
    %v716 = vunpack.c.h.b16 %v407
    %v717 = vunpack.c.l.b16 %v408
    %v718 = vunpack.c.h.b16 %v408
    %v719 = vunpack.c.l.b16 %v409
    %v720 = vunpack.c.h.b16 %v409
    %v721 = vunpack.c.l.b16 %v410
    %v722 = vunpack.c.h.b16 %v410
    %v723 = vunpack.c.l.b16 %v411
    %v724 = vunpack.c.h.b16 %v411
    %v725 = vunpack.c.l.b16 %v412
    %v726 = vunpack.c.h.b16 %v412
    %v727 = vunpack.c.l.b16 %v413
    %v728 = vunpack.c.h.b16 %v413
    %v729 = vunpack.c.l.b16 %v414
    %v730 = vunpack.c.h.b16 %v414
    %v731 = vunpack.c.l.b16 %v415
    %v732 = vunpack.c.h.b16 %v415
    %v733 = vunpack.c.l.b16 %v416
    %v734 = vunpack.c.h.b16 %v416
    %v735 = vunpack.c.l.b16 %v417
    %v736 = vunpack.c.h.b16 %v417
    %v737 = vunpack.c.l.b16 %v418
    %v738 = vunpack.c.h.b16 %v418
    %v739 = vunpack.c.l.b16 %v419
    %v740 = vunpack.c.h.b16 %v419
    %v741 = vunpack.c.l.b16 %v420
    %v742 = vunpack.c.h.b16 %v420
    %v743 = vunpack.c.l.b16 %v421
    %v744 = vunpack.c.h.b16 %v421
    %v745 = vunpack.c.l.b16 %v422
    %v746 = vunpack.c.h.b16 %v422
    %v747 = vunpack.c.l.b16 %v423
    %v748 = vunpack.c.h.b16 %v423
    %v749 = vunpack.c.l.b16 %v424
    %v750 = vunpack.c.h.b16 %v424
    %v751 = vunpack.c.l.b16 %v425
    %v752 = vunpack.c.h.b16 %v425
    %v753 = vunpack.c.l.b16 %v426
    %v754 = vunpack.c.h.b16 %v426
    %v755 = vunpack.c.l.b16 %v427
    %v756 = vunpack.c.h.b16 %v427
    %v757 = vunpack.c.l.b16 %v428
    %v758 = vunpack.c.h.b16 %v428
    %v759 = vunpack.c.l.b16 %v429
    %v760 = vunpack.c.h.b16 %v429
    %v761 = vunpack.c.l.b16 %v430
    %v762 = vunpack.c.h.b16 %v430
    %v763 = vunpack.c.l.b16 %v431
    %v764 = vunpack.c.h.b16 %v431
    %v765 = vunpack.c.l.b16 %v432
    %v766 = vunpack.c.h.b16 %v432
    %v767 = vunpack.c.l.b16 %v433
    %v768 = vunpack.c.h.b16 %v433
    %v769 = vunpack.c.l.b16 %v434
    %v770 = vunpack.c.h.b16 %v434
    %v771 = vunpack.c.l.b16 %v435
    %v772 = vunpack.c.h.b16 %v435
    %v773 = vunpack.c.l.b16 %v436
    %v774 = vunpack.c.h.b16 %v436
    %v775 = vunpack.c.l.b16 %v437
    %v776 = vunpack.c.h.b16 %v437
    %v777 = vunpack.c.l.b16 %v438
    %v778 = vunpack.c.h.b16 %v438
    %v779 = vunpack.c.l.b16 %v439
    %v780 = vunpack.c.h.b16 %v439
    %v781 = vunpack.c.l.b16 %v440
    %v782 = vunpack.c.h.b16 %v440
    %v783 = vunpack.c.l.b16 %v441
    %v784 = vunpack.c.h.b16 %v441
    %v785 = vunpack.c.l.b16 %v442
    %v786 = vunpack.c.h.b16 %v442
    %v787 = vunpack.c.l.b16 %v443
    %v788 = vunpack.c.h.b16 %v443
    %v789 = vunpack.c.l.b16 %v444
    %v790 = vunpack.c.h.b16 %v444
    %v791 = vunpack.c.l.b16 %v445
    %v792 = vunpack.c.h.b16 %v445
    %v793 = vunpack.c.l.b16 %v446
    %v794 = vunpack.c.h.b16 %v446
    %v795 = vunpack.c.l.b16 %v447
    %v796 = vunpack.c.h.b16 %v447
    %v797 = vunpack.c.l.b16 %v448
    %v798 = vunpack.c.h.b16 %v448
    %v799 = vunpack.c.l.b16 %v449
    %v800 = vunpack.c.h.b16 %v449
    %v801 = vunpack.c.l.b16 %v450
    %v802 = vunpack.c.h.b16 %v450
    %v803 = vunpack.c.l.b16 %v451
    %v804 = vunpack.c.h.b16 %v451
    %v805 = vunpack.c.l.b16 %v452
    %v806 = vunpack.c.h.b16 %v452
    %v807 = vunpack.c.l.b16 %v453
    %v808 = vunpack.c.h.b16 %v453
    %v809 = vunpack.c.l.b16 %v454
    %v810 = vunpack.c.h.b16 %v454
    %v811 = vunpack.c.l.b16 %v455
    %v812 = vunpack.c.h.b16 %v455
    %v813 = vunpack.c.l.b16 %v456
    %v814 = vunpack.c.h.b16 %v456
    %v815 = vunpack.c.l.b16 %v457
    %v816 = vunpack.c.h.b16 %v457
    %v817 = vunpack.c.l.b16 %v458
    %v818 = vunpack.c.h.b16 %v458
    %v819 = vunpack.c.l.b16 %v459
    %v820 = vunpack.c.h.b16 %v459
    %v821 = vunpack.c.l.b16 %v460
    %v822 = vunpack.c.h.b16 %v460
    %v823 = vunpack.c.l.b16 %v461
    %v824 = vunpack.c.h.b16 %v461
    %v825 = vunpack.c.l.b16 %v462
    %v826 = vunpack.c.h.b16 %v462
    %v827 = vunpack.c.l.b16 %v463
    %v828 = vunpack.c.h.b16 %v463
    %v829 = vunpack.c.l.b16 %v464
    %v830 = vunpack.c.h.b16 %v464
    %v831 = vunpack.c.l.b16 %v465
    %v832 = vunpack.c.h.b16 %v465
    %v833 = vunpack.c.l.b16 %v466
    %v834 = vunpack.c.h.b16 %v466
    %v835 = vunpack.c.l.b16 %v467
    %v836 = vunpack.c.h.b16 %v467
    %v837 = vunpack.c.l.b16 %v468
    %v838 = vunpack.c.h.b16 %v468
    %v839 = vunpack.c.l.b16 %v469
    %v840 = vunpack.c.h.b16 %v469
    %v841 = vunpack.c.l.b16 %v470
    %v842 = vunpack.c.h.b16 %v470
    %v843 = vunpack.c.l.b16 %v471
    %v844 = vunpack.c.h.b16 %v471
    %v845 = vunpack.c.l.b16 %v472
    %v846 = vunpack.c.h.b16 %v472
    %v847 = vunpack.c.l.b16 %v473
    %v848 = vunpack.c.h.b16 %v473
    %v849 = vunpack.c.l.b16 %v474
    %v850 = vunpack.c.h.b16 %v474
    %v851 = vunpack.c.l.b16 %v475
    %v852 = vunpack.c.h.b16 %v475
    %v853 = vunpack.c.l.b16 %v476
    %v854 = vunpack.c.h.b16 %v476
    %v855 = vunpack.c.l.b16 %v477
    %v856 = vunpack.c.h.b16 %v477
    %v857 = vunpack.c.l.b16 %v478
    %v858 = vunpack.c.h.b16 %v478
    %v859 = vunpack.c.l.b16 %v479
    %v860 = vunpack.c.h.b16 %v479
    %v861 = vunpack.c.l.b16 %v480
    %v862 = vunpack.c.h.b16 %v480
    %v863 = vunpack.c.l.b16 %v481
    %v864 = vunpack.c.h.b16 %v481
    %v865 = vunpack.c.l.b16 %v482
    %v866 = vunpack.c.h.b16 %v482
    %v867 = vpack.c.b16 %v615, %v611
    %v868 = vpack.c.b16 %v616, %v612
    %v869 = vpack.c.b16 %v617, %v613
    %v870 = vpack.c.b16 %v618, %v614
    %v871 = vpack.c.b16 %v623, %v619
    %v872 = vpack.c.b16 %v624, %v620
    %v873 = vpack.c.b16 %v625, %v621
    %v874 = vpack.c.b16 %v626, %v622
    %v875 = vpack.c.b16 %v631, %v627
    %v876 = vpack.c.b16 %v632, %v628
    %v877 = vpack.c.b16 %v633, %v629
    %v878 = vpack.c.b16 %v634, %v630
    %v879 = vpack.c.b16 %v639, %v635
    %v880 = vpack.c.b16 %v640, %v636
    %v881 = vpack.c.b16 %v641, %v637
    %v882 = vpack.c.b16 %v642, %v638
    %v883 = vpack.c.b16 %v647, %v643
    %v884 = vpack.c.b16 %v648, %v644
    %v885 = vpack.c.b16 %v649, %v645
    %v886 = vpack.c.b16 %v650, %v646
    %v887 = vpack.c.b16 %v655, %v651
    %v888 = vpack.c.b16 %v656, %v652
    %v889 = vpack.c.b16 %v657, %v653
    %v890 = vpack.c.b16 %v658, %v654
    %v891 = vpack.c.b16 %v663, %v659
    %v892 = vpack.c.b16 %v664, %v660
    %v893 = vpack.c.b16 %v665, %v661
    %v894 = vpack.c.b16 %v666, %v662
    %v895 = vpack.c.b16 %v671, %v667
    %v896 = vpack.c.b16 %v672, %v668
    %v897 = vpack.c.b16 %v673, %v669
    %v898 = vpack.c.b16 %v674, %v670
    %v899 = vpack.c.b16 %v679, %v675
    %v900 = vpack.c.b16 %v680, %v676
    %v901 = vpack.c.b16 %v681, %v677
    %v902 = vpack.c.b16 %v682, %v678
    %v903 = vpack.c.b16 %v687, %v683
    %v904 = vpack.c.b16 %v688, %v684
    %v905 = vpack.c.b16 %v689, %v685
    %v906 = vpack.c.b16 %v690, %v686
    %v907 = vpack.c.b16 %v695, %v691
    %v908 = vpack.c.b16 %v696, %v692
    %v909 = vpack.c.b16 %v697, %v693
    %v910 = vpack.c.b16 %v698, %v694
    %v911 = vpack.c.b16 %v703, %v699
    %v912 = vpack.c.b16 %v704, %v700
    %v913 = vpack.c.b16 %v705, %v701
    %v914 = vpack.c.b16 %v706, %v702
    %v915 = vpack.c.b16 %v711, %v707
    %v916 = vpack.c.b16 %v712, %v708
    %v917 = vpack.c.b16 %v713, %v709
    %v918 = vpack.c.b16 %v714, %v710
    %v919 = vpack.c.b16 %v719, %v715
    %v920 = vpack.c.b16 %v720, %v716
    %v921 = vpack.c.b16 %v721, %v717
    %v922 = vpack.c.b16 %v722, %v718
    %v923 = vpack.c.b16 %v727, %v723
    %v924 = vpack.c.b16 %v728, %v724
    %v925 = vpack.c.b16 %v729, %v725
    %v926 = vpack.c.b16 %v730, %v726
    %v927 = vpack.c.b16 %v735, %v731
    %v928 = vpack.c.b16 %v736, %v732
    %v929 = vpack.c.b16 %v737, %v733
    %v930 = vpack.c.b16 %v738, %v734
    %v931 = vpack.c.b16 %v743, %v739
    %v932 = vpack.c.b16 %v744, %v740
    %v933 = vpack.c.b16 %v745, %v741
    %v934 = vpack.c.b16 %v746, %v742
    %v935 = vpack.c.b16 %v751, %v747
    %v936 = vpack.c.b16 %v752, %v748
    %v937 = vpack.c.b16 %v753, %v749
    %v938 = vpack.c.b16 %v754, %v750
    %v939 = vpack.c.b16 %v759, %v755
    %v940 = vpack.c.b16 %v760, %v756
    %v941 = vpack.c.b16 %v761, %v757
    %v942 = vpack.c.b16 %v762, %v758
    %v943 = vpack.c.b16 %v767, %v763
    %v944 = vpack.c.b16 %v768, %v764
    %v945 = vpack.c.b16 %v769, %v765
    %v946 = vpack.c.b16 %v770, %v766
    %v947 = vpack.c.b16 %v775, %v771
    %v948 = vpack.c.b16 %v776, %v772
    %v949 = vpack.c.b16 %v777, %v773
    %v950 = vpack.c.b16 %v778, %v774
    %v951 = vpack.c.b16 %v783, %v779
    %v952 = vpack.c.b16 %v784, %v780
    %v953 = vpack.c.b16 %v785, %v781
    %v954 = vpack.c.b16 %v786, %v782
    %v955 = vpack.c.b16 %v791, %v787
    %v956 = vpack.c.b16 %v792, %v788
    %v957 = vpack.c.b16 %v793, %v789
    %v958 = vpack.c.b16 %v794, %v790
    %v959 = vpack.c.b16 %v799, %v795
    %v960 = vpack.c.b16 %v800, %v796
    %v961 = vpack.c.b16 %v801, %v797
    %v962 = vpack.c.b16 %v802, %v798
    %v963 = vpack.c.b16 %v807, %v803
    %v964 = vpack.c.b16 %v808, %v804
    %v965 = vpack.c.b16 %v809, %v805
    %v966 = vpack.c.b16 %v810, %v806
    %v967 = vpack.c.b16 %v815, %v811
    %v968 = vpack.c.b16 %v816, %v812
    %v969 = vpack.c.b16 %v817, %v813
    %v970 = vpack.c.b16 %v818, %v814
    %v971 = vpack.c.b16 %v823, %v819
    %v972 = vpack.c.b16 %v824, %v820
    %v973 = vpack.c.b16 %v825, %v821
    %v974 = vpack.c.b16 %v826, %v822
    %v975 = vpack.c.b16 %v831, %v827
    %v976 = vpack.c.b16 %v832, %v828
    %v977 = vpack.c.b16 %v833, %v829
    %v978 = vpack.c.b16 %v834, %v830
    %v979 = vpack.c.b16 %v839, %v835
    %v980 = vpack.c.b16 %v840, %v836
    %v981 = vpack.c.b16 %v841, %v837
    %v982 = vpack.c.b16 %v842, %v838
    %v983 = vpack.c.b16 %v847, %v843
    %v984 = vpack.c.b16 %v848, %v844
    %v985 = vpack.c.b16 %v849, %v845
    %v986 = vpack.c.b16 %v850, %v846
    %v987 = vpack.c.b16 %v855, %v851
    %v988 = vpack.c.b16 %v856, %v852
    %v989 = vpack.c.b16 %v857, %v853
    %v990 = vpack.c.b16 %v858, %v854
    %v991 = vpack.c.b16 %v863, %v859
    %v992 = vpack.c.b16 %v864, %v860
    %v993 = vpack.c.b16 %v865, %v861
    %v994 = vpack.c.b16 %v866, %v862
    %1123 = vmatprep.subr.bf16.mxu0 %v896
    %1124 = vmatpush1.bf16.msra.mxu0 %v895
    %1125 = vmatprep.subr.bf16.mxu0 %v892
    %1126 = vmatpush1.bf16.msra.mxu0 %v891
    %1127 = vmatprep.subr.bf16.mxu0 %v888
    %1128 = vmatpush1.bf16.msra.mxu0 %v887
    %1129 = vmatprep.subr.bf16.mxu0 %v884
    %1130 = vmatpush1.bf16.msra.mxu0 %v883
    %1131 = vmatprep.subr.bf16.mxu0 %v880
    %1132 = vmatpush1.bf16.msra.mxu0 %v879
    %1133 = vmatprep.subr.bf16.mxu0 %v876
    %1134 = vmatpush1.bf16.msra.mxu0 %v875
    %1135 = vmatprep.subr.bf16.mxu0 %v872
    %1136 = vmatpush1.bf16.msra.mxu0 %v871
    %1137 = vmatprep.subr.bf16.mxu0 %v868
    %1138 = vmatpush1.bf16.msra.mxu0 %v867
    %1139 = vmatprep.subr.bf16.mxu0 %v928
    %1140 = vmatpush2.bf16.msra.mxu0 %v927
    %1141 = vmatprep.subr.bf16.mxu0 %v924
    %1142 = vmatpush2.bf16.msra.mxu0 %v923
    %1143 = vmatprep.subr.bf16.mxu0 %v920
    %1144 = vmatpush2.bf16.msra.mxu0 %v919
    %1145 = vmatprep.subr.bf16.mxu0 %v916
    %1146 = vmatpush2.bf16.msra.mxu0 %v915
    %1147 = vmatprep.subr.bf16.mxu0 %v912
    %1148 = vmatpush2.bf16.msra.mxu0 %v911
    %1149 = vmatprep.subr.bf16.mxu0 %v908
    %1150 = vmatpush2.bf16.msra.mxu0 %v907
    %1151 = vmatprep.subr.bf16.mxu0 %v904
    %1152 = vmatpush2.bf16.msra.mxu0 %v903
    %1153 = vmatprep.subr.bf16.mxu0 %v900
    %1154 = vmatpush2.bf16.msra.mxu0 %v899
    %1155 = vmatprep.mubr.bf16.mxu0 %v352
    %1156 = vmatmul.mubr.bf16.gmra.mxu0 %v351
    %v1157 = vpop.f32.mrf.mxu0
    %v1158 = vadd.f32 0.0, %v1157
    %v1159 = vpop.f32.mrf.mxu0
    %v1160 = vadd.f32 0.0, %v1159
    %v1161 = vpop.f32.mrf.mxu0
    %v1162 = vpop.f32.mrf.mxu0
    %1163 = vdwg.mxu0
    %1164 = vmatprep.subr.bf16.mxu0 %v960
    %1165 = vmatpush1.bf16.msra.mxu0 %v959
    %1166 = vmatprep.subr.bf16.mxu0 %v956
    %1167 = vmatpush1.bf16.msra.mxu0 %v955
    %1168 = vmatprep.subr.bf16.mxu0 %v952
    %1169 = vmatpush1.bf16.msra.mxu0 %v951
    %1170 = vmatprep.subr.bf16.mxu0 %v948
    %1171 = vmatpush1.bf16.msra.mxu0 %v947
    %1172 = vmatprep.subr.bf16.mxu0 %v944
    %1173 = vmatpush1.bf16.msra.mxu0 %v943
    %1174 = vmatprep.subr.bf16.mxu0 %v940
    %1175 = vmatpush1.bf16.msra.mxu0 %v939
    %1176 = vmatprep.subr.bf16.mxu0 %v936
    %1177 = vmatpush1.bf16.msra.mxu0 %v935
    %1178 = vmatprep.subr.bf16.mxu0 %v932
    %1179 = vmatpush1.bf16.msra.mxu0 %v931
    %1180 = vmatprep.subr.bf16.mxu0 %v992
    %1181 = vmatpush2.bf16.msra.mxu0 %v991
    %1182 = vmatprep.subr.bf16.mxu0 %v988
    %1183 = vmatpush2.bf16.msra.mxu0 %v987
    %1184 = vmatprep.subr.bf16.mxu0 %v984
    %1185 = vmatpush2.bf16.msra.mxu0 %v983
    %1186 = vmatprep.subr.bf16.mxu0 %v980
    %1187 = vmatpush2.bf16.msra.mxu0 %v979
    %1188 = vmatprep.subr.bf16.mxu0 %v976
    %1189 = vmatpush2.bf16.msra.mxu0 %v975
    %1190 = vmatprep.subr.bf16.mxu0 %v972
    %1191 = vmatpush2.bf16.msra.mxu0 %v971
    %1192 = vmatprep.subr.bf16.mxu0 %v968
    %1193 = vmatpush2.bf16.msra.mxu0 %v967
    %1194 = vmatprep.subr.bf16.mxu0 %v964
    %1195 = vmatpush2.bf16.msra.mxu0 %v963
    %1196 = vmatprep.mubr.bf16.mxu0 %v354
    %1197 = vmatmul.mubr.bf16.gmra.mxu0 %v353
    %v1198 = vpop.f32.mrf.mxu0
    %v1199 = vadd.f32 %v1158, %v1198
    %v1200 = vpop.f32.mrf.mxu0
    %v1201 = vadd.f32 %v1160, %v1200
    %v1202 = vpop.f32.mrf.mxu0
    %v1203 = vpop.f32.mrf.mxu0
    %1204 = vdwg.mxu0
    %1205 = vmatprep.subr.bf16.mxu0 %v898
    %1206 = vmatpush1.bf16.msra.mxu0 %v897
    %1207 = vmatprep.subr.bf16.mxu0 %v894
    %1208 = vmatpush1.bf16.msra.mxu0 %v893
    %1209 = vmatprep.subr.bf16.mxu0 %v890
    %1210 = vmatpush1.bf16.msra.mxu0 %v889
    %1211 = vmatprep.subr.bf16.mxu0 %v886
    %1212 = vmatpush1.bf16.msra.mxu0 %v885
    %1213 = vmatprep.subr.bf16.mxu0 %v882
    %1214 = vmatpush1.bf16.msra.mxu0 %v881
    %1215 = vmatprep.subr.bf16.mxu0 %v878
    %1216 = vmatpush1.bf16.msra.mxu0 %v877
    %1217 = vmatprep.subr.bf16.mxu0 %v874
    %1218 = vmatpush1.bf16.msra.mxu0 %v873
    %1219 = vmatprep.subr.bf16.mxu0 %v870
    %1220 = vmatpush1.bf16.msra.mxu0 %v869
    %1221 = vmatprep.subr.bf16.mxu0 %v930
    %1222 = vmatpush2.bf16.msra.mxu0 %v929
    %1223 = vmatprep.subr.bf16.mxu0 %v926
    %1224 = vmatpush2.bf16.msra.mxu0 %v925
    %1225 = vmatprep.subr.bf16.mxu0 %v922
    %1226 = vmatpush2.bf16.msra.mxu0 %v921
    %1227 = vmatprep.subr.bf16.mxu0 %v918
    %1228 = vmatpush2.bf16.msra.mxu0 %v917
    %1229 = vmatprep.subr.bf16.mxu0 %v914
    %1230 = vmatpush2.bf16.msra.mxu0 %v913
    %1231 = vmatprep.subr.bf16.mxu0 %v910
    %1232 = vmatpush2.bf16.msra.mxu0 %v909
    %1233 = vmatprep.subr.bf16.mxu0 %v906
    %1234 = vmatpush2.bf16.msra.mxu0 %v905
    %1235 = vmatprep.subr.bf16.mxu0 %v902
    %1236 = vmatpush2.bf16.msra.mxu0 %v901
    %1237 = vmatprep.mubr.bf16.mxu0 %v352
    %1238 = vmatmul.mubr.bf16.gmra.mxu0 %v351
    %v1239 = vpop.f32.mrf.mxu0
    %v1240 = vadd.f32 0.0, %v1239
    %v1241 = vpop.f32.mrf.mxu0
    %v1242 = vadd.f32 0.0, %v1241
    %v1243 = vpop.f32.mrf.mxu0
    %v1244 = vpop.f32.mrf.mxu0
    %1245 = vdwg.mxu0
    %1246 = vmatprep.subr.bf16.mxu0 %v962
    %1247 = vmatpush1.bf16.msra.mxu0 %v961
    %1248 = vmatprep.subr.bf16.mxu0 %v958
    %1249 = vmatpush1.bf16.msra.mxu0 %v957
    %1250 = vmatprep.subr.bf16.mxu0 %v954
    %1251 = vmatpush1.bf16.msra.mxu0 %v953
    %1252 = vmatprep.subr.bf16.mxu0 %v950
    %1253 = vmatpush1.bf16.msra.mxu0 %v949
    %1254 = vmatprep.subr.bf16.mxu0 %v946
    %1255 = vmatpush1.bf16.msra.mxu0 %v945
    %1256 = vmatprep.subr.bf16.mxu0 %v942
    %1257 = vmatpush1.bf16.msra.mxu0 %v941
    %1258 = vmatprep.subr.bf16.mxu0 %v938
    %1259 = vmatpush1.bf16.msra.mxu0 %v937
    %1260 = vmatprep.subr.bf16.mxu0 %v934
    %1261 = vmatpush1.bf16.msra.mxu0 %v933
    %1262 = vmatprep.subr.bf16.mxu0 %v994
    %1263 = vmatpush2.bf16.msra.mxu0 %v993
    %1264 = vmatprep.subr.bf16.mxu0 %v990
    %1265 = vmatpush2.bf16.msra.mxu0 %v989
    %1266 = vmatprep.subr.bf16.mxu0 %v986
    %1267 = vmatpush2.bf16.msra.mxu0 %v985
    %1268 = vmatprep.subr.bf16.mxu0 %v982
    %1269 = vmatpush2.bf16.msra.mxu0 %v981
    %1270 = vmatprep.subr.bf16.mxu0 %v978
    %1271 = vmatpush2.bf16.msra.mxu0 %v977
    %1272 = vmatprep.subr.bf16.mxu0 %v974
    %1273 = vmatpush2.bf16.msra.mxu0 %v973
    %1274 = vmatprep.subr.bf16.mxu0 %v970
    %1275 = vmatpush2.bf16.msra.mxu0 %v969
    %1276 = vmatprep.subr.bf16.mxu0 %v966
    %1277 = vmatpush2.bf16.msra.mxu0 %v965
    %1278 = vmatprep.mubr.bf16.mxu0 %v354
    %1279 = vmatmul.mubr.bf16.gmra.mxu0 %v353
    %v1280 = vpop.f32.mrf.mxu0
    %v1281 = vadd.f32 %v1240, %v1280
    %v1282 = vpop.f32.mrf.mxu0
    %v1283 = vadd.f32 %v1242, %v1282
    %v1284 = vpop.f32.mrf.mxu0
    %v1285 = vpop.f32.mrf.mxu0
    %1286 = vdwg.mxu0
    %s1287 = scalar_lea.vmem [#allocation10], 1
    %v1288 = vld [vmem:[%s1287] ss:$8 sm:$0xf]
    %s1289 = scalar_lea.vmem [#allocation10], 5
    %v1290 = vld [vmem:[%s1289] ss:$8 sm:$0xf]
    %v1291 = vrot.slane %v1199, 4
    %v1292 = vadd.f32 %v1199, %v1291
    %v1293 = vrot.slane %v1292, 2
    %v1294 = vadd.f32 %v1292, %v1293
    %v1295 = vrot.slane %v1294, 1
    %v1296 = vadd.f32 %v1294, %v1295
    %v1297 = vrot.slane %v1201, 4
    %v1298 = vadd.f32 %v1201, %v1297
    %v1299 = vrot.slane %v1298, 2
    %v1300 = vadd.f32 %v1298, %v1299
    %v1301 = vrot.slane %v1300, 1
    %v1302 = vadd.f32 %v1300, %v1301
    %v1303 = vrot.slane %v1281, 4
    %v1304 = vadd.f32 %v1281, %v1303
    %v1305 = vrot.slane %v1304, 2
    %v1306 = vadd.f32 %v1304, %v1305
    %v1307 = vrot.slane %v1306, 1
    %v1308 = vadd.f32 %v1306, %v1307
    %v1309 = vrot.slane %v1283, 4
    %v1310 = vadd.f32 %v1283, %v1309
    %v1311 = vrot.slane %v1310, 2
    %v1312 = vadd.f32 %v1310, %v1311
    %v1313 = vrot.slane %v1312, 1
    %v1314 = vadd.f32 %v1312, %v1313
    %v1315 = vmul.f32 %v1296, 0.125
    %v1316 = vmul.f32 %v1302, 0.125
    %v1317 = vmul.f32 %v1308, 0.125
    %v1318 = vmul.f32 %v1314, 0.125
    %v1319 = vsub.f32 %v1199, %v1315
    %v1320 = vsub.f32 %v1201, %v1316
    %v1321 = vsub.f32 %v1281, %v1317
    %v1322 = vsub.f32 %v1283, %v1318
    %v1323 = vmul.f32 %v1319, %v1319
    %v1324 = vmul.f32 %v1320, %v1320
    %v1325 = vmul.f32 %v1321, %v1321
    %v1326 = vmul.f32 %v1322, %v1322
    %v1327 = vrot.slane %v1323, 4
    %v1328 = vadd.f32 %v1323, %v1327
    %v1329 = vrot.slane %v1328, 2
    %v1330 = vadd.f32 %v1328, %v1329
    %v1331 = vrot.slane %v1330, 1
    %v1332 = vadd.f32 %v1330, %v1331
    %v1333 = vrot.slane %v1324, 4
    %v1334 = vadd.f32 %v1324, %v1333
    %v1335 = vrot.slane %v1334, 2
    %v1336 = vadd.f32 %v1334, %v1335
    %v1337 = vrot.slane %v1336, 1
    %v1338 = vadd.f32 %v1336, %v1337
    %v1339 = vrot.slane %v1325, 4
    %v1340 = vadd.f32 %v1325, %v1339
    %v1341 = vrot.slane %v1340, 2
    %v1342 = vadd.f32 %v1340, %v1341
    %v1343 = vrot.slane %v1342, 1
    %v1344 = vadd.f32 %v1342, %v1343
    %v1345 = vrot.slane %v1326, 4
    %v1346 = vadd.f32 %v1326, %v1345
    %v1347 = vrot.slane %v1346, 2
    %v1348 = vadd.f32 %v1346, %v1347
    %v1349 = vrot.slane %v1348, 1
    %v1350 = vadd.f32 %v1348, %v1349
    %v1351 = vmul.f32 %v1332, 0.125
    %v1352 = vmul.f32 %v1338, 0.125
    %v1353 = vmul.f32 %v1344, 0.125
    %v1354 = vmul.f32 %v1350, 0.125
    %v1355 = vadd.f32 %v1351, 1e-05
    %v1356 = vadd.f32 %v1352, 1e-05
    %v1357 = vadd.f32 %v1353, 1e-05
    %v1358 = vadd.f32 %v1354, 1e-05
    %v1359 = vrsqrt.pop %v1355
    %v1360 = vrsqrt.pop %v1356
    %v1361 = vrsqrt.pop %v1357
    %v1362 = vrsqrt.pop %v1358
    %v1367 = vcombine.low %v1359, %v1360
    %v1368 = vcombine.low %v1361, %v1362
    %v1370 = vunpack.c.l.s4 1966171168
    %v1371 = vunpack.c.0.s8 %v1370
    %v1372 = vlaneseq
    %v1373 = vshrl.u32 %v1372, 7
    %v1374 = vsub.s32 %v1371, %v1373
    %v1375 = vrot.slane %v1367, %v1374
    %v1377 = vunpack.c.l.s4 1966171168
    %v1378 = vunpack.c.0.s8 %v1377
    %v1379 = vlaneseq
    %v1380 = vshrl.u32 %v1379, 7
    %v1381 = vsub.s32 %v1378, %v1380
    %v1382 = vrot.slane %v1368, %v1381
    %v1383 = vcombine.low %v1375, %v1382
    %v1385 = vunpack.c.l.s4 1966171168
    %v1386 = vunpack.c.0.s8 %v1385
    %v1387 = vlaneseq
    %v1388 = vshrl.u32 %v1387, 7
    %v1389 = vsub.s32 %v1386, %v1388
    %v1390 = vrot.slane %v1383, %v1389
    %v1392 = vmul.f32 %v1288, %v1390
    %v1394 = vlaneseq
    %v1395 = vshrl.u32 %v1394, 7
    %v1396 = vsub.s32 0, %v1395
    %v1397 = vrot.slane %v1392, %v1396
    %v1398 = vlaneseq
    %v1399 = vshrl.u32 %v1398, 7
    %v1400 = vsub.s32 1, %v1399
    %v1401 = vrot.slane %v1392, %v1400
    %v1402 = vlaneseq
    %v1403 = vshrl.u32 %v1402, 7
    %v1404 = vsub.s32 2, %v1403
    %v1405 = vrot.slane %v1392, %v1404
    %v1406 = vlaneseq
    %v1407 = vshrl.u32 %v1406, 7
    %v1408 = vsub.s32 3, %v1407
    %v1409 = vrot.slane %v1392, %v1408
    %v1414 = vmul.f32 %v1319, %v1397
    %v1415 = vmul.f32 %v1320, %v1401
    %v1416 = vmul.f32 %v1321, %v1405
    %v1417 = vmul.f32 %v1322, %v1409
    %v1419 = vlaneseq
    %v1420 = vshrl.u32 %v1419, 7
    %v1421 = vsub.s32 0, %v1420
    %v1422 = vrot.slane %v1290, %v1421
    %v1423 = vlaneseq
    %v1424 = vshrl.u32 %v1423, 7
    %v1425 = vsub.s32 1, %v1424
    %v1426 = vrot.slane %v1290, %v1425
    %v1427 = vlaneseq
    %v1428 = vshrl.u32 %v1427, 7
    %v1429 = vsub.s32 2, %v1428
    %v1430 = vrot.slane %v1290, %v1429
    %v1431 = vlaneseq
    %v1432 = vshrl.u32 %v1431, 7
    %v1433 = vsub.s32 3, %v1432
    %v1434 = vrot.slane %v1290, %v1433
    %v1439 = vadd.f32 %v1414, %v1422
    %v1440 = vadd.f32 %v1415, %v1426
    %v1441 = vadd.f32 %v1416, %v1430
    %v1442 = vadd.f32 %v1417, %v1434
    %v1443 = vmax.f32 %v1439, 0.0
    %v1444 = vmax.f32 %v1440, 0.0
    %v1445 = vmax.f32 %v1441, 0.0
    %v1446 = vmax.f32 %v1442, 0.0
    %v1447 = vpack.c.bf16 %v1443, %v1443
    %v1448 = vpack.c.bf16 %v1444, %v1444
    %v1449 = vpack.c.bf16 %v1445, %v1445
    %v1450 = vpack.c.bf16 %v1446, %v1446
    %v1451 = vld [vmem:[#allocation5] sm:$0xff]
    %v1452 = vld [vmem:[#allocation5 + $0x8] sm:$0xff]
    %v1453 = vld [vmem:[#allocation5 + $0x10] sm:$0xff]
    %v1454 = vld [vmem:[#allocation5 + $0x18] sm:$0xff]
    %v1455 = vld [vmem:[#allocation5 + $0x20] sm:$0xff]
    %v1456 = vld [vmem:[#allocation5 + $0x28] sm:$0xff]
    %v1457 = vld [vmem:[#allocation5 + $0x30] sm:$0xff]
    %v1458 = vld [vmem:[#allocation5 + $0x38] sm:$0xff]
    %v1459 = vld [vmem:[#allocation5 + $0x40] sm:$0xff]
    %v1460 = vld [vmem:[#allocation5 + $0x48] sm:$0xff]
    %v1461 = vld [vmem:[#allocation5 + $0x50] sm:$0xff]
    %v1462 = vld [vmem:[#allocation5 + $0x58] sm:$0xff]
    %v1463 = vld [vmem:[#allocation5 + $0x60] sm:$0xff]
    %v1464 = vld [vmem:[#allocation5 + $0x68] sm:$0xff]
    %v1465 = vld [vmem:[#allocation5 + $0x70] sm:$0xff]
    %v1466 = vld [vmem:[#allocation5 + $0x78] sm:$0xff]
    %v1467 = vld [vmem:[#allocation5 + $0x80] sm:$0xff]
    %v1468 = vld [vmem:[#allocation5 + $0x88] sm:$0xff]
    %v1469 = vld [vmem:[#allocation5 + $0x90] sm:$0xff]
    %v1470 = vld [vmem:[#allocation5 + $0x98] sm:$0xff]
    %v1471 = vld [vmem:[#allocation5 + $0xa0] sm:$0xff]
    %v1472 = vld [vmem:[#allocation5 + $0xa8] sm:$0xff]
    %v1473 = vld [vmem:[#allocation5 + $0xb0] sm:$0xff]
    %v1474 = vld [vmem:[#allocation5 + $0xb8] sm:$0xff]
    %v1475 = vld [vmem:[#allocation5 + $0xc0] sm:$0xff]
    %v1476 = vld [vmem:[#allocation5 + $0xc8] sm:$0xff]
    %v1477 = vld [vmem:[#allocation5 + $0xd0] sm:$0xff]
    %v1478 = vld [vmem:[#allocation5 + $0xd8] sm:$0xff]
    %v1479 = vld [vmem:[#allocation5 + $0xe0] sm:$0xff]
    %v1480 = vld [vmem:[#allocation5 + $0xe8] sm:$0xff]
    %v1481 = vld [vmem:[#allocation5 + $0xf0] sm:$0xff]
    %v1482 = vld [vmem:[#allocation5 + $0xf8] sm:$0xff]
    %v1483 = vld [vmem:[#allocation5 + $0x100] sm:$0xff]
    %v1484 = vld [vmem:[#allocation5 + $0x108] sm:$0xff]
    %v1485 = vld [vmem:[#allocation5 + $0x110] sm:$0xff]
    %v1486 = vld [vmem:[#allocation5 + $0x118] sm:$0xff]
    %v1487 = vld [vmem:[#allocation5 + $0x120] sm:$0xff]
    %v1488 = vld [vmem:[#allocation5 + $0x128] sm:$0xff]
    %v1489 = vld [vmem:[#allocation5 + $0x130] sm:$0xff]
    %v1490 = vld [vmem:[#allocation5 + $0x138] sm:$0xff]
    %v1491 = vld [vmem:[#allocation5 + $0x140] sm:$0xff]
    %v1492 = vld [vmem:[#allocation5 + $0x148] sm:$0xff]
    %v1493 = vld [vmem:[#allocation5 + $0x150] sm:$0xff]
    %v1494 = vld [vmem:[#allocation5 + $0x158] sm:$0xff]
    %v1495 = vld [vmem:[#allocation5 + $0x160] sm:$0xff]
    %v1496 = vld [vmem:[#allocation5 + $0x168] sm:$0xff]
    %v1497 = vld [vmem:[#allocation5 + $0x170] sm:$0xff]
    %v1498 = vld [vmem:[#allocation5 + $0x178] sm:$0xff]
    %v1499 = vld [vmem:[#allocation5 + $0x180] sm:$0xff]
    %v1500 = vld [vmem:[#allocation5 + $0x188] sm:$0xff]
    %v1501 = vld [vmem:[#allocation5 + $0x190] sm:$0xff]
    %v1502 = vld [vmem:[#allocation5 + $0x198] sm:$0xff]
    %v1503 = vld [vmem:[#allocation5 + $0x1a0] sm:$0xff]
    %v1504 = vld [vmem:[#allocation5 + $0x1a8] sm:$0xff]
    %v1505 = vld [vmem:[#allocation5 + $0x1b0] sm:$0xff]
    %v1506 = vld [vmem:[#allocation5 + $0x1b8] sm:$0xff]
    %v1507 = vld [vmem:[#allocation5 + $0x1c0] sm:$0xff]
    %v1508 = vld [vmem:[#allocation5 + $0x1c8] sm:$0xff]
    %v1509 = vld [vmem:[#allocation5 + $0x1d0] sm:$0xff]
    %v1510 = vld [vmem:[#allocation5 + $0x1d8] sm:$0xff]
    %v1511 = vld [vmem:[#allocation5 + $0x1e0] sm:$0xff]
    %v1512 = vld [vmem:[#allocation5 + $0x1e8] sm:$0xff]
    %v1513 = vld [vmem:[#allocation5 + $0x1f0] sm:$0xff]
    %v1514 = vld [vmem:[#allocation5 + $0x1f8] sm:$0xff]
    %v1515 = vld [vmem:[#allocation5 + $0x200] sm:$0xff]
    %v1516 = vld [vmem:[#allocation5 + $0x208] sm:$0xff]
    %v1517 = vld [vmem:[#allocation5 + $0x210] sm:$0xff]
    %v1518 = vld [vmem:[#allocation5 + $0x218] sm:$0xff]
    %v1519 = vld [vmem:[#allocation5 + $0x220] sm:$0xff]
    %v1520 = vld [vmem:[#allocation5 + $0x228] sm:$0xff]
    %v1521 = vld [vmem:[#allocation5 + $0x230] sm:$0xff]
    %v1522 = vld [vmem:[#allocation5 + $0x238] sm:$0xff]
    %v1523 = vld [vmem:[#allocation5 + $0x240] sm:$0xff]
    %v1524 = vld [vmem:[#allocation5 + $0x248] sm:$0xff]
    %v1525 = vld [vmem:[#allocation5 + $0x250] sm:$0xff]
    %v1526 = vld [vmem:[#allocation5 + $0x258] sm:$0xff]
    %v1527 = vld [vmem:[#allocation5 + $0x260] sm:$0xff]
    %v1528 = vld [vmem:[#allocation5 + $0x268] sm:$0xff]
    %v1529 = vld [vmem:[#allocation5 + $0x270] sm:$0xff]
    %v1530 = vld [vmem:[#allocation5 + $0x278] sm:$0xff]
    %v1531 = vld [vmem:[#allocation5 + $0x280] sm:$0xff]
    %v1532 = vld [vmem:[#allocation5 + $0x288] sm:$0xff]
    %v1533 = vld [vmem:[#allocation5 + $0x290] sm:$0xff]
    %v1534 = vld [vmem:[#allocation5 + $0x298] sm:$0xff]
    %v1535 = vld [vmem:[#allocation5 + $0x2a0] sm:$0xff]
    %v1536 = vld [vmem:[#allocation5 + $0x2a8] sm:$0xff]
    %v1537 = vld [vmem:[#allocation5 + $0x2b0] sm:$0xff]
    %v1538 = vld [vmem:[#allocation5 + $0x2b8] sm:$0xff]
    %v1539 = vld [vmem:[#allocation5 + $0x2c0] sm:$0xff]
    %v1540 = vld [vmem:[#allocation5 + $0x2c8] sm:$0xff]
    %v1541 = vld [vmem:[#allocation5 + $0x2d0] sm:$0xff]
    %v1542 = vld [vmem:[#allocation5 + $0x2d8] sm:$0xff]
    %v1543 = vld [vmem:[#allocation5 + $0x2e0] sm:$0xff]
    %v1544 = vld [vmem:[#allocation5 + $0x2e8] sm:$0xff]
    %v1545 = vld [vmem:[#allocation5 + $0x2f0] sm:$0xff]
    %v1546 = vld [vmem:[#allocation5 + $0x2f8] sm:$0xff]
    %v1547 = vld [vmem:[#allocation5 + $0x300] sm:$0xff]
    %v1548 = vld [vmem:[#allocation5 + $0x308] sm:$0xff]
    %v1549 = vld [vmem:[#allocation5 + $0x310] sm:$0xff]
    %v1550 = vld [vmem:[#allocation5 + $0x318] sm:$0xff]
    %v1551 = vld [vmem:[#allocation5 + $0x320] sm:$0xff]
    %v1552 = vld [vmem:[#allocation5 + $0x328] sm:$0xff]
    %v1553 = vld [vmem:[#allocation5 + $0x330] sm:$0xff]
    %v1554 = vld [vmem:[#allocation5 + $0x338] sm:$0xff]
    %v1555 = vld [vmem:[#allocation5 + $0x340] sm:$0xff]
    %v1556 = vld [vmem:[#allocation5 + $0x348] sm:$0xff]
    %v1557 = vld [vmem:[#allocation5 + $0x350] sm:$0xff]
    %v1558 = vld [vmem:[#allocation5 + $0x358] sm:$0xff]
    %v1559 = vld [vmem:[#allocation5 + $0x360] sm:$0xff]
    %v1560 = vld [vmem:[#allocation5 + $0x368] sm:$0xff]
    %v1561 = vld [vmem:[#allocation5 + $0x370] sm:$0xff]
    %v1562 = vld [vmem:[#allocation5 + $0x378] sm:$0xff]
    %v1563 = vld [vmem:[#allocation5 + $0x380] sm:$0xff]
    %v1564 = vld [vmem:[#allocation5 + $0x388] sm:$0xff]
    %v1565 = vld [vmem:[#allocation5 + $0x390] sm:$0xff]
    %v1566 = vld [vmem:[#allocation5 + $0x398] sm:$0xff]
    %v1567 = vld [vmem:[#allocation5 + $0x3a0] sm:$0xff]
    %v1568 = vld [vmem:[#allocation5 + $0x3a8] sm:$0xff]
    %v1569 = vld [vmem:[#allocation5 + $0x3b0] sm:$0xff]
    %v1570 = vld [vmem:[#allocation5 + $0x3b8] sm:$0xff]
    %v1571 = vld [vmem:[#allocation5 + $0x3c0] sm:$0xff]
    %v1572 = vld [vmem:[#allocation5 + $0x3c8] sm:$0xff]
    %v1573 = vld [vmem:[#allocation5 + $0x3d0] sm:$0xff]
    %v1574 = vld [vmem:[#allocation5 + $0x3d8] sm:$0xff]
    %v1575 = vld [vmem:[#allocation5 + $0x3e0] sm:$0xff]
    %v1576 = vld [vmem:[#allocation5 + $0x3e8] sm:$0xff]
    %v1577 = vld [vmem:[#allocation5 + $0x3f0] sm:$0xff]
    %v1578 = vld [vmem:[#allocation5 + $0x3f8] sm:$0xff]
    %v1707 = vunpack.c.l.b16 %v1451
    %v1708 = vunpack.c.h.b16 %v1451
    %v1709 = vunpack.c.l.b16 %v1452
    %v1710 = vunpack.c.h.b16 %v1452
    %v1711 = vunpack.c.l.b16 %v1453
    %v1712 = vunpack.c.h.b16 %v1453
    %v1713 = vunpack.c.l.b16 %v1454
    %v1714 = vunpack.c.h.b16 %v1454
    %v1715 = vunpack.c.l.b16 %v1455
    %v1716 = vunpack.c.h.b16 %v1455
    %v1717 = vunpack.c.l.b16 %v1456
    %v1718 = vunpack.c.h.b16 %v1456
    %v1719 = vunpack.c.l.b16 %v1457
    %v1720 = vunpack.c.h.b16 %v1457
    %v1721 = vunpack.c.l.b16 %v1458
    %v1722 = vunpack.c.h.b16 %v1458
    %v1723 = vunpack.c.l.b16 %v1459
    %v1724 = vunpack.c.h.b16 %v1459
    %v1725 = vunpack.c.l.b16 %v1460
    %v1726 = vunpack.c.h.b16 %v1460
    %v1727 = vunpack.c.l.b16 %v1461
    %v1728 = vunpack.c.h.b16 %v1461
    %v1729 = vunpack.c.l.b16 %v1462
    %v1730 = vunpack.c.h.b16 %v1462
    %v1731 = vunpack.c.l.b16 %v1463
    %v1732 = vunpack.c.h.b16 %v1463
    %v1733 = vunpack.c.l.b16 %v1464
    %v1734 = vunpack.c.h.b16 %v1464
    %v1735 = vunpack.c.l.b16 %v1465
    %v1736 = vunpack.c.h.b16 %v1465
    %v1737 = vunpack.c.l.b16 %v1466
    %v1738 = vunpack.c.h.b16 %v1466
    %v1739 = vunpack.c.l.b16 %v1467
    %v1740 = vunpack.c.h.b16 %v1467
    %v1741 = vunpack.c.l.b16 %v1468
    %v1742 = vunpack.c.h.b16 %v1468
    %v1743 = vunpack.c.l.b16 %v1469
    %v1744 = vunpack.c.h.b16 %v1469
    %v1745 = vunpack.c.l.b16 %v1470
    %v1746 = vunpack.c.h.b16 %v1470
    %v1747 = vunpack.c.l.b16 %v1471
    %v1748 = vunpack.c.h.b16 %v1471
    %v1749 = vunpack.c.l.b16 %v1472
    %v1750 = vunpack.c.h.b16 %v1472
    %v1751 = vunpack.c.l.b16 %v1473
    %v1752 = vunpack.c.h.b16 %v1473
    %v1753 = vunpack.c.l.b16 %v1474
    %v1754 = vunpack.c.h.b16 %v1474
    %v1755 = vunpack.c.l.b16 %v1475
    %v1756 = vunpack.c.h.b16 %v1475
    %v1757 = vunpack.c.l.b16 %v1476
    %v1758 = vunpack.c.h.b16 %v1476
    %v1759 = vunpack.c.l.b16 %v1477
    %v1760 = vunpack.c.h.b16 %v1477
    %v1761 = vunpack.c.l.b16 %v1478
    %v1762 = vunpack.c.h.b16 %v1478
    %v1763 = vunpack.c.l.b16 %v1479
    %v1764 = vunpack.c.h.b16 %v1479
    %v1765 = vunpack.c.l.b16 %v1480
    %v1766 = vunpack.c.h.b16 %v1480
    %v1767 = vunpack.c.l.b16 %v1481
    %v1768 = vunpack.c.h.b16 %v1481
    %v1769 = vunpack.c.l.b16 %v1482
    %v1770 = vunpack.c.h.b16 %v1482
    %v1771 = vunpack.c.l.b16 %v1483
    %v1772 = vunpack.c.h.b16 %v1483
    %v1773 = vunpack.c.l.b16 %v1484
    %v1774 = vunpack.c.h.b16 %v1484
    %v1775 = vunpack.c.l.b16 %v1485
    %v1776 = vunpack.c.h.b16 %v1485
    %v1777 = vunpack.c.l.b16 %v1486
    %v1778 = vunpack.c.h.b16 %v1486
    %v1779 = vunpack.c.l.b16 %v1487
    %v1780 = vunpack.c.h.b16 %v1487
    %v1781 = vunpack.c.l.b16 %v1488
    %v1782 = vunpack.c.h.b16 %v1488
    %v1783 = vunpack.c.l.b16 %v1489
    %v1784 = vunpack.c.h.b16 %v1489
    %v1785 = vunpack.c.l.b16 %v1490
    %v1786 = vunpack.c.h.b16 %v1490
    %v1787 = vunpack.c.l.b16 %v1491
    %v1788 = vunpack.c.h.b16 %v1491
    %v1789 = vunpack.c.l.b16 %v1492
    %v1790 = vunpack.c.h.b16 %v1492
    %v1791 = vunpack.c.l.b16 %v1493
    %v1792 = vunpack.c.h.b16 %v1493
    %v1793 = vunpack.c.l.b16 %v1494
    %v1794 = vunpack.c.h.b16 %v1494
    %v1795 = vunpack.c.l.b16 %v1495
    %v1796 = vunpack.c.h.b16 %v1495
    %v1797 = vunpack.c.l.b16 %v1496
    %v1798 = vunpack.c.h.b16 %v1496
    %v1799 = vunpack.c.l.b16 %v1497
    %v1800 = vunpack.c.h.b16 %v1497
    %v1801 = vunpack.c.l.b16 %v1498
    %v1802 = vunpack.c.h.b16 %v1498
    %v1803 = vunpack.c.l.b16 %v1499
    %v1804 = vunpack.c.h.b16 %v1499
    %v1805 = vunpack.c.l.b16 %v1500
    %v1806 = vunpack.c.h.b16 %v1500
    %v1807 = vunpack.c.l.b16 %v1501
    %v1808 = vunpack.c.h.b16 %v1501
    %v1809 = vunpack.c.l.b16 %v1502
    %v1810 = vunpack.c.h.b16 %v1502
    %v1811 = vunpack.c.l.b16 %v1503
    %v1812 = vunpack.c.h.b16 %v1503
    %v1813 = vunpack.c.l.b16 %v1504
    %v1814 = vunpack.c.h.b16 %v1504
    %v1815 = vunpack.c.l.b16 %v1505
    %v1816 = vunpack.c.h.b16 %v1505
    %v1817 = vunpack.c.l.b16 %v1506
    %v1818 = vunpack.c.h.b16 %v1506
    %v1819 = vunpack.c.l.b16 %v1507
    %v1820 = vunpack.c.h.b16 %v1507
    %v1821 = vunpack.c.l.b16 %v1508
    %v1822 = vunpack.c.h.b16 %v1508
    %v1823 = vunpack.c.l.b16 %v1509
    %v1824 = vunpack.c.h.b16 %v1509
    %v1825 = vunpack.c.l.b16 %v1510
    %v1826 = vunpack.c.h.b16 %v1510
    %v1827 = vunpack.c.l.b16 %v1511
    %v1828 = vunpack.c.h.b16 %v1511
    %v1829 = vunpack.c.l.b16 %v1512
    %v1830 = vunpack.c.h.b16 %v1512
    %v1831 = vunpack.c.l.b16 %v1513
    %v1832 = vunpack.c.h.b16 %v1513
    %v1833 = vunpack.c.l.b16 %v1514
    %v1834 = vunpack.c.h.b16 %v1514
    %v1835 = vunpack.c.l.b16 %v1515
    %v1836 = vunpack.c.h.b16 %v1515
    %v1837 = vunpack.c.l.b16 %v1516
    %v1838 = vunpack.c.h.b16 %v1516
    %v1839 = vunpack.c.l.b16 %v1517
    %v1840 = vunpack.c.h.b16 %v1517
    %v1841 = vunpack.c.l.b16 %v1518
    %v1842 = vunpack.c.h.b16 %v1518
    %v1843 = vunpack.c.l.b16 %v1519
    %v1844 = vunpack.c.h.b16 %v1519
    %v1845 = vunpack.c.l.b16 %v1520
    %v1846 = vunpack.c.h.b16 %v1520
    %v1847 = vunpack.c.l.b16 %v1521
    %v1848 = vunpack.c.h.b16 %v1521
    %v1849 = vunpack.c.l.b16 %v1522
    %v1850 = vunpack.c.h.b16 %v1522
    %v1851 = vunpack.c.l.b16 %v1523
    %v1852 = vunpack.c.h.b16 %v1523
    %v1853 = vunpack.c.l.b16 %v1524
    %v1854 = vunpack.c.h.b16 %v1524
    %v1855 = vunpack.c.l.b16 %v1525
    %v1856 = vunpack.c.h.b16 %v1525
    %v1857 = vunpack.c.l.b16 %v1526
    %v1858 = vunpack.c.h.b16 %v1526
    %v1859 = vunpack.c.l.b16 %v1527
    %v1860 = vunpack.c.h.b16 %v1527
    %v1861 = vunpack.c.l.b16 %v1528
    %v1862 = vunpack.c.h.b16 %v1528
    %v1863 = vunpack.c.l.b16 %v1529
    %v1864 = vunpack.c.h.b16 %v1529
    %v1865 = vunpack.c.l.b16 %v1530
    %v1866 = vunpack.c.h.b16 %v1530
    %v1867 = vunpack.c.l.b16 %v1531
    %v1868 = vunpack.c.h.b16 %v1531
    %v1869 = vunpack.c.l.b16 %v1532
    %v1870 = vunpack.c.h.b16 %v1532
    %v1871 = vunpack.c.l.b16 %v1533
    %v1872 = vunpack.c.h.b16 %v1533
    %v1873 = vunpack.c.l.b16 %v1534
    %v1874 = vunpack.c.h.b16 %v1534
    %v1875 = vunpack.c.l.b16 %v1535
    %v1876 = vunpack.c.h.b16 %v1535
    %v1877 = vunpack.c.l.b16 %v1536
    %v1878 = vunpack.c.h.b16 %v1536
    %v1879 = vunpack.c.l.b16 %v1537
    %v1880 = vunpack.c.h.b16 %v1537
    %v1881 = vunpack.c.l.b16 %v1538
    %v1882 = vunpack.c.h.b16 %v1538
    %v1883 = vunpack.c.l.b16 %v1539
    %v1884 = vunpack.c.h.b16 %v1539
    %v1885 = vunpack.c.l.b16 %v1540
    %v1886 = vunpack.c.h.b16 %v1540
    %v1887 = vunpack.c.l.b16 %v1541
    %v1888 = vunpack.c.h.b16 %v1541
    %v1889 = vunpack.c.l.b16 %v1542
    %v1890 = vunpack.c.h.b16 %v1542
    %v1891 = vunpack.c.l.b16 %v1543
    %v1892 = vunpack.c.h.b16 %v1543
    %v1893 = vunpack.c.l.b16 %v1544
    %v1894 = vunpack.c.h.b16 %v1544
    %v1895 = vunpack.c.l.b16 %v1545
    %v1896 = vunpack.c.h.b16 %v1545
    %v1897 = vunpack.c.l.b16 %v1546
    %v1898 = vunpack.c.h.b16 %v1546
    %v1899 = vunpack.c.l.b16 %v1547
    %v1900 = vunpack.c.h.b16 %v1547
    %v1901 = vunpack.c.l.b16 %v1548
    %v1902 = vunpack.c.h.b16 %v1548
    %v1903 = vunpack.c.l.b16 %v1549
    %v1904 = vunpack.c.h.b16 %v1549
    %v1905 = vunpack.c.l.b16 %v1550
    %v1906 = vunpack.c.h.b16 %v1550
    %v1907 = vunpack.c.l.b16 %v1551
    %v1908 = vunpack.c.h.b16 %v1551
    %v1909 = vunpack.c.l.b16 %v1552
    %v1910 = vunpack.c.h.b16 %v1552
    %v1911 = vunpack.c.l.b16 %v1553
    %v1912 = vunpack.c.h.b16 %v1553
    %v1913 = vunpack.c.l.b16 %v1554
    %v1914 = vunpack.c.h.b16 %v1554
    %v1915 = vunpack.c.l.b16 %v1555
    %v1916 = vunpack.c.h.b16 %v1555
    %v1917 = vunpack.c.l.b16 %v1556
    %v1918 = vunpack.c.h.b16 %v1556
    %v1919 = vunpack.c.l.b16 %v1557
    %v1920 = vunpack.c.h.b16 %v1557
    %v1921 = vunpack.c.l.b16 %v1558
    %v1922 = vunpack.c.h.b16 %v1558
    %v1923 = vunpack.c.l.b16 %v1559
    %v1924 = vunpack.c.h.b16 %v1559
    %v1925 = vunpack.c.l.b16 %v1560
    %v1926 = vunpack.c.h.b16 %v1560
    %v1927 = vunpack.c.l.b16 %v1561
    %v1928 = vunpack.c.h.b16 %v1561
    %v1929 = vunpack.c.l.b16 %v1562
    %v1930 = vunpack.c.h.b16 %v1562
    %v1931 = vunpack.c.l.b16 %v1563
    %v1932 = vunpack.c.h.b16 %v1563
    %v1933 = vunpack.c.l.b16 %v1564
    %v1934 = vunpack.c.h.b16 %v1564
    %v1935 = vunpack.c.l.b16 %v1565
    %v1936 = vunpack.c.h.b16 %v1565
    %v1937 = vunpack.c.l.b16 %v1566
    %v1938 = vunpack.c.h.b16 %v1566
    %v1939 = vunpack.c.l.b16 %v1567
    %v1940 = vunpack.c.h.b16 %v1567
    %v1941 = vunpack.c.l.b16 %v1568
    %v1942 = vunpack.c.h.b16 %v1568
    %v1943 = vunpack.c.l.b16 %v1569
    %v1944 = vunpack.c.h.b16 %v1569
    %v1945 = vunpack.c.l.b16 %v1570
    %v1946 = vunpack.c.h.b16 %v1570
    %v1947 = vunpack.c.l.b16 %v1571
    %v1948 = vunpack.c.h.b16 %v1571
    %v1949 = vunpack.c.l.b16 %v1572
    %v1950 = vunpack.c.h.b16 %v1572
    %v1951 = vunpack.c.l.b16 %v1573
    %v1952 = vunpack.c.h.b16 %v1573
    %v1953 = vunpack.c.l.b16 %v1574
    %v1954 = vunpack.c.h.b16 %v1574
    %v1955 = vunpack.c.l.b16 %v1575
    %v1956 = vunpack.c.h.b16 %v1575
    %v1957 = vunpack.c.l.b16 %v1576
    %v1958 = vunpack.c.h.b16 %v1576
    %v1959 = vunpack.c.l.b16 %v1577
    %v1960 = vunpack.c.h.b16 %v1577
    %v1961 = vunpack.c.l.b16 %v1578
    %v1962 = vunpack.c.h.b16 %v1578
    %v1963 = vpack.c.b16 %v1711, %v1707
    %v1964 = vpack.c.b16 %v1712, %v1708
    %v1965 = vpack.c.b16 %v1713, %v1709
    %v1966 = vpack.c.b16 %v1714, %v1710
    %v1967 = vpack.c.b16 %v1719, %v1715
    %v1968 = vpack.c.b16 %v1720, %v1716
    %v1969 = vpack.c.b16 %v1721, %v1717
    %v1970 = vpack.c.b16 %v1722, %v1718
    %v1971 = vpack.c.b16 %v1727, %v1723
    %v1972 = vpack.c.b16 %v1728, %v1724
    %v1973 = vpack.c.b16 %v1729, %v1725
    %v1974 = vpack.c.b16 %v1730, %v1726
    %v1975 = vpack.c.b16 %v1735, %v1731
    %v1976 = vpack.c.b16 %v1736, %v1732
    %v1977 = vpack.c.b16 %v1737, %v1733
    %v1978 = vpack.c.b16 %v1738, %v1734
    %v1979 = vpack.c.b16 %v1743, %v1739
    %v1980 = vpack.c.b16 %v1744, %v1740
    %v1981 = vpack.c.b16 %v1745, %v1741
    %v1982 = vpack.c.b16 %v1746, %v1742
    %v1983 = vpack.c.b16 %v1751, %v1747
    %v1984 = vpack.c.b16 %v1752, %v1748
    %v1985 = vpack.c.b16 %v1753, %v1749
    %v1986 = vpack.c.b16 %v1754, %v1750
    %v1987 = vpack.c.b16 %v1759, %v1755
    %v1988 = vpack.c.b16 %v1760, %v1756
    %v1989 = vpack.c.b16 %v1761, %v1757
    %v1990 = vpack.c.b16 %v1762, %v1758
    %v1991 = vpack.c.b16 %v1767, %v1763
    %v1992 = vpack.c.b16 %v1768, %v1764
    %v1993 = vpack.c.b16 %v1769, %v1765
    %v1994 = vpack.c.b16 %v1770, %v1766
    %v1995 = vpack.c.b16 %v1775, %v1771
    %v1996 = vpack.c.b16 %v1776, %v1772
    %v1997 = vpack.c.b16 %v1777, %v1773
    %v1998 = vpack.c.b16 %v1778, %v1774
    %v1999 = vpack.c.b16 %v1783, %v1779
    %v2000 = vpack.c.b16 %v1784, %v1780
    %v2001 = vpack.c.b16 %v1785, %v1781
    %v2002 = vpack.c.b16 %v1786, %v1782
    %v2003 = vpack.c.b16 %v1791, %v1787
    %v2004 = vpack.c.b16 %v1792, %v1788
    %v2005 = vpack.c.b16 %v1793, %v1789
    %v2006 = vpack.c.b16 %v1794, %v1790
    %v2007 = vpack.c.b16 %v1799, %v1795
    %v2008 = vpack.c.b16 %v1800, %v1796
    %v2009 = vpack.c.b16 %v1801, %v1797
    %v2010 = vpack.c.b16 %v1802, %v1798
    %v2011 = vpack.c.b16 %v1807, %v1803
    %v2012 = vpack.c.b16 %v1808, %v1804
    %v2013 = vpack.c.b16 %v1809, %v1805
    %v2014 = vpack.c.b16 %v1810, %v1806
    %v2015 = vpack.c.b16 %v1815, %v1811
    %v2016 = vpack.c.b16 %v1816, %v1812
    %v2017 = vpack.c.b16 %v1817, %v1813
    %v2018 = vpack.c.b16 %v1818, %v1814
    %v2019 = vpack.c.b16 %v1823, %v1819
    %v2020 = vpack.c.b16 %v1824, %v1820
    %v2021 = vpack.c.b16 %v1825, %v1821
    %v2022 = vpack.c.b16 %v1826, %v1822
    %v2023 = vpack.c.b16 %v1831, %v1827
    %v2024 = vpack.c.b16 %v1832, %v1828
    %v2025 = vpack.c.b16 %v1833, %v1829
    %v2026 = vpack.c.b16 %v1834, %v1830
    %v2027 = vpack.c.b16 %v1839, %v1835
    %v2028 = vpack.c.b16 %v1840, %v1836
    %v2029 = vpack.c.b16 %v1841, %v1837
    %v2030 = vpack.c.b16 %v1842, %v1838
    %v2031 = vpack.c.b16 %v1847, %v1843
    %v2032 = vpack.c.b16 %v1848, %v1844
    %v2033 = vpack.c.b16 %v1849, %v1845
    %v2034 = vpack.c.b16 %v1850, %v1846
    %v2035 = vpack.c.b16 %v1855, %v1851
    %v2036 = vpack.c.b16 %v1856, %v1852
    %v2037 = vpack.c.b16 %v1857, %v1853
    %v2038 = vpack.c.b16 %v1858, %v1854
    %v2039 = vpack.c.b16 %v1863, %v1859
    %v2040 = vpack.c.b16 %v1864, %v1860
    %v2041 = vpack.c.b16 %v1865, %v1861
    %v2042 = vpack.c.b16 %v1866, %v1862
    %v2043 = vpack.c.b16 %v1871, %v1867
    %v2044 = vpack.c.b16 %v1872, %v1868
    %v2045 = vpack.c.b16 %v1873, %v1869
    %v2046 = vpack.c.b16 %v1874, %v1870
    %v2047 = vpack.c.b16 %v1879, %v1875
    %v2048 = vpack.c.b16 %v1880, %v1876
    %v2049 = vpack.c.b16 %v1881, %v1877
    %v2050 = vpack.c.b16 %v1882, %v1878
    %v2051 = vpack.c.b16 %v1887, %v1883
    %v2052 = vpack.c.b16 %v1888, %v1884
    %v2053 = vpack.c.b16 %v1889, %v1885
    %v2054 = vpack.c.b16 %v1890, %v1886
    %v2055 = vpack.c.b16 %v1895, %v1891
    %v2056 = vpack.c.b16 %v1896, %v1892
    %v2057 = vpack.c.b16 %v1897, %v1893
    %v2058 = vpack.c.b16 %v1898, %v1894
    %v2059 = vpack.c.b16 %v1903, %v1899
    %v2060 = vpack.c.b16 %v1904, %v1900
    %v2061 = vpack.c.b16 %v1905, %v1901
    %v2062 = vpack.c.b16 %v1906, %v1902
    %v2063 = vpack.c.b16 %v1911, %v1907
    %v2064 = vpack.c.b16 %v1912, %v1908
    %v2065 = vpack.c.b16 %v1913, %v1909
    %v2066 = vpack.c.b16 %v1914, %v1910
    %v2067 = vpack.c.b16 %v1919, %v1915
    %v2068 = vpack.c.b16 %v1920, %v1916
    %v2069 = vpack.c.b16 %v1921, %v1917
    %v2070 = vpack.c.b16 %v1922, %v1918
    %v2071 = vpack.c.b16 %v1927, %v1923
    %v2072 = vpack.c.b16 %v1928, %v1924
    %v2073 = vpack.c.b16 %v1929, %v1925
    %v2074 = vpack.c.b16 %v1930, %v1926
    %v2075 = vpack.c.b16 %v1935, %v1931
    %v2076 = vpack.c.b16 %v1936, %v1932
    %v2077 = vpack.c.b16 %v1937, %v1933
    %v2078 = vpack.c.b16 %v1938, %v1934
    %v2079 = vpack.c.b16 %v1943, %v1939
    %v2080 = vpack.c.b16 %v1944, %v1940
    %v2081 = vpack.c.b16 %v1945, %v1941
    %v2082 = vpack.c.b16 %v1946, %v1942
    %v2083 = vpack.c.b16 %v1951, %v1947
    %v2084 = vpack.c.b16 %v1952, %v1948
    %v2085 = vpack.c.b16 %v1953, %v1949
    %v2086 = vpack.c.b16 %v1954, %v1950
    %v2087 = vpack.c.b16 %v1959, %v1955
    %v2088 = vpack.c.b16 %v1960, %v1956
    %v2089 = vpack.c.b16 %v1961, %v1957
    %v2090 = vpack.c.b16 %v1962, %v1958
    %2219 = vmatprep.subr.bf16.mxu0 %v1992
    %2220 = vmatpush1.bf16.msra.mxu0 %v1991
    %2221 = vmatprep.subr.bf16.mxu0 %v1988
    %2222 = vmatpush1.bf16.msra.mxu0 %v1987
    %2223 = vmatprep.subr.bf16.mxu0 %v1984
    %2224 = vmatpush1.bf16.msra.mxu0 %v1983
    %2225 = vmatprep.subr.bf16.mxu0 %v1980
    %2226 = vmatpush1.bf16.msra.mxu0 %v1979
    %2227 = vmatprep.subr.bf16.mxu0 %v1976
    %2228 = vmatpush1.bf16.msra.mxu0 %v1975
    %2229 = vmatprep.subr.bf16.mxu0 %v1972
    %2230 = vmatpush1.bf16.msra.mxu0 %v1971
    %2231 = vmatprep.subr.bf16.mxu0 %v1968
    %2232 = vmatpush1.bf16.msra.mxu0 %v1967
    %2233 = vmatprep.subr.bf16.mxu0 %v1964
    %2234 = vmatpush1.bf16.msra.mxu0 %v1963
    %2235 = vmatprep.subr.bf16.mxu0 %v2024
    %2236 = vmatpush2.bf16.msra.mxu0 %v2023
    %2237 = vmatprep.subr.bf16.mxu0 %v2020
    %2238 = vmatpush2.bf16.msra.mxu0 %v2019
    %2239 = vmatprep.subr.bf16.mxu0 %v2016
    %2240 = vmatpush2.bf16.msra.mxu0 %v2015
    %2241 = vmatprep.subr.bf16.mxu0 %v2012
    %2242 = vmatpush2.bf16.msra.mxu0 %v2011
    %2243 = vmatprep.subr.bf16.mxu0 %v2008
    %2244 = vmatpush2.bf16.msra.mxu0 %v2007
    %2245 = vmatprep.subr.bf16.mxu0 %v2004
    %2246 = vmatpush2.bf16.msra.mxu0 %v2003
    %2247 = vmatprep.subr.bf16.mxu0 %v2000
    %2248 = vmatpush2.bf16.msra.mxu0 %v1999
    %2249 = vmatprep.subr.bf16.mxu0 %v1996
    %2250 = vmatpush2.bf16.msra.mxu0 %v1995
    %2251 = vmatprep.mubr.bf16.mxu0 %v1448
    %2252 = vmatmul.mubr.bf16.gmra.mxu0 %v1447
    %v2253 = vpop.f32.mrf.mxu0
    %v2254 = vadd.f32 0.0, %v2253
    %v2255 = vpop.f32.mrf.mxu0
    %v2256 = vadd.f32 0.0, %v2255
    %v2257 = vpop.f32.mrf.mxu0
    %v2258 = vpop.f32.mrf.mxu0
    %2259 = vdwg.mxu0
    %2260 = vmatprep.subr.bf16.mxu0 %v2056
    %2261 = vmatpush1.bf16.msra.mxu0 %v2055
    %2262 = vmatprep.subr.bf16.mxu0 %v2052
    %2263 = vmatpush1.bf16.msra.mxu0 %v2051
    %2264 = vmatprep.subr.bf16.mxu0 %v2048
    %2265 = vmatpush1.bf16.msra.mxu0 %v2047
    %2266 = vmatprep.subr.bf16.mxu0 %v2044
    %2267 = vmatpush1.bf16.msra.mxu0 %v2043
    %2268 = vmatprep.subr.bf16.mxu0 %v2040
    %2269 = vmatpush1.bf16.msra.mxu0 %v2039
    %2270 = vmatprep.subr.bf16.mxu0 %v2036
    %2271 = vmatpush1.bf16.msra.mxu0 %v2035
    %2272 = vmatprep.subr.bf16.mxu0 %v2032
    %2273 = vmatpush1.bf16.msra.mxu0 %v2031
    %2274 = vmatprep.subr.bf16.mxu0 %v2028
    %2275 = vmatpush1.bf16.msra.mxu0 %v2027
    %2276 = vmatprep.subr.bf16.mxu0 %v2088
    %2277 = vmatpush2.bf16.msra.mxu0 %v2087
    %2278 = vmatprep.subr.bf16.mxu0 %v2084
    %2279 = vmatpush2.bf16.msra.mxu0 %v2083
    %2280 = vmatprep.subr.bf16.mxu0 %v2080
    %2281 = vmatpush2.bf16.msra.mxu0 %v2079
    %2282 = vmatprep.subr.bf16.mxu0 %v2076
    %2283 = vmatpush2.bf16.msra.mxu0 %v2075
    %2284 = vmatprep.subr.bf16.mxu0 %v2072
    %2285 = vmatpush2.bf16.msra.mxu0 %v2071
    %2286 = vmatprep.subr.bf16.mxu0 %v2068
    %2287 = vmatpush2.bf16.msra.mxu0 %v2067
    %2288 = vmatprep.subr.bf16.mxu0 %v2064
    %2289 = vmatpush2.bf16.msra.mxu0 %v2063
    %2290 = vmatprep.subr.bf16.mxu0 %v2060
    %2291 = vmatpush2.bf16.msra.mxu0 %v2059
    %2292 = vmatprep.mubr.bf16.mxu0 %v1450
    %2293 = vmatmul.mubr.bf16.gmra.mxu0 %v1449
    %v2294 = vpop.f32.mrf.mxu0
    %v2295 = vadd.f32 %v2254, %v2294
    %v2296 = vpop.f32.mrf.mxu0
    %v2297 = vadd.f32 %v2256, %v2296
    %v2298 = vpop.f32.mrf.mxu0
    %v2299 = vpop.f32.mrf.mxu0
    %2300 = vdwg.mxu0
    %2301 = vmatprep.subr.bf16.mxu0 %v1994
    %2302 = vmatpush1.bf16.msra.mxu0 %v1993
    %2303 = vmatprep.subr.bf16.mxu0 %v1990
    %2304 = vmatpush1.bf16.msra.mxu0 %v1989
    %2305 = vmatprep.subr.bf16.mxu0 %v1986
    %2306 = vmatpush1.bf16.msra.mxu0 %v1985
    %2307 = vmatprep.subr.bf16.mxu0 %v1982
    %2308 = vmatpush1.bf16.msra.mxu0 %v1981
    %2309 = vmatprep.subr.bf16.mxu0 %v1978
    %2310 = vmatpush1.bf16.msra.mxu0 %v1977
    %2311 = vmatprep.subr.bf16.mxu0 %v1974
    %2312 = vmatpush1.bf16.msra.mxu0 %v1973
    %2313 = vmatprep.subr.bf16.mxu0 %v1970
    %2314 = vmatpush1.bf16.msra.mxu0 %v1969
    %2315 = vmatprep.subr.bf16.mxu0 %v1966
    %2316 = vmatpush1.bf16.msra.mxu0 %v1965
    %2317 = vmatprep.subr.bf16.mxu0 %v2026
    %2318 = vmatpush2.bf16.msra.mxu0 %v2025
    %2319 = vmatprep.subr.bf16.mxu0 %v2022
    %2320 = vmatpush2.bf16.msra.mxu0 %v2021
    %2321 = vmatprep.subr.bf16.mxu0 %v2018
    %2322 = vmatpush2.bf16.msra.mxu0 %v2017
    %2323 = vmatprep.subr.bf16.mxu0 %v2014
    %2324 = vmatpush2.bf16.msra.mxu0 %v2013
    %2325 = vmatprep.subr.bf16.mxu0 %v2010
    %2326 = vmatpush2.bf16.msra.mxu0 %v2009
    %2327 = vmatprep.subr.bf16.mxu0 %v2006
    %2328 = vmatpush2.bf16.msra.mxu0 %v2005
    %2329 = vmatprep.subr.bf16.mxu0 %v2002
    %2330 = vmatpush2.bf16.msra.mxu0 %v2001
    %2331 = vmatprep.subr.bf16.mxu0 %v1998
    %2332 = vmatpush2.bf16.msra.mxu0 %v1997
    %2333 = vmatprep.mubr.bf16.mxu0 %v1448
    %2334 = vmatmul.mubr.bf16.gmra.mxu0 %v1447
    %v2335 = vpop.f32.mrf.mxu0
    %v2336 = vadd.f32 0.0, %v2335
    %v2337 = vpop.f32.mrf.mxu0
    %v2338 = vadd.f32 0.0, %v2337
    %v2339 = vpop.f32.mrf.mxu0
    %v2340 = vpop.f32.mrf.mxu0
    %2341 = vdwg.mxu0
    %2342 = vmatprep.subr.bf16.mxu0 %v2058
    %2343 = vmatpush1.bf16.msra.mxu0 %v2057
    %2344 = vmatprep.subr.bf16.mxu0 %v2054
    %2345 = vmatpush1.bf16.msra.mxu0 %v2053
    %2346 = vmatprep.subr.bf16.mxu0 %v2050
    %2347 = vmatpush1.bf16.msra.mxu0 %v2049
    %2348 = vmatprep.subr.bf16.mxu0 %v2046
    %2349 = vmatpush1.bf16.msra.mxu0 %v2045
    %2350 = vmatprep.subr.bf16.mxu0 %v2042
    %2351 = vmatpush1.bf16.msra.mxu0 %v2041
    %2352 = vmatprep.subr.bf16.mxu0 %v2038
    %2353 = vmatpush1.bf16.msra.mxu0 %v2037
    %2354 = vmatprep.subr.bf16.mxu0 %v2034
    %2355 = vmatpush1.bf16.msra.mxu0 %v2033
    %2356 = vmatprep.subr.bf16.mxu0 %v2030
    %2357 = vmatpush1.bf16.msra.mxu0 %v2029
    %2358 = vmatprep.subr.bf16.mxu0 %v2090
    %2359 = vmatpush2.bf16.msra.mxu0 %v2089
    %2360 = vmatprep.subr.bf16.mxu0 %v2086
    %2361 = vmatpush2.bf16.msra.mxu0 %v2085
    %2362 = vmatprep.subr.bf16.mxu0 %v2082
    %2363 = vmatpush2.bf16.msra.mxu0 %v2081
    %2364 = vmatprep.subr.bf16.mxu0 %v2078
    %2365 = vmatpush2.bf16.msra.mxu0 %v2077
    %2366 = vmatprep.subr.bf16.mxu0 %v2074
    %2367 = vmatpush2.bf16.msra.mxu0 %v2073
    %2368 = vmatprep.subr.bf16.mxu0 %v2070
    %2369 = vmatpush2.bf16.msra.mxu0 %v2069
    %2370 = vmatprep.subr.bf16.mxu0 %v2066
    %2371 = vmatpush2.bf16.msra.mxu0 %v2065
    %2372 = vmatprep.subr.bf16.mxu0 %v2062
    %2373 = vmatpush2.bf16.msra.mxu0 %v2061
    %2374 = vmatprep.mubr.bf16.mxu0 %v1450
    %2375 = vmatmul.mubr.bf16.gmra.mxu0 %v1449
    %v2376 = vpop.f32.mrf.mxu0
    %v2377 = vadd.f32 %v2336, %v2376
    %v2378 = vpop.f32.mrf.mxu0
    %v2379 = vadd.f32 %v2338, %v2378
    %v2380 = vpop.f32.mrf.mxu0
    %v2381 = vpop.f32.mrf.mxu0
    %2382 = vdwg.mxu0
    %s2383 = scalar_lea.vmem [#allocation10], 2
    %v2384 = vld [vmem:[%s2383] ss:$8 sm:$0xf]
    %s2385 = scalar_lea.vmem [#allocation10], 6
    %v2386 = vld [vmem:[%s2385] ss:$8 sm:$0xf]
    %v2387 = vrot.slane %v2295, 4
    %v2388 = vadd.f32 %v2295, %v2387
    %v2389 = vrot.slane %v2388, 2
    %v2390 = vadd.f32 %v2388, %v2389
    %v2391 = vrot.slane %v2390, 1
    %v2392 = vadd.f32 %v2390, %v2391
    %v2393 = vrot.slane %v2297, 4
    %v2394 = vadd.f32 %v2297, %v2393
    %v2395 = vrot.slane %v2394, 2
    %v2396 = vadd.f32 %v2394, %v2395
    %v2397 = vrot.slane %v2396, 1
    %v2398 = vadd.f32 %v2396, %v2397
    %v2399 = vrot.slane %v2377, 4
    %v2400 = vadd.f32 %v2377, %v2399
    %v2401 = vrot.slane %v2400, 2
    %v2402 = vadd.f32 %v2400, %v2401
    %v2403 = vrot.slane %v2402, 1
    %v2404 = vadd.f32 %v2402, %v2403
    %v2405 = vrot.slane %v2379, 4
    %v2406 = vadd.f32 %v2379, %v2405
    %v2407 = vrot.slane %v2406, 2
    %v2408 = vadd.f32 %v2406, %v2407
    %v2409 = vrot.slane %v2408, 1
    %v2410 = vadd.f32 %v2408, %v2409
    %v2411 = vmul.f32 %v2392, 0.125
    %v2412 = vmul.f32 %v2398, 0.125
    %v2413 = vmul.f32 %v2404, 0.125
    %v2414 = vmul.f32 %v2410, 0.125
    %v2415 = vsub.f32 %v2295, %v2411
    %v2416 = vsub.f32 %v2297, %v2412
    %v2417 = vsub.f32 %v2377, %v2413
    %v2418 = vsub.f32 %v2379, %v2414
    %v2419 = vmul.f32 %v2415, %v2415
    %v2420 = vmul.f32 %v2416, %v2416
    %v2421 = vmul.f32 %v2417, %v2417
    %v2422 = vmul.f32 %v2418, %v2418
    %v2423 = vrot.slane %v2419, 4
    %v2424 = vadd.f32 %v2419, %v2423
    %v2425 = vrot.slane %v2424, 2
    %v2426 = vadd.f32 %v2424, %v2425
    %v2427 = vrot.slane %v2426, 1
    %v2428 = vadd.f32 %v2426, %v2427
    %v2429 = vrot.slane %v2420, 4
    %v2430 = vadd.f32 %v2420, %v2429
    %v2431 = vrot.slane %v2430, 2
    %v2432 = vadd.f32 %v2430, %v2431
    %v2433 = vrot.slane %v2432, 1
    %v2434 = vadd.f32 %v2432, %v2433
    %v2435 = vrot.slane %v2421, 4
    %v2436 = vadd.f32 %v2421, %v2435
    %v2437 = vrot.slane %v2436, 2
    %v2438 = vadd.f32 %v2436, %v2437
    %v2439 = vrot.slane %v2438, 1
    %v2440 = vadd.f32 %v2438, %v2439
    %v2441 = vrot.slane %v2422, 4
    %v2442 = vadd.f32 %v2422, %v2441
    %v2443 = vrot.slane %v2442, 2
    %v2444 = vadd.f32 %v2442, %v2443
    %v2445 = vrot.slane %v2444, 1
    %v2446 = vadd.f32 %v2444, %v2445
    %v2447 = vmul.f32 %v2428, 0.125
    %v2448 = vmul.f32 %v2434, 0.125
    %v2449 = vmul.f32 %v2440, 0.125
    %v2450 = vmul.f32 %v2446, 0.125
    %v2451 = vadd.f32 %v2447, 1e-05
    %v2452 = vadd.f32 %v2448, 1e-05
    %v2453 = vadd.f32 %v2449, 1e-05
    %v2454 = vadd.f32 %v2450, 1e-05
    %v2455 = vrsqrt.pop %v2451
    %v2456 = vrsqrt.pop %v2452
    %v2457 = vrsqrt.pop %v2453
    %v2458 = vrsqrt.pop %v2454
    %v2463 = vcombine.low %v2455, %v2456
    %v2464 = vcombine.low %v2457, %v2458
    %v2466 = vunpack.c.l.s4 1966171168
    %v2467 = vunpack.c.0.s8 %v2466
    %v2468 = vlaneseq
    %v2469 = vshrl.u32 %v2468, 7
    %v2470 = vsub.s32 %v2467, %v2469
    %v2471 = vrot.slane %v2463, %v2470
    %v2473 = vunpack.c.l.s4 1966171168
    %v2474 = vunpack.c.0.s8 %v2473
    %v2475 = vlaneseq
    %v2476 = vshrl.u32 %v2475, 7
    %v2477 = vsub.s32 %v2474, %v2476
    %v2478 = vrot.slane %v2464, %v2477
    %v2479 = vcombine.low %v2471, %v2478
    %v2481 = vunpack.c.l.s4 1966171168
    %v2482 = vunpack.c.0.s8 %v2481
    %v2483 = vlaneseq
    %v2484 = vshrl.u32 %v2483, 7
    %v2485 = vsub.s32 %v2482, %v2484
    %v2486 = vrot.slane %v2479, %v2485
    %v2488 = vmul.f32 %v2384, %v2486
    %v2490 = vlaneseq
    %v2491 = vshrl.u32 %v2490, 7
    %v2492 = vsub.s32 0, %v2491
    %v2493 = vrot.slane %v2488, %v2492
    %v2494 = vlaneseq
    %v2495 = vshrl.u32 %v2494, 7
    %v2496 = vsub.s32 1, %v2495
    %v2497 = vrot.slane %v2488, %v2496
    %v2498 = vlaneseq
    %v2499 = vshrl.u32 %v2498, 7
    %v2500 = vsub.s32 2, %v2499
    %v2501 = vrot.slane %v2488, %v2500
    %v2502 = vlaneseq
    %v2503 = vshrl.u32 %v2502, 7
    %v2504 = vsub.s32 3, %v2503
    %v2505 = vrot.slane %v2488, %v2504
    %v2510 = vmul.f32 %v2415, %v2493
    %v2511 = vmul.f32 %v2416, %v2497
    %v2512 = vmul.f32 %v2417, %v2501
    %v2513 = vmul.f32 %v2418, %v2505
    %v2515 = vlaneseq
    %v2516 = vshrl.u32 %v2515, 7
    %v2517 = vsub.s32 0, %v2516
    %v2518 = vrot.slane %v2386, %v2517
    %v2519 = vlaneseq
    %v2520 = vshrl.u32 %v2519, 7
    %v2521 = vsub.s32 1, %v2520
    %v2522 = vrot.slane %v2386, %v2521
    %v2523 = vlaneseq
    %v2524 = vshrl.u32 %v2523, 7
    %v2525 = vsub.s32 2, %v2524
    %v2526 = vrot.slane %v2386, %v2525
    %v2527 = vlaneseq
    %v2528 = vshrl.u32 %v2527, 7
    %v2529 = vsub.s32 3, %v2528
    %v2530 = vrot.slane %v2386, %v2529
    %v2535 = vadd.f32 %v2510, %v2518
    %v2536 = vadd.f32 %v2511, %v2522
    %v2537 = vadd.f32 %v2512, %v2526
    %v2538 = vadd.f32 %v2513, %v2530
    %v2539 = vmax.f32 %v2535, 0.0
    %v2540 = vmax.f32 %v2536, 0.0
    %v2541 = vmax.f32 %v2537, 0.0
    %v2542 = vmax.f32 %v2538, 0.0
    %v2543 = vpack.c.bf16 %v2539, %v2539
    %v2544 = vpack.c.bf16 %v2540, %v2540
    %v2545 = vpack.c.bf16 %v2541, %v2541
    %v2546 = vpack.c.bf16 %v2542, %v2542
    %v2547 = vld [vmem:[#allocation7] sm:$0xff]
    %v2548 = vld [vmem:[#allocation7 + $0x8] sm:$0xff]
    %v2549 = vld [vmem:[#allocation7 + $0x10] sm:$0xff]
    %v2550 = vld [vmem:[#allocation7 + $0x18] sm:$0xff]
    %v2551 = vld [vmem:[#allocation7 + $0x20] sm:$0xff]
    %v2552 = vld [vmem:[#allocation7 + $0x28] sm:$0xff]
    %v2553 = vld [vmem:[#allocation7 + $0x30] sm:$0xff]
    %v2554 = vld [vmem:[#allocation7 + $0x38] sm:$0xff]
    %v2555 = vld [vmem:[#allocation7 + $0x40] sm:$0xff]
    %v2556 = vld [vmem:[#allocation7 + $0x48] sm:$0xff]
    %v2557 = vld [vmem:[#allocation7 + $0x50] sm:$0xff]
    %v2558 = vld [vmem:[#allocation7 + $0x58] sm:$0xff]
    %v2559 = vld [vmem:[#allocation7 + $0x60] sm:$0xff]
    %v2560 = vld [vmem:[#allocation7 + $0x68] sm:$0xff]
    %v2561 = vld [vmem:[#allocation7 + $0x70] sm:$0xff]
    %v2562 = vld [vmem:[#allocation7 + $0x78] sm:$0xff]
    %v2563 = vld [vmem:[#allocation7 + $0x80] sm:$0xff]
    %v2564 = vld [vmem:[#allocation7 + $0x88] sm:$0xff]
    %v2565 = vld [vmem:[#allocation7 + $0x90] sm:$0xff]
    %v2566 = vld [vmem:[#allocation7 + $0x98] sm:$0xff]
    %v2567 = vld [vmem:[#allocation7 + $0xa0] sm:$0xff]
    %v2568 = vld [vmem:[#allocation7 + $0xa8] sm:$0xff]
    %v2569 = vld [vmem:[#allocation7 + $0xb0] sm:$0xff]
    %v2570 = vld [vmem:[#allocation7 + $0xb8] sm:$0xff]
    %v2571 = vld [vmem:[#allocation7 + $0xc0] sm:$0xff]
    %v2572 = vld [vmem:[#allocation7 + $0xc8] sm:$0xff]
    %v2573 = vld [vmem:[#allocation7 + $0xd0] sm:$0xff]
    %v2574 = vld [vmem:[#allocation7 + $0xd8] sm:$0xff]
    %v2575 = vld [vmem:[#allocation7 + $0xe0] sm:$0xff]
    %v2576 = vld [vmem:[#allocation7 + $0xe8] sm:$0xff]
    %v2577 = vld [vmem:[#allocation7 + $0xf0] sm:$0xff]
    %v2578 = vld [vmem:[#allocation7 + $0xf8] sm:$0xff]
    %v2579 = vld [vmem:[#allocation7 + $0x100] sm:$0xff]
    %v2580 = vld [vmem:[#allocation7 + $0x108] sm:$0xff]
    %v2581 = vld [vmem:[#allocation7 + $0x110] sm:$0xff]
    %v2582 = vld [vmem:[#allocation7 + $0x118] sm:$0xff]
    %v2583 = vld [vmem:[#allocation7 + $0x120] sm:$0xff]
    %v2584 = vld [vmem:[#allocation7 + $0x128] sm:$0xff]
    %v2585 = vld [vmem:[#allocation7 + $0x130] sm:$0xff]
    %v2586 = vld [vmem:[#allocation7 + $0x138] sm:$0xff]
    %v2587 = vld [vmem:[#allocation7 + $0x140] sm:$0xff]
    %v2588 = vld [vmem:[#allocation7 + $0x148] sm:$0xff]
    %v2589 = vld [vmem:[#allocation7 + $0x150] sm:$0xff]
    %v2590 = vld [vmem:[#allocation7 + $0x158] sm:$0xff]
    %v2591 = vld [vmem:[#allocation7 + $0x160] sm:$0xff]
    %v2592 = vld [vmem:[#allocation7 + $0x168] sm:$0xff]
    %v2593 = vld [vmem:[#allocation7 + $0x170] sm:$0xff]
    %v2594 = vld [vmem:[#allocation7 + $0x178] sm:$0xff]
    %v2595 = vld [vmem:[#allocation7 + $0x180] sm:$0xff]
    %v2596 = vld [vmem:[#allocation7 + $0x188] sm:$0xff]
    %v2597 = vld [vmem:[#allocation7 + $0x190] sm:$0xff]
    %v2598 = vld [vmem:[#allocation7 + $0x198] sm:$0xff]
    %v2599 = vld [vmem:[#allocation7 + $0x1a0] sm:$0xff]
    %v2600 = vld [vmem:[#allocation7 + $0x1a8] sm:$0xff]
    %v2601 = vld [vmem:[#allocation7 + $0x1b0] sm:$0xff]
    %v2602 = vld [vmem:[#allocation7 + $0x1b8] sm:$0xff]
    %v2603 = vld [vmem:[#allocation7 + $0x1c0] sm:$0xff]
    %v2604 = vld [vmem:[#allocation7 + $0x1c8] sm:$0xff]
    %v2605 = vld [vmem:[#allocation7 + $0x1d0] sm:$0xff]
    %v2606 = vld [vmem:[#allocation7 + $0x1d8] sm:$0xff]
    %v2607 = vld [vmem:[#allocation7 + $0x1e0] sm:$0xff]
    %v2608 = vld [vmem:[#allocation7 + $0x1e8] sm:$0xff]
    %v2609 = vld [vmem:[#allocation7 + $0x1f0] sm:$0xff]
    %v2610 = vld [vmem:[#allocation7 + $0x1f8] sm:$0xff]
    %v2611 = vld [vmem:[#allocation7 + $0x200] sm:$0xff]
    %v2612 = vld [vmem:[#allocation7 + $0x208] sm:$0xff]
    %v2613 = vld [vmem:[#allocation7 + $0x210] sm:$0xff]
    %v2614 = vld [vmem:[#allocation7 + $0x218] sm:$0xff]
    %v2615 = vld [vmem:[#allocation7 + $0x220] sm:$0xff]
    %v2616 = vld [vmem:[#allocation7 + $0x228] sm:$0xff]
    %v2617 = vld [vmem:[#allocation7 + $0x230] sm:$0xff]
    %v2618 = vld [vmem:[#allocation7 + $0x238] sm:$0xff]
    %v2619 = vld [vmem:[#allocation7 + $0x240] sm:$0xff]
    %v2620 = vld [vmem:[#allocation7 + $0x248] sm:$0xff]
    %v2621 = vld [vmem:[#allocation7 + $0x250] sm:$0xff]
    %v2622 = vld [vmem:[#allocation7 + $0x258] sm:$0xff]
    %v2623 = vld [vmem:[#allocation7 + $0x260] sm:$0xff]
    %v2624 = vld [vmem:[#allocation7 + $0x268] sm:$0xff]
    %v2625 = vld [vmem:[#allocation7 + $0x270] sm:$0xff]
    %v2626 = vld [vmem:[#allocation7 + $0x278] sm:$0xff]
    %v2627 = vld [vmem:[#allocation7 + $0x280] sm:$0xff]
    %v2628 = vld [vmem:[#allocation7 + $0x288] sm:$0xff]
    %v2629 = vld [vmem:[#allocation7 + $0x290] sm:$0xff]
    %v2630 = vld [vmem:[#allocation7 + $0x298] sm:$0xff]
    %v2631 = vld [vmem:[#allocation7 + $0x2a0] sm:$0xff]
    %v2632 = vld [vmem:[#allocation7 + $0x2a8] sm:$0xff]
    %v2633 = vld [vmem:[#allocation7 + $0x2b0] sm:$0xff]
    %v2634 = vld [vmem:[#allocation7 + $0x2b8] sm:$0xff]
    %v2635 = vld [vmem:[#allocation7 + $0x2c0] sm:$0xff]
    %v2636 = vld [vmem:[#allocation7 + $0x2c8] sm:$0xff]
    %v2637 = vld [vmem:[#allocation7 + $0x2d0] sm:$0xff]
    %v2638 = vld [vmem:[#allocation7 + $0x2d8] sm:$0xff]
    %v2639 = vld [vmem:[#allocation7 + $0x2e0] sm:$0xff]
    %v2640 = vld [vmem:[#allocation7 + $0x2e8] sm:$0xff]
    %v2641 = vld [vmem:[#allocation7 + $0x2f0] sm:$0xff]
    %v2642 = vld [vmem:[#allocation7 + $0x2f8] sm:$0xff]
    %v2643 = vld [vmem:[#allocation7 + $0x300] sm:$0xff]
    %v2644 = vld [vmem:[#allocation7 + $0x308] sm:$0xff]
    %v2645 = vld [vmem:[#allocation7 + $0x310] sm:$0xff]
    %v2646 = vld [vmem:[#allocation7 + $0x318] sm:$0xff]
    %v2647 = vld [vmem:[#allocation7 + $0x320] sm:$0xff]
    %v2648 = vld [vmem:[#allocation7 + $0x328] sm:$0xff]
    %v2649 = vld [vmem:[#allocation7 + $0x330] sm:$0xff]
    %v2650 = vld [vmem:[#allocation7 + $0x338] sm:$0xff]
    %v2651 = vld [vmem:[#allocation7 + $0x340] sm:$0xff]
    %v2652 = vld [vmem:[#allocation7 + $0x348] sm:$0xff]
    %v2653 = vld [vmem:[#allocation7 + $0x350] sm:$0xff]
    %v2654 = vld [vmem:[#allocation7 + $0x358] sm:$0xff]
    %v2655 = vld [vmem:[#allocation7 + $0x360] sm:$0xff]
    %v2656 = vld [vmem:[#allocation7 + $0x368] sm:$0xff]
    %v2657 = vld [vmem:[#allocation7 + $0x370] sm:$0xff]
    %v2658 = vld [vmem:[#allocation7 + $0x378] sm:$0xff]
    %v2659 = vld [vmem:[#allocation7 + $0x380] sm:$0xff]
    %v2660 = vld [vmem:[#allocation7 + $0x388] sm:$0xff]
    %v2661 = vld [vmem:[#allocation7 + $0x390] sm:$0xff]
    %v2662 = vld [vmem:[#allocation7 + $0x398] sm:$0xff]
    %v2663 = vld [vmem:[#allocation7 + $0x3a0] sm:$0xff]
    %v2664 = vld [vmem:[#allocation7 + $0x3a8] sm:$0xff]
    %v2665 = vld [vmem:[#allocation7 + $0x3b0] sm:$0xff]
    %v2666 = vld [vmem:[#allocation7 + $0x3b8] sm:$0xff]
    %v2667 = vld [vmem:[#allocation7 + $0x3c0] sm:$0xff]
    %v2668 = vld [vmem:[#allocation7 + $0x3c8] sm:$0xff]
    %v2669 = vld [vmem:[#allocation7 + $0x3d0] sm:$0xff]
    %v2670 = vld [vmem:[#allocation7 + $0x3d8] sm:$0xff]
    %v2671 = vld [vmem:[#allocation7 + $0x3e0] sm:$0xff]
    %v2672 = vld [vmem:[#allocation7 + $0x3e8] sm:$0xff]
    %v2673 = vld [vmem:[#allocation7 + $0x3f0] sm:$0xff]
    %v2674 = vld [vmem:[#allocation7 + $0x3f8] sm:$0xff]
    %v2803 = vunpack.c.l.b16 %v2547
    %v2804 = vunpack.c.h.b16 %v2547
    %v2805 = vunpack.c.l.b16 %v2548
    %v2806 = vunpack.c.h.b16 %v2548
    %v2807 = vunpack.c.l.b16 %v2549
    %v2808 = vunpack.c.h.b16 %v2549
    %v2809 = vunpack.c.l.b16 %v2550
    %v2810 = vunpack.c.h.b16 %v2550
    %v2811 = vunpack.c.l.b16 %v2551
    %v2812 = vunpack.c.h.b16 %v2551
    %v2813 = vunpack.c.l.b16 %v2552
    %v2814 = vunpack.c.h.b16 %v2552
    %v2815 = vunpack.c.l.b16 %v2553
    %v2816 = vunpack.c.h.b16 %v2553
    %v2817 = vunpack.c.l.b16 %v2554
    %v2818 = vunpack.c.h.b16 %v2554
    %v2819 = vunpack.c.l.b16 %v2555
    %v2820 = vunpack.c.h.b16 %v2555
    %v2821 = vunpack.c.l.b16 %v2556
    %v2822 = vunpack.c.h.b16 %v2556
    %v2823 = vunpack.c.l.b16 %v2557
    %v2824 = vunpack.c.h.b16 %v2557
    %v2825 = vunpack.c.l.b16 %v2558
    %v2826 = vunpack.c.h.b16 %v2558
    %v2827 = vunpack.c.l.b16 %v2559
    %v2828 = vunpack.c.h.b16 %v2559
    %v2829 = vunpack.c.l.b16 %v2560
    %v2830 = vunpack.c.h.b16 %v2560
    %v2831 = vunpack.c.l.b16 %v2561
    %v2832 = vunpack.c.h.b16 %v2561
    %v2833 = vunpack.c.l.b16 %v2562
    %v2834 = vunpack.c.h.b16 %v2562
    %v2835 = vunpack.c.l.b16 %v2563
    %v2836 = vunpack.c.h.b16 %v2563
    %v2837 = vunpack.c.l.b16 %v2564
    %v2838 = vunpack.c.h.b16 %v2564
    %v2839 = vunpack.c.l.b16 %v2565
    %v2840 = vunpack.c.h.b16 %v2565
    %v2841 = vunpack.c.l.b16 %v2566
    %v2842 = vunpack.c.h.b16 %v2566
    %v2843 = vunpack.c.l.b16 %v2567
    %v2844 = vunpack.c.h.b16 %v2567
    %v2845 = vunpack.c.l.b16 %v2568
    %v2846 = vunpack.c.h.b16 %v2568
    %v2847 = vunpack.c.l.b16 %v2569
    %v2848 = vunpack.c.h.b16 %v2569
    %v2849 = vunpack.c.l.b16 %v2570
    %v2850 = vunpack.c.h.b16 %v2570
    %v2851 = vunpack.c.l.b16 %v2571
    %v2852 = vunpack.c.h.b16 %v2571
    %v2853 = vunpack.c.l.b16 %v2572
    %v2854 = vunpack.c.h.b16 %v2572
    %v2855 = vunpack.c.l.b16 %v2573
    %v2856 = vunpack.c.h.b16 %v2573
    %v2857 = vunpack.c.l.b16 %v2574
    %v2858 = vunpack.c.h.b16 %v2574
    %v2859 = vunpack.c.l.b16 %v2575
    %v2860 = vunpack.c.h.b16 %v2575
    %v2861 = vunpack.c.l.b16 %v2576
    %v2862 = vunpack.c.h.b16 %v2576
    %v2863 = vunpack.c.l.b16 %v2577
    %v2864 = vunpack.c.h.b16 %v2577
    %v2865 = vunpack.c.l.b16 %v2578
    %v2866 = vunpack.c.h.b16 %v2578
    %v2867 = vunpack.c.l.b16 %v2579
    %v2868 = vunpack.c.h.b16 %v2579
    %v2869 = vunpack.c.l.b16 %v2580
    %v2870 = vunpack.c.h.b16 %v2580
    %v2871 = vunpack.c.l.b16 %v2581
    %v2872 = vunpack.c.h.b16 %v2581
    %v2873 = vunpack.c.l.b16 %v2582
    %v2874 = vunpack.c.h.b16 %v2582
    %v2875 = vunpack.c.l.b16 %v2583
    %v2876 = vunpack.c.h.b16 %v2583
    %v2877 = vunpack.c.l.b16 %v2584
    %v2878 = vunpack.c.h.b16 %v2584
    %v2879 = vunpack.c.l.b16 %v2585
    %v2880 = vunpack.c.h.b16 %v2585
    %v2881 = vunpack.c.l.b16 %v2586
    %v2882 = vunpack.c.h.b16 %v2586
    %v2883 = vunpack.c.l.b16 %v2587
    %v2884 = vunpack.c.h.b16 %v2587
    %v2885 = vunpack.c.l.b16 %v2588
    %v2886 = vunpack.c.h.b16 %v2588
    %v2887 = vunpack.c.l.b16 %v2589
    %v2888 = vunpack.c.h.b16 %v2589
    %v2889 = vunpack.c.l.b16 %v2590
    %v2890 = vunpack.c.h.b16 %v2590
    %v2891 = vunpack.c.l.b16 %v2591
    %v2892 = vunpack.c.h.b16 %v2591
    %v2893 = vunpack.c.l.b16 %v2592
    %v2894 = vunpack.c.h.b16 %v2592
    %v2895 = vunpack.c.l.b16 %v2593
    %v2896 = vunpack.c.h.b16 %v2593
    %v2897 = vunpack.c.l.b16 %v2594
    %v2898 = vunpack.c.h.b16 %v2594
    %v2899 = vunpack.c.l.b16 %v2595
    %v2900 = vunpack.c.h.b16 %v2595
    %v2901 = vunpack.c.l.b16 %v2596
    %v2902 = vunpack.c.h.b16 %v2596
    %v2903 = vunpack.c.l.b16 %v2597
    %v2904 = vunpack.c.h.b16 %v2597
    %v2905 = vunpack.c.l.b16 %v2598
    %v2906 = vunpack.c.h.b16 %v2598
    %v2907 = vunpack.c.l.b16 %v2599
    %v2908 = vunpack.c.h.b16 %v2599
    %v2909 = vunpack.c.l.b16 %v2600
    %v2910 = vunpack.c.h.b16 %v2600
    %v2911 = vunpack.c.l.b16 %v2601
    %v2912 = vunpack.c.h.b16 %v2601
    %v2913 = vunpack.c.l.b16 %v2602
    %v2914 = vunpack.c.h.b16 %v2602
    %v2915 = vunpack.c.l.b16 %v2603
    %v2916 = vunpack.c.h.b16 %v2603
    %v2917 = vunpack.c.l.b16 %v2604
    %v2918 = vunpack.c.h.b16 %v2604
    %v2919 = vunpack.c.l.b16 %v2605
    %v2920 = vunpack.c.h.b16 %v2605
    %v2921 = vunpack.c.l.b16 %v2606
    %v2922 = vunpack.c.h.b16 %v2606
    %v2923 = vunpack.c.l.b16 %v2607
    %v2924 = vunpack.c.h.b16 %v2607
    %v2925 = vunpack.c.l.b16 %v2608
    %v2926 = vunpack.c.h.b16 %v2608
    %v2927 = vunpack.c.l.b16 %v2609
    %v2928 = vunpack.c.h.b16 %v2609
    %v2929 = vunpack.c.l.b16 %v2610
    %v2930 = vunpack.c.h.b16 %v2610
    %v2931 = vunpack.c.l.b16 %v2611
    %v2932 = vunpack.c.h.b16 %v2611
    %v2933 = vunpack.c.l.b16 %v2612
    %v2934 = vunpack.c.h.b16 %v2612
    %v2935 = vunpack.c.l.b16 %v2613
    %v2936 = vunpack.c.h.b16 %v2613
    %v2937 = vunpack.c.l.b16 %v2614
    %v2938 = vunpack.c.h.b16 %v2614
    %v2939 = vunpack.c.l.b16 %v2615
    %v2940 = vunpack.c.h.b16 %v2615
    %v2941 = vunpack.c.l.b16 %v2616
    %v2942 = vunpack.c.h.b16 %v2616
    %v2943 = vunpack.c.l.b16 %v2617
    %v2944 = vunpack.c.h.b16 %v2617
    %v2945 = vunpack.c.l.b16 %v2618
    %v2946 = vunpack.c.h.b16 %v2618
    %v2947 = vunpack.c.l.b16 %v2619
    %v2948 = vunpack.c.h.b16 %v2619
    %v2949 = vunpack.c.l.b16 %v2620
    %v2950 = vunpack.c.h.b16 %v2620
    %v2951 = vunpack.c.l.b16 %v2621
    %v2952 = vunpack.c.h.b16 %v2621
    %v2953 = vunpack.c.l.b16 %v2622
    %v2954 = vunpack.c.h.b16 %v2622
    %v2955 = vunpack.c.l.b16 %v2623
    %v2956 = vunpack.c.h.b16 %v2623
    %v2957 = vunpack.c.l.b16 %v2624
    %v2958 = vunpack.c.h.b16 %v2624
    %v2959 = vunpack.c.l.b16 %v2625
    %v2960 = vunpack.c.h.b16 %v2625
    %v2961 = vunpack.c.l.b16 %v2626
    %v2962 = vunpack.c.h.b16 %v2626
    %v2963 = vunpack.c.l.b16 %v2627
    %v2964 = vunpack.c.h.b16 %v2627
    %v2965 = vunpack.c.l.b16 %v2628
    %v2966 = vunpack.c.h.b16 %v2628
    %v2967 = vunpack.c.l.b16 %v2629
    %v2968 = vunpack.c.h.b16 %v2629
    %v2969 = vunpack.c.l.b16 %v2630
    %v2970 = vunpack.c.h.b16 %v2630
    %v2971 = vunpack.c.l.b16 %v2631
    %v2972 = vunpack.c.h.b16 %v2631
    %v2973 = vunpack.c.l.b16 %v2632
    %v2974 = vunpack.c.h.b16 %v2632
    %v2975 = vunpack.c.l.b16 %v2633
    %v2976 = vunpack.c.h.b16 %v2633
    %v2977 = vunpack.c.l.b16 %v2634
    %v2978 = vunpack.c.h.b16 %v2634
    %v2979 = vunpack.c.l.b16 %v2635
    %v2980 = vunpack.c.h.b16 %v2635
    %v2981 = vunpack.c.l.b16 %v2636
    %v2982 = vunpack.c.h.b16 %v2636
    %v2983 = vunpack.c.l.b16 %v2637
    %v2984 = vunpack.c.h.b16 %v2637
    %v2985 = vunpack.c.l.b16 %v2638
    %v2986 = vunpack.c.h.b16 %v2638
    %v2987 = vunpack.c.l.b16 %v2639
    %v2988 = vunpack.c.h.b16 %v2639
    %v2989 = vunpack.c.l.b16 %v2640
    %v2990 = vunpack.c.h.b16 %v2640
    %v2991 = vunpack.c.l.b16 %v2641
    %v2992 = vunpack.c.h.b16 %v2641
    %v2993 = vunpack.c.l.b16 %v2642
    %v2994 = vunpack.c.h.b16 %v2642
    %v2995 = vunpack.c.l.b16 %v2643
    %v2996 = vunpack.c.h.b16 %v2643
    %v2997 = vunpack.c.l.b16 %v2644
    %v2998 = vunpack.c.h.b16 %v2644
    %v2999 = vunpack.c.l.b16 %v2645
    %v3000 = vunpack.c.h.b16 %v2645
    %v3001 = vunpack.c.l.b16 %v2646
    %v3002 = vunpack.c.h.b16 %v2646
    %v3003 = vunpack.c.l.b16 %v2647
    %v3004 = vunpack.c.h.b16 %v2647
    %v3005 = vunpack.c.l.b16 %v2648
    %v3006 = vunpack.c.h.b16 %v2648
    %v3007 = vunpack.c.l.b16 %v2649
    %v3008 = vunpack.c.h.b16 %v2649
    %v3009 = vunpack.c.l.b16 %v2650
    %v3010 = vunpack.c.h.b16 %v2650
    %v3011 = vunpack.c.l.b16 %v2651
    %v3012 = vunpack.c.h.b16 %v2651
    %v3013 = vunpack.c.l.b16 %v2652
    %v3014 = vunpack.c.h.b16 %v2652
    %v3015 = vunpack.c.l.b16 %v2653
    %v3016 = vunpack.c.h.b16 %v2653
    %v3017 = vunpack.c.l.b16 %v2654
    %v3018 = vunpack.c.h.b16 %v2654
    %v3019 = vunpack.c.l.b16 %v2655
    %v3020 = vunpack.c.h.b16 %v2655
    %v3021 = vunpack.c.l.b16 %v2656
    %v3022 = vunpack.c.h.b16 %v2656
    %v3023 = vunpack.c.l.b16 %v2657
    %v3024 = vunpack.c.h.b16 %v2657
    %v3025 = vunpack.c.l.b16 %v2658
    %v3026 = vunpack.c.h.b16 %v2658
    %v3027 = vunpack.c.l.b16 %v2659
    %v3028 = vunpack.c.h.b16 %v2659
    %v3029 = vunpack.c.l.b16 %v2660
    %v3030 = vunpack.c.h.b16 %v2660
    %v3031 = vunpack.c.l.b16 %v2661
    %v3032 = vunpack.c.h.b16 %v2661
    %v3033 = vunpack.c.l.b16 %v2662
    %v3034 = vunpack.c.h.b16 %v2662
    %v3035 = vunpack.c.l.b16 %v2663
    %v3036 = vunpack.c.h.b16 %v2663
    %v3037 = vunpack.c.l.b16 %v2664
    %v3038 = vunpack.c.h.b16 %v2664
    %v3039 = vunpack.c.l.b16 %v2665
    %v3040 = vunpack.c.h.b16 %v2665
    %v3041 = vunpack.c.l.b16 %v2666
    %v3042 = vunpack.c.h.b16 %v2666
    %v3043 = vunpack.c.l.b16 %v2667
    %v3044 = vunpack.c.h.b16 %v2667
    %v3045 = vunpack.c.l.b16 %v2668
    %v3046 = vunpack.c.h.b16 %v2668
    %v3047 = vunpack.c.l.b16 %v2669
    %v3048 = vunpack.c.h.b16 %v2669
    %v3049 = vunpack.c.l.b16 %v2670
    %v3050 = vunpack.c.h.b16 %v2670
    %v3051 = vunpack.c.l.b16 %v2671
    %v3052 = vunpack.c.h.b16 %v2671
    %v3053 = vunpack.c.l.b16 %v2672
    %v3054 = vunpack.c.h.b16 %v2672
    %v3055 = vunpack.c.l.b16 %v2673
    %v3056 = vunpack.c.h.b16 %v2673
    %v3057 = vunpack.c.l.b16 %v2674
    %v3058 = vunpack.c.h.b16 %v2674
    %v3059 = vpack.c.b16 %v2807, %v2803
    %v3060 = vpack.c.b16 %v2808, %v2804
    %v3061 = vpack.c.b16 %v2809, %v2805
    %v3062 = vpack.c.b16 %v2810, %v2806
    %v3063 = vpack.c.b16 %v2815, %v2811
    %v3064 = vpack.c.b16 %v2816, %v2812
    %v3065 = vpack.c.b16 %v2817, %v2813
    %v3066 = vpack.c.b16 %v2818, %v2814
    %v3067 = vpack.c.b16 %v2823, %v2819
    %v3068 = vpack.c.b16 %v2824, %v2820
    %v3069 = vpack.c.b16 %v2825, %v2821
    %v3070 = vpack.c.b16 %v2826, %v2822
    %v3071 = vpack.c.b16 %v2831, %v2827
    %v3072 = vpack.c.b16 %v2832, %v2828
    %v3073 = vpack.c.b16 %v2833, %v2829
    %v3074 = vpack.c.b16 %v2834, %v2830
    %v3075 = vpack.c.b16 %v2839, %v2835
    %v3076 = vpack.c.b16 %v2840, %v2836
    %v3077 = vpack.c.b16 %v2841, %v2837
    %v3078 = vpack.c.b16 %v2842, %v2838
    %v3079 = vpack.c.b16 %v2847, %v2843
    %v3080 = vpack.c.b16 %v2848, %v2844
    %v3081 = vpack.c.b16 %v2849, %v2845
    %v3082 = vpack.c.b16 %v2850, %v2846
    %v3083 = vpack.c.b16 %v2855, %v2851
    %v3084 = vpack.c.b16 %v2856, %v2852
    %v3085 = vpack.c.b16 %v2857, %v2853
    %v3086 = vpack.c.b16 %v2858, %v2854
    %v3087 = vpack.c.b16 %v2863, %v2859
    %v3088 = vpack.c.b16 %v2864, %v2860
    %v3089 = vpack.c.b16 %v2865, %v2861
    %v3090 = vpack.c.b16 %v2866, %v2862
    %v3091 = vpack.c.b16 %v2871, %v2867
    %v3092 = vpack.c.b16 %v2872, %v2868
    %v3093 = vpack.c.b16 %v2873, %v2869
    %v3094 = vpack.c.b16 %v2874, %v2870
    %v3095 = vpack.c.b16 %v2879, %v2875
    %v3096 = vpack.c.b16 %v2880, %v2876
    %v3097 = vpack.c.b16 %v2881, %v2877
    %v3098 = vpack.c.b16 %v2882, %v2878
    %v3099 = vpack.c.b16 %v2887, %v2883
    %v3100 = vpack.c.b16 %v2888, %v2884
    %v3101 = vpack.c.b16 %v2889, %v2885
    %v3102 = vpack.c.b16 %v2890, %v2886
    %v3103 = vpack.c.b16 %v2895, %v2891
    %v3104 = vpack.c.b16 %v2896, %v2892
    %v3105 = vpack.c.b16 %v2897, %v2893
    %v3106 = vpack.c.b16 %v2898, %v2894
    %v3107 = vpack.c.b16 %v2903, %v2899
    %v3108 = vpack.c.b16 %v2904, %v2900
    %v3109 = vpack.c.b16 %v2905, %v2901
    %v3110 = vpack.c.b16 %v2906, %v2902
    %v3111 = vpack.c.b16 %v2911, %v2907
    %v3112 = vpack.c.b16 %v2912, %v2908
    %v3113 = vpack.c.b16 %v2913, %v2909
    %v3114 = vpack.c.b16 %v2914, %v2910
    %v3115 = vpack.c.b16 %v2919, %v2915
    %v3116 = vpack.c.b16 %v2920, %v2916
    %v3117 = vpack.c.b16 %v2921, %v2917
    %v3118 = vpack.c.b16 %v2922, %v2918
    %v3119 = vpack.c.b16 %v2927, %v2923
    %v3120 = vpack.c.b16 %v2928, %v2924
    %v3121 = vpack.c.b16 %v2929, %v2925
    %v3122 = vpack.c.b16 %v2930, %v2926
    %v3123 = vpack.c.b16 %v2935, %v2931
    %v3124 = vpack.c.b16 %v2936, %v2932
    %v3125 = vpack.c.b16 %v2937, %v2933
    %v3126 = vpack.c.b16 %v2938, %v2934
    %v3127 = vpack.c.b16 %v2943, %v2939
    %v3128 = vpack.c.b16 %v2944, %v2940
    %v3129 = vpack.c.b16 %v2945, %v2941
    %v3130 = vpack.c.b16 %v2946, %v2942
    %v3131 = vpack.c.b16 %v2951, %v2947
    %v3132 = vpack.c.b16 %v2952, %v2948
    %v3133 = vpack.c.b16 %v2953, %v2949
    %v3134 = vpack.c.b16 %v2954, %v2950
    %v3135 = vpack.c.b16 %v2959, %v2955
    %v3136 = vpack.c.b16 %v2960, %v2956
    %v3137 = vpack.c.b16 %v2961, %v2957
    %v3138 = vpack.c.b16 %v2962, %v2958
    %v3139 = vpack.c.b16 %v2967, %v2963
    %v3140 = vpack.c.b16 %v2968, %v2964
    %v3141 = vpack.c.b16 %v2969, %v2965
    %v3142 = vpack.c.b16 %v2970, %v2966
    %v3143 = vpack.c.b16 %v2975, %v2971
    %v3144 = vpack.c.b16 %v2976, %v2972
    %v3145 = vpack.c.b16 %v2977, %v2973
    %v3146 = vpack.c.b16 %v2978, %v2974
    %v3147 = vpack.c.b16 %v2983, %v2979
    %v3148 = vpack.c.b16 %v2984, %v2980
    %v3149 = vpack.c.b16 %v2985, %v2981
    %v3150 = vpack.c.b16 %v2986, %v2982
    %v3151 = vpack.c.b16 %v2991, %v2987
    %v3152 = vpack.c.b16 %v2992, %v2988
    %v3153 = vpack.c.b16 %v2993, %v2989
    %v3154 = vpack.c.b16 %v2994, %v2990
    %v3155 = vpack.c.b16 %v2999, %v2995
    %v3156 = vpack.c.b16 %v3000, %v2996
    %v3157 = vpack.c.b16 %v3001, %v2997
    %v3158 = vpack.c.b16 %v3002, %v2998
    %v3159 = vpack.c.b16 %v3007, %v3003
    %v3160 = vpack.c.b16 %v3008, %v3004
    %v3161 = vpack.c.b16 %v3009, %v3005
    %v3162 = vpack.c.b16 %v3010, %v3006
    %v3163 = vpack.c.b16 %v3015, %v3011
    %v3164 = vpack.c.b16 %v3016, %v3012
    %v3165 = vpack.c.b16 %v3017, %v3013
    %v3166 = vpack.c.b16 %v3018, %v3014
    %v3167 = vpack.c.b16 %v3023, %v3019
    %v3168 = vpack.c.b16 %v3024, %v3020
    %v3169 = vpack.c.b16 %v3025, %v3021
    %v3170 = vpack.c.b16 %v3026, %v3022
    %v3171 = vpack.c.b16 %v3031, %v3027
    %v3172 = vpack.c.b16 %v3032, %v3028
    %v3173 = vpack.c.b16 %v3033, %v3029
    %v3174 = vpack.c.b16 %v3034, %v3030
    %v3175 = vpack.c.b16 %v3039, %v3035
    %v3176 = vpack.c.b16 %v3040, %v3036
    %v3177 = vpack.c.b16 %v3041, %v3037
    %v3178 = vpack.c.b16 %v3042, %v3038
    %v3179 = vpack.c.b16 %v3047, %v3043
    %v3180 = vpack.c.b16 %v3048, %v3044
    %v3181 = vpack.c.b16 %v3049, %v3045
    %v3182 = vpack.c.b16 %v3050, %v3046
    %v3183 = vpack.c.b16 %v3055, %v3051
    %v3184 = vpack.c.b16 %v3056, %v3052
    %v3185 = vpack.c.b16 %v3057, %v3053
    %v3186 = vpack.c.b16 %v3058, %v3054
    %3315 = vmatprep.subr.bf16.mxu0 %v3088
    %3316 = vmatpush1.bf16.msra.mxu0 %v3087
    %3317 = vmatprep.subr.bf16.mxu0 %v3084
    %3318 = vmatpush1.bf16.msra.mxu0 %v3083
    %3319 = vmatprep.subr.bf16.mxu0 %v3080
    %3320 = vmatpush1.bf16.msra.mxu0 %v3079
    %3321 = vmatprep.subr.bf16.mxu0 %v3076
    %3322 = vmatpush1.bf16.msra.mxu0 %v3075
    %3323 = vmatprep.subr.bf16.mxu0 %v3072
    %3324 = vmatpush1.bf16.msra.mxu0 %v3071
    %3325 = vmatprep.subr.bf16.mxu0 %v3068
    %3326 = vmatpush1.bf16.msra.mxu0 %v3067
    %3327 = vmatprep.subr.bf16.mxu0 %v3064
    %3328 = vmatpush1.bf16.msra.mxu0 %v3063
    %3329 = vmatprep.subr.bf16.mxu0 %v3060
    %3330 = vmatpush1.bf16.msra.mxu0 %v3059
    %3331 = vmatprep.subr.bf16.mxu0 %v3120
    %3332 = vmatpush2.bf16.msra.mxu0 %v3119
    %3333 = vmatprep.subr.bf16.mxu0 %v3116
    %3334 = vmatpush2.bf16.msra.mxu0 %v3115
    %3335 = vmatprep.subr.bf16.mxu0 %v3112
    %3336 = vmatpush2.bf16.msra.mxu0 %v3111
    %3337 = vmatprep.subr.bf16.mxu0 %v3108
    %3338 = vmatpush2.bf16.msra.mxu0 %v3107
    %3339 = vmatprep.subr.bf16.mxu0 %v3104
    %3340 = vmatpush2.bf16.msra.mxu0 %v3103
    %3341 = vmatprep.subr.bf16.mxu0 %v3100
    %3342 = vmatpush2.bf16.msra.mxu0 %v3099
    %3343 = vmatprep.subr.bf16.mxu0 %v3096
    %3344 = vmatpush2.bf16.msra.mxu0 %v3095
    %3345 = vmatprep.subr.bf16.mxu0 %v3092
    %3346 = vmatpush2.bf16.msra.mxu0 %v3091
    %3347 = vmatprep.mubr.bf16.mxu0 %v2544
    %3348 = vmatmul.mubr.bf16.gmra.mxu0 %v2543
    %v3349 = vpop.f32.mrf.mxu0
    %v3350 = vadd.f32 0.0, %v3349
    %v3351 = vpop.f32.mrf.mxu0
    %v3352 = vadd.f32 0.0, %v3351
    %v3353 = vpop.f32.mrf.mxu0
    %v3354 = vpop.f32.mrf.mxu0
    %3355 = vdwg.mxu0
    %3356 = vmatprep.subr.bf16.mxu0 %v3152
    %3357 = vmatpush1.bf16.msra.mxu0 %v3151
    %3358 = vmatprep.subr.bf16.mxu0 %v3148
    %3359 = vmatpush1.bf16.msra.mxu0 %v3147
    %3360 = vmatprep.subr.bf16.mxu0 %v3144
    %3361 = vmatpush1.bf16.msra.mxu0 %v3143
    %3362 = vmatprep.subr.bf16.mxu0 %v3140
    %3363 = vmatpush1.bf16.msra.mxu0 %v3139
    %3364 = vmatprep.subr.bf16.mxu0 %v3136
    %3365 = vmatpush1.bf16.msra.mxu0 %v3135
    %3366 = vmatprep.subr.bf16.mxu0 %v3132
    %3367 = vmatpush1.bf16.msra.mxu0 %v3131
    %3368 = vmatprep.subr.bf16.mxu0 %v3128
    %3369 = vmatpush1.bf16.msra.mxu0 %v3127
    %3370 = vmatprep.subr.bf16.mxu0 %v3124
    %3371 = vmatpush1.bf16.msra.mxu0 %v3123
    %3372 = vmatprep.subr.bf16.mxu0 %v3184
    %3373 = vmatpush2.bf16.msra.mxu0 %v3183
    %3374 = vmatprep.subr.bf16.mxu0 %v3180
    %3375 = vmatpush2.bf16.msra.mxu0 %v3179
    %3376 = vmatprep.subr.bf16.mxu0 %v3176
    %3377 = vmatpush2.bf16.msra.mxu0 %v3175
    %3378 = vmatprep.subr.bf16.mxu0 %v3172
    %3379 = vmatpush2.bf16.msra.mxu0 %v3171
    %3380 = vmatprep.subr.bf16.mxu0 %v3168
    %3381 = vmatpush2.bf16.msra.mxu0 %v3167
    %3382 = vmatprep.subr.bf16.mxu0 %v3164
    %3383 = vmatpush2.bf16.msra.mxu0 %v3163
    %3384 = vmatprep.subr.bf16.mxu0 %v3160
    %3385 = vmatpush2.bf16.msra.mxu0 %v3159
    %3386 = vmatprep.subr.bf16.mxu0 %v3156
    %3387 = vmatpush2.bf16.msra.mxu0 %v3155
    %3388 = vmatprep.mubr.bf16.mxu0 %v2546
    %3389 = vmatmul.mubr.bf16.gmra.mxu0 %v2545
    %v3390 = vpop.f32.mrf.mxu0
    %v3391 = vadd.f32 %v3350, %v3390
    %v3392 = vpop.f32.mrf.mxu0
    %v3393 = vadd.f32 %v3352, %v3392
    %v3394 = vpop.f32.mrf.mxu0
    %v3395 = vpop.f32.mrf.mxu0
    %3396 = vdwg.mxu0
    %3397 = vmatprep.subr.bf16.mxu0 %v3090
    %3398 = vmatpush1.bf16.msra.mxu0 %v3089
    %3399 = vmatprep.subr.bf16.mxu0 %v3086
    %3400 = vmatpush1.bf16.msra.mxu0 %v3085
    %3401 = vmatprep.subr.bf16.mxu0 %v3082
    %3402 = vmatpush1.bf16.msra.mxu0 %v3081
    %3403 = vmatprep.subr.bf16.mxu0 %v3078
    %3404 = vmatpush1.bf16.msra.mxu0 %v3077
    %3405 = vmatprep.subr.bf16.mxu0 %v3074
    %3406 = vmatpush1.bf16.msra.mxu0 %v3073
    %3407 = vmatprep.subr.bf16.mxu0 %v3070
    %3408 = vmatpush1.bf16.msra.mxu0 %v3069
    %3409 = vmatprep.subr.bf16.mxu0 %v3066
    %3410 = vmatpush1.bf16.msra.mxu0 %v3065
    %3411 = vmatprep.subr.bf16.mxu0 %v3062
    %3412 = vmatpush1.bf16.msra.mxu0 %v3061
    %3413 = vmatprep.subr.bf16.mxu0 %v3122
    %3414 = vmatpush2.bf16.msra.mxu0 %v3121
    %3415 = vmatprep.subr.bf16.mxu0 %v3118
    %3416 = vmatpush2.bf16.msra.mxu0 %v3117
    %3417 = vmatprep.subr.bf16.mxu0 %v3114
    %3418 = vmatpush2.bf16.msra.mxu0 %v3113
    %3419 = vmatprep.subr.bf16.mxu0 %v3110
    %3420 = vmatpush2.bf16.msra.mxu0 %v3109
    %3421 = vmatprep.subr.bf16.mxu0 %v3106
    %3422 = vmatpush2.bf16.msra.mxu0 %v3105
    %3423 = vmatprep.subr.bf16.mxu0 %v3102
    %3424 = vmatpush2.bf16.msra.mxu0 %v3101
    %3425 = vmatprep.subr.bf16.mxu0 %v3098
    %3426 = vmatpush2.bf16.msra.mxu0 %v3097
    %3427 = vmatprep.subr.bf16.mxu0 %v3094
    %3428 = vmatpush2.bf16.msra.mxu0 %v3093
    %3429 = vmatprep.mubr.bf16.mxu0 %v2544
    %3430 = vmatmul.mubr.bf16.gmra.mxu0 %v2543
    %v3431 = vpop.f32.mrf.mxu0
    %v3432 = vadd.f32 0.0, %v3431
    %v3433 = vpop.f32.mrf.mxu0
    %v3434 = vadd.f32 0.0, %v3433
    %v3435 = vpop.f32.mrf.mxu0
    %v3436 = vpop.f32.mrf.mxu0
    %3437 = vdwg.mxu0
    %3438 = vmatprep.subr.bf16.mxu0 %v3154
    %3439 = vmatpush1.bf16.msra.mxu0 %v3153
    %3440 = vmatprep.subr.bf16.mxu0 %v3150
    %3441 = vmatpush1.bf16.msra.mxu0 %v3149
    %3442 = vmatprep.subr.bf16.mxu0 %v3146
    %3443 = vmatpush1.bf16.msra.mxu0 %v3145
    %3444 = vmatprep.subr.bf16.mxu0 %v3142
    %3445 = vmatpush1.bf16.msra.mxu0 %v3141
    %3446 = vmatprep.subr.bf16.mxu0 %v3138
    %3447 = vmatpush1.bf16.msra.mxu0 %v3137
    %3448 = vmatprep.subr.bf16.mxu0 %v3134
    %3449 = vmatpush1.bf16.msra.mxu0 %v3133
    %3450 = vmatprep.subr.bf16.mxu0 %v3130
    %3451 = vmatpush1.bf16.msra.mxu0 %v3129
    %3452 = vmatprep.subr.bf16.mxu0 %v3126
    %3453 = vmatpush1.bf16.msra.mxu0 %v3125
    %3454 = vmatprep.subr.bf16.mxu0 %v3186
    %3455 = vmatpush2.bf16.msra.mxu0 %v3185
    %3456 = vmatprep.subr.bf16.mxu0 %v3182
    %3457 = vmatpush2.bf16.msra.mxu0 %v3181
    %3458 = vmatprep.subr.bf16.mxu0 %v3178
    %3459 = vmatpush2.bf16.msra.mxu0 %v3177
    %3460 = vmatprep.subr.bf16.mxu0 %v3174
    %3461 = vmatpush2.bf16.msra.mxu0 %v3173
    %3462 = vmatprep.subr.bf16.mxu0 %v3170
    %3463 = vmatpush2.bf16.msra.mxu0 %v3169
    %3464 = vmatprep.subr.bf16.mxu0 %v3166
    %3465 = vmatpush2.bf16.msra.mxu0 %v3165
    %3466 = vmatprep.subr.bf16.mxu0 %v3162
    %3467 = vmatpush2.bf16.msra.mxu0 %v3161
    %3468 = vmatprep.subr.bf16.mxu0 %v3158
    %3469 = vmatpush2.bf16.msra.mxu0 %v3157
    %3470 = vmatprep.mubr.bf16.mxu0 %v2546
    %3471 = vmatmul.mubr.bf16.gmra.mxu0 %v2545
    %v3472 = vpop.f32.mrf.mxu0
    %v3473 = vadd.f32 %v3432, %v3472
    %v3474 = vpop.f32.mrf.mxu0
    %v3475 = vadd.f32 %v3434, %v3474
    %v3476 = vpop.f32.mrf.mxu0
    %v3477 = vpop.f32.mrf.mxu0
    %3478 = vdwg.mxu0
    %s3479 = scalar_lea.vmem [#allocation10], 3
    %v3480 = vld [vmem:[%s3479] ss:$8 sm:$0xf]
    %s3481 = scalar_lea.vmem [#allocation10], 7
    %v3482 = vld [vmem:[%s3481] ss:$8 sm:$0xf]
    %v3483 = vrot.slane %v3391, 4
    %v3484 = vadd.f32 %v3391, %v3483
    %v3485 = vrot.slane %v3484, 2
    %v3486 = vadd.f32 %v3484, %v3485
    %v3487 = vrot.slane %v3486, 1
    %v3488 = vadd.f32 %v3486, %v3487
    %v3489 = vrot.slane %v3393, 4
    %v3490 = vadd.f32 %v3393, %v3489
    %v3491 = vrot.slane %v3490, 2
    %v3492 = vadd.f32 %v3490, %v3491
    %v3493 = vrot.slane %v3492, 1
    %v3494 = vadd.f32 %v3492, %v3493
    %v3495 = vrot.slane %v3473, 4
    %v3496 = vadd.f32 %v3473, %v3495
    %v3497 = vrot.slane %v3496, 2
    %v3498 = vadd.f32 %v3496, %v3497
    %v3499 = vrot.slane %v3498, 1
    %v3500 = vadd.f32 %v3498, %v3499
    %v3501 = vrot.slane %v3475, 4
    %v3502 = vadd.f32 %v3475, %v3501
    %v3503 = vrot.slane %v3502, 2
    %v3504 = vadd.f32 %v3502, %v3503
    %v3505 = vrot.slane %v3504, 1
    %v3506 = vadd.f32 %v3504, %v3505
    %v3507 = vmul.f32 %v3488, 0.125
    %v3508 = vmul.f32 %v3494, 0.125
    %v3509 = vmul.f32 %v3500, 0.125
    %v3510 = vmul.f32 %v3506, 0.125
    %v3511 = vsub.f32 %v3391, %v3507
    %v3512 = vsub.f32 %v3393, %v3508
    %v3513 = vsub.f32 %v3473, %v3509
    %v3514 = vsub.f32 %v3475, %v3510
    %v3515 = vmul.f32 %v3511, %v3511
    %v3516 = vmul.f32 %v3512, %v3512
    %v3517 = vmul.f32 %v3513, %v3513
    %v3518 = vmul.f32 %v3514, %v3514
    %v3519 = vrot.slane %v3515, 4
    %v3520 = vadd.f32 %v3515, %v3519
    %v3521 = vrot.slane %v3520, 2
    %v3522 = vadd.f32 %v3520, %v3521
    %v3523 = vrot.slane %v3522, 1
    %v3524 = vadd.f32 %v3522, %v3523
    %v3525 = vrot.slane %v3516, 4
    %v3526 = vadd.f32 %v3516, %v3525
    %v3527 = vrot.slane %v3526, 2
    %v3528 = vadd.f32 %v3526, %v3527
    %v3529 = vrot.slane %v3528, 1
    %v3530 = vadd.f32 %v3528, %v3529
    %v3531 = vrot.slane %v3517, 4
    %v3532 = vadd.f32 %v3517, %v3531
    %v3533 = vrot.slane %v3532, 2
    %v3534 = vadd.f32 %v3532, %v3533
    %v3535 = vrot.slane %v3534, 1
    %v3536 = vadd.f32 %v3534, %v3535
    %v3537 = vrot.slane %v3518, 4
    %v3538 = vadd.f32 %v3518, %v3537
    %v3539 = vrot.slane %v3538, 2
    %v3540 = vadd.f32 %v3538, %v3539
    %v3541 = vrot.slane %v3540, 1
    %v3542 = vadd.f32 %v3540, %v3541
    %v3543 = vmul.f32 %v3524, 0.125
    %v3544 = vmul.f32 %v3530, 0.125
    %v3545 = vmul.f32 %v3536, 0.125
    %v3546 = vmul.f32 %v3542, 0.125
    %v3547 = vadd.f32 %v3543, 1e-05
    %v3548 = vadd.f32 %v3544, 1e-05
    %v3549 = vadd.f32 %v3545, 1e-05
    %v3550 = vadd.f32 %v3546, 1e-05
    %v3551 = vrsqrt.pop %v3547
    %v3552 = vrsqrt.pop %v3548
    %v3553 = vrsqrt.pop %v3549
    %v3554 = vrsqrt.pop %v3550
    %v3559 = vcombine.low %v3551, %v3552
    %v3560 = vcombine.low %v3553, %v3554
    %v3562 = vunpack.c.l.s4 1966171168
    %v3563 = vunpack.c.0.s8 %v3562
    %v3564 = vlaneseq
    %v3565 = vshrl.u32 %v3564, 7
    %v3566 = vsub.s32 %v3563, %v3565
    %v3567 = vrot.slane %v3559, %v3566
    %v3569 = vunpack.c.l.s4 1966171168
    %v3570 = vunpack.c.0.s8 %v3569
    %v3571 = vlaneseq
    %v3572 = vshrl.u32 %v3571, 7
    %v3573 = vsub.s32 %v3570, %v3572
    %v3574 = vrot.slane %v3560, %v3573
    %v3575 = vcombine.low %v3567, %v3574
    %v3577 = vunpack.c.l.s4 1966171168
    %v3578 = vunpack.c.0.s8 %v3577
    %v3579 = vlaneseq
    %v3580 = vshrl.u32 %v3579, 7
    %v3581 = vsub.s32 %v3578, %v3580
    %v3582 = vrot.slane %v3575, %v3581
    %v3584 = vmul.f32 %v3480, %v3582
    %v3586 = vlaneseq
    %v3587 = vshrl.u32 %v3586, 7
    %v3588 = vsub.s32 0, %v3587
    %v3589 = vrot.slane %v3584, %v3588
    %v3590 = vlaneseq
    %v3591 = vshrl.u32 %v3590, 7
    %v3592 = vsub.s32 1, %v3591
    %v3593 = vrot.slane %v3584, %v3592
    %v3594 = vlaneseq
    %v3595 = vshrl.u32 %v3594, 7
    %v3596 = vsub.s32 2, %v3595
    %v3597 = vrot.slane %v3584, %v3596
    %v3598 = vlaneseq
    %v3599 = vshrl.u32 %v3598, 7
    %v3600 = vsub.s32 3, %v3599
    %v3601 = vrot.slane %v3584, %v3600
    %v3606 = vmul.f32 %v3511, %v3589
    %v3607 = vmul.f32 %v3512, %v3593
    %v3608 = vmul.f32 %v3513, %v3597
    %v3609 = vmul.f32 %v3514, %v3601
    %v3611 = vlaneseq
    %v3612 = vshrl.u32 %v3611, 7
    %v3613 = vsub.s32 0, %v3612
    %v3614 = vrot.slane %v3482, %v3613
    %v3615 = vlaneseq
    %v3616 = vshrl.u32 %v3615, 7
    %v3617 = vsub.s32 1, %v3616
    %v3618 = vrot.slane %v3482, %v3617
    %v3619 = vlaneseq
    %v3620 = vshrl.u32 %v3619, 7
    %v3621 = vsub.s32 2, %v3620
    %v3622 = vrot.slane %v3482, %v3621
    %v3623 = vlaneseq
    %v3624 = vshrl.u32 %v3623, 7
    %v3625 = vsub.s32 3, %v3624
    %v3626 = vrot.slane %v3482, %v3625
    %v3631 = vadd.f32 %v3606, %v3614
    %v3632 = vadd.f32 %v3607, %v3618
    %v3633 = vadd.f32 %v3608, %v3622
    %v3634 = vadd.f32 %v3609, %v3626
    %v3635 = vmax.f32 %v3631, 0.0
    %v3636 = vmax.f32 %v3632, 0.0
    %v3637 = vmax.f32 %v3633, 0.0
    %v3638 = vmax.f32 %v3634, 0.0
    %v3639 = vpack.c.bf16 %v3635, %v3635
    %v3640 = vpack.c.bf16 %v3636, %v3636
    %v3641 = vpack.c.bf16 %v3637, %v3637
    %v3642 = vpack.c.bf16 %v3638, %v3638
    %v3643 = vld [vmem:[#allocation8] sm:$0xf]
    %v3644 = vld [vmem:[#allocation8 + $0x4] sm:$0xf]
    %v3645 = vld [vmem:[#allocation8 + $0x8] sm:$0xf]
    %v3646 = vld [vmem:[#allocation8 + $0xc] sm:$0xf]
    %v3647 = vld [vmem:[#allocation8 + $0x10] sm:$0xf]
    %v3648 = vld [vmem:[#allocation8 + $0x14] sm:$0xf]
    %v3649 = vld [vmem:[#allocation8 + $0x18] sm:$0xf]
    %v3650 = vld [vmem:[#allocation8 + $0x1c] sm:$0xf]
    %v3651 = vld [vmem:[#allocation8 + $0x20] sm:$0xf]
    %v3652 = vld [vmem:[#allocation8 + $0x24] sm:$0xf]
    %v3653 = vld [vmem:[#allocation8 + $0x28] sm:$0xf]
    %v3654 = vld [vmem:[#allocation8 + $0x2c] sm:$0xf]
    %v3655 = vld [vmem:[#allocation8 + $0x30] sm:$0xf]
    %v3656 = vld [vmem:[#allocation8 + $0x34] sm:$0xf]
    %v3657 = vld [vmem:[#allocation8 + $0x38] sm:$0xf]
    %v3658 = vld [vmem:[#allocation8 + $0x3c] sm:$0xf]
    %v3659 = vld [vmem:[#allocation8 + $0x40] sm:$0xf]
    %v3660 = vld [vmem:[#allocation8 + $0x44] sm:$0xf]
    %v3661 = vld [vmem:[#allocation8 + $0x48] sm:$0xf]
    %v3662 = vld [vmem:[#allocation8 + $0x4c] sm:$0xf]
    %v3663 = vld [vmem:[#allocation8 + $0x50] sm:$0xf]
    %v3664 = vld [vmem:[#allocation8 + $0x54] sm:$0xf]
    %v3665 = vld [vmem:[#allocation8 + $0x58] sm:$0xf]
    %v3666 = vld [vmem:[#allocation8 + $0x5c] sm:$0xf]
    %v3667 = vld [vmem:[#allocation8 + $0x60] sm:$0xf]
    %v3668 = vld [vmem:[#allocation8 + $0x64] sm:$0xf]
    %v3669 = vld [vmem:[#allocation8 + $0x68] sm:$0xf]
    %v3670 = vld [vmem:[#allocation8 + $0x6c] sm:$0xf]
    %v3671 = vld [vmem:[#allocation8 + $0x70] sm:$0xf]
    %v3672 = vld [vmem:[#allocation8 + $0x74] sm:$0xf]
    %v3673 = vld [vmem:[#allocation8 + $0x78] sm:$0xf]
    %v3674 = vld [vmem:[#allocation8 + $0x7c] sm:$0xf]
    %v3675 = vld [vmem:[#allocation8 + $0x80] sm:$0xf]
    %v3676 = vld [vmem:[#allocation8 + $0x84] sm:$0xf]
    %v3677 = vld [vmem:[#allocation8 + $0x88] sm:$0xf]
    %v3678 = vld [vmem:[#allocation8 + $0x8c] sm:$0xf]
    %v3679 = vld [vmem:[#allocation8 + $0x90] sm:$0xf]
    %v3680 = vld [vmem:[#allocation8 + $0x94] sm:$0xf]
    %v3681 = vld [vmem:[#allocation8 + $0x98] sm:$0xf]
    %v3682 = vld [vmem:[#allocation8 + $0x9c] sm:$0xf]
    %v3683 = vld [vmem:[#allocation8 + $0xa0] sm:$0xf]
    %v3684 = vld [vmem:[#allocation8 + $0xa4] sm:$0xf]
    %v3685 = vld [vmem:[#allocation8 + $0xa8] sm:$0xf]
    %v3686 = vld [vmem:[#allocation8 + $0xac] sm:$0xf]
    %v3687 = vld [vmem:[#allocation8 + $0xb0] sm:$0xf]
    %v3688 = vld [vmem:[#allocation8 + $0xb4] sm:$0xf]
    %v3689 = vld [vmem:[#allocation8 + $0xb8] sm:$0xf]
    %v3690 = vld [vmem:[#allocation8 + $0xbc] sm:$0xf]
    %v3691 = vld [vmem:[#allocation8 + $0xc0] sm:$0xf]
    %v3692 = vld [vmem:[#allocation8 + $0xc4] sm:$0xf]
    %v3693 = vld [vmem:[#allocation8 + $0xc8] sm:$0xf]
    %v3694 = vld [vmem:[#allocation8 + $0xcc] sm:$0xf]
    %v3695 = vld [vmem:[#allocation8 + $0xd0] sm:$0xf]
    %v3696 = vld [vmem:[#allocation8 + $0xd4] sm:$0xf]
    %v3697 = vld [vmem:[#allocation8 + $0xd8] sm:$0xf]
    %v3698 = vld [vmem:[#allocation8 + $0xdc] sm:$0xf]
    %v3699 = vld [vmem:[#allocation8 + $0xe0] sm:$0xf]
    %v3700 = vld [vmem:[#allocation8 + $0xe4] sm:$0xf]
    %v3701 = vld [vmem:[#allocation8 + $0xe8] sm:$0xf]
    %v3702 = vld [vmem:[#allocation8 + $0xec] sm:$0xf]
    %v3703 = vld [vmem:[#allocation8 + $0xf0] sm:$0xf]
    %v3704 = vld [vmem:[#allocation8 + $0xf4] sm:$0xf]
    %v3705 = vld [vmem:[#allocation8 + $0xf8] sm:$0xf]
    %v3706 = vld [vmem:[#allocation8 + $0xfc] sm:$0xf]
    %v3707 = vld [vmem:[#allocation10 + $0x20] ss:$0 sm:$0xff]
    %v3772 = vunpack.c.l.b16 %v3643
    %v3773 = vunpack.c.l.b16 %v3644
    %v3774 = vunpack.c.l.b16 %v3645
    %v3775 = vunpack.c.l.b16 %v3646
    %v3776 = vunpack.c.l.b16 %v3647
    %v3777 = vunpack.c.l.b16 %v3648
    %v3778 = vunpack.c.l.b16 %v3649
    %v3779 = vunpack.c.l.b16 %v3650
    %v3780 = vunpack.c.l.b16 %v3651
    %v3781 = vunpack.c.l.b16 %v3652
    %v3782 = vunpack.c.l.b16 %v3653
    %v3783 = vunpack.c.l.b16 %v3654
    %v3784 = vunpack.c.l.b16 %v3655
    %v3785 = vunpack.c.l.b16 %v3656
    %v3786 = vunpack.c.l.b16 %v3657
    %v3787 = vunpack.c.l.b16 %v3658
    %v3788 = vunpack.c.l.b16 %v3659
    %v3789 = vunpack.c.l.b16 %v3660
    %v3790 = vunpack.c.l.b16 %v3661
    %v3791 = vunpack.c.l.b16 %v3662
    %v3792 = vunpack.c.l.b16 %v3663
    %v3793 = vunpack.c.l.b16 %v3664
    %v3794 = vunpack.c.l.b16 %v3665
    %v3795 = vunpack.c.l.b16 %v3666
    %v3796 = vunpack.c.l.b16 %v3667
    %v3797 = vunpack.c.l.b16 %v3668
    %v3798 = vunpack.c.l.b16 %v3669
    %v3799 = vunpack.c.l.b16 %v3670
    %v3800 = vunpack.c.l.b16 %v3671
    %v3801 = vunpack.c.l.b16 %v3672
    %v3802 = vunpack.c.l.b16 %v3673
    %v3803 = vunpack.c.l.b16 %v3674
    %v3804 = vunpack.c.l.b16 %v3675
    %v3805 = vunpack.c.l.b16 %v3676
    %v3806 = vunpack.c.l.b16 %v3677
    %v3807 = vunpack.c.l.b16 %v3678
    %v3808 = vunpack.c.l.b16 %v3679
    %v3809 = vunpack.c.l.b16 %v3680
    %v3810 = vunpack.c.l.b16 %v3681
    %v3811 = vunpack.c.l.b16 %v3682
    %v3812 = vunpack.c.l.b16 %v3683
    %v3813 = vunpack.c.l.b16 %v3684
    %v3814 = vunpack.c.l.b16 %v3685
    %v3815 = vunpack.c.l.b16 %v3686
    %v3816 = vunpack.c.l.b16 %v3687
    %v3817 = vunpack.c.l.b16 %v3688
    %v3818 = vunpack.c.l.b16 %v3689
    %v3819 = vunpack.c.l.b16 %v3690
    %v3820 = vunpack.c.l.b16 %v3691
    %v3821 = vunpack.c.l.b16 %v3692
    %v3822 = vunpack.c.l.b16 %v3693
    %v3823 = vunpack.c.l.b16 %v3694
    %v3824 = vunpack.c.l.b16 %v3695
    %v3825 = vunpack.c.l.b16 %v3696
    %v3826 = vunpack.c.l.b16 %v3697
    %v3827 = vunpack.c.l.b16 %v3698
    %v3828 = vunpack.c.l.b16 %v3699
    %v3829 = vunpack.c.l.b16 %v3700
    %v3830 = vunpack.c.l.b16 %v3701
    %v3831 = vunpack.c.l.b16 %v3702
    %v3832 = vunpack.c.l.b16 %v3703
    %v3833 = vunpack.c.l.b16 %v3704
    %v3834 = vunpack.c.l.b16 %v3705
    %v3835 = vunpack.c.l.b16 %v3706
    %v3836 = vpack.c.b16 %v3773, %v3772
    %v3837 = vpack.c.b16 %v3775, %v3774
    %v3838 = vpack.c.b16 %v3777, %v3776
    %v3839 = vpack.c.b16 %v3779, %v3778
    %v3840 = vpack.c.b16 %v3781, %v3780
    %v3841 = vpack.c.b16 %v3783, %v3782
    %v3842 = vpack.c.b16 %v3785, %v3784
    %v3843 = vpack.c.b16 %v3787, %v3786
    %v3844 = vpack.c.b16 %v3789, %v3788
    %v3845 = vpack.c.b16 %v3791, %v3790
    %v3846 = vpack.c.b16 %v3793, %v3792
    %v3847 = vpack.c.b16 %v3795, %v3794
    %v3848 = vpack.c.b16 %v3797, %v3796
    %v3849 = vpack.c.b16 %v3799, %v3798
    %v3850 = vpack.c.b16 %v3801, %v3800
    %v3851 = vpack.c.b16 %v3803, %v3802
    %v3852 = vpack.c.b16 %v3805, %v3804
    %v3853 = vpack.c.b16 %v3807, %v3806
    %v3854 = vpack.c.b16 %v3809, %v3808
    %v3855 = vpack.c.b16 %v3811, %v3810
    %v3856 = vpack.c.b16 %v3813, %v3812
    %v3857 = vpack.c.b16 %v3815, %v3814
    %v3858 = vpack.c.b16 %v3817, %v3816
    %v3859 = vpack.c.b16 %v3819, %v3818
    %v3860 = vpack.c.b16 %v3821, %v3820
    %v3861 = vpack.c.b16 %v3823, %v3822
    %v3862 = vpack.c.b16 %v3825, %v3824
    %v3863 = vpack.c.b16 %v3827, %v3826
    %v3864 = vpack.c.b16 %v3829, %v3828
    %v3865 = vpack.c.b16 %v3831, %v3830
    %v3866 = vpack.c.b16 %v3833, %v3832
    %v3867 = vpack.c.b16 %v3835, %v3834
    %3900 = vmatprep.subr.bf16.mxu0 0
    %3901 = vmatpush1.bf16.msra.mxu0 %v3843
    %3902 = vmatprep.subr.bf16.mxu0 0
    %3903 = vmatpush1.bf16.msra.mxu0 %v3842
    %3904 = vmatprep.subr.bf16.mxu0 0
    %3905 = vmatpush1.bf16.msra.mxu0 %v3841
    %3906 = vmatprep.subr.bf16.mxu0 0
    %3907 = vmatpush1.bf16.msra.mxu0 %v3840
    %3908 = vmatprep.subr.bf16.mxu0 0
    %3909 = vmatpush1.bf16.msra.mxu0 %v3839
    %3910 = vmatprep.subr.bf16.mxu0 0
    %3911 = vmatpush1.bf16.msra.mxu0 %v3838
    %3912 = vmatprep.subr.bf16.mxu0 0
    %3913 = vmatpush1.bf16.msra.mxu0 %v3837
    %3914 = vmatprep.subr.bf16.mxu0 0
    %3915 = vmatpush1.bf16.msra.mxu0 %v3836
    %3916 = vmatprep.subr.bf16.mxu0 0
    %3917 = vmatpush2.bf16.msra.mxu0 %v3851
    %3918 = vmatprep.subr.bf16.mxu0 0
    %3919 = vmatpush2.bf16.msra.mxu0 %v3850
    %3920 = vmatprep.subr.bf16.mxu0 0
    %3921 = vmatpush2.bf16.msra.mxu0 %v3849
    %3922 = vmatprep.subr.bf16.mxu0 0
    %3923 = vmatpush2.bf16.msra.mxu0 %v3848
    %3924 = vmatprep.subr.bf16.mxu0 0
    %3925 = vmatpush2.bf16.msra.mxu0 %v3847
    %3926 = vmatprep.subr.bf16.mxu0 0
    %3927 = vmatpush2.bf16.msra.mxu0 %v3846
    %3928 = vmatprep.subr.bf16.mxu0 0
    %3929 = vmatpush2.bf16.msra.mxu0 %v3845
    %3930 = vmatprep.subr.bf16.mxu0 0
    %3931 = vmatpush2.bf16.msra.mxu0 %v3844
    %3932 = vmatprep.mubr.bf16.mxu0 %v3640
    %3933 = vmatmul.mubr.bf16.gmra.mxu0 %v3639
    %v3934 = vpop.f32.mrf.mxu0
    %v3935 = vadd.f32 %v3707, %v3934
    %v3936 = vpop.f32.mrf.mxu0
    %v3937 = vpop.f32.mrf.mxu0
    %v3938 = vpop.f32.mrf.mxu0
    %3939 = vdwg.mxu0
    %3940 = vmatprep.subr.bf16.mxu0 0
    %3941 = vmatpush1.bf16.msra.mxu0 %v3859
    %3942 = vmatprep.subr.bf16.mxu0 0
    %3943 = vmatpush1.bf16.msra.mxu0 %v3858
    %3944 = vmatprep.subr.bf16.mxu0 0
    %3945 = vmatpush1.bf16.msra.mxu0 %v3857
    %3946 = vmatprep.subr.bf16.mxu0 0
    %3947 = vmatpush1.bf16.msra.mxu0 %v3856
    %3948 = vmatprep.subr.bf16.mxu0 0
    %3949 = vmatpush1.bf16.msra.mxu0 %v3855
    %3950 = vmatprep.subr.bf16.mxu0 0
    %3951 = vmatpush1.bf16.msra.mxu0 %v3854
    %3952 = vmatprep.subr.bf16.mxu0 0
    %3953 = vmatpush1.bf16.msra.mxu0 %v3853
    %3954 = vmatprep.subr.bf16.mxu0 0
    %3955 = vmatpush1.bf16.msra.mxu0 %v3852
    %3956 = vmatprep.subr.bf16.mxu0 0
    %3957 = vmatpush2.bf16.msra.mxu0 %v3867
    %3958 = vmatprep.subr.bf16.mxu0 0
    %3959 = vmatpush2.bf16.msra.mxu0 %v3866
    %3960 = vmatprep.subr.bf16.mxu0 0
    %3961 = vmatpush2.bf16.msra.mxu0 %v3865
    %3962 = vmatprep.subr.bf16.mxu0 0
    %3963 = vmatpush2.bf16.msra.mxu0 %v3864
    %3964 = vmatprep.subr.bf16.mxu0 0
    %3965 = vmatpush2.bf16.msra.mxu0 %v3863
    %3966 = vmatprep.subr.bf16.mxu0 0
    %3967 = vmatpush2.bf16.msra.mxu0 %v3862
    %3968 = vmatprep.subr.bf16.mxu0 0
    %3969 = vmatpush2.bf16.msra.mxu0 %v3861
    %3970 = vmatprep.subr.bf16.mxu0 0
    %3971 = vmatpush2.bf16.msra.mxu0 %v3860
    %3972 = vmatprep.mubr.bf16.mxu0 %v3642
    %3973 = vmatmul.mubr.bf16.gmra.mxu0 %v3641
    %v3974 = vpop.f32.mrf.mxu0
    %v3975 = vadd.f32 %v3935, %v3974
    %v3976 = vpop.f32.mrf.mxu0
    %v3977 = vpop.f32.mrf.mxu0
    %v3978 = vpop.f32.mrf.mxu0
    %3979 = vdwg.mxu0
    %3980 = vst [vmem:[#allocation11] sm:$0xff] %v3975
    // Predicated region
    $region50: #{_forward_padded.1} parent=1 // pred_check
      _
    $region51: #{_forward_padded.1} parent=1 // pred_check_branch
      %3982 = sbr.rel (0) target = $region53
    $region52: #{_forward_padded.1} parent=1 // pred_region
      %s3984 = ssub.s32 128, 128
      %3985 = vsyncadd [#allocation4], %s3984
      %s3987 = sshll.u32 [#allocation11], 4
      %s3988 = int_to_ptr.vmem [resolvable:$true] %s3987
      %3990 = dma.vmem_to_hbm [thread:$0]  %s3988, 128, %s7, [#allocation4]
    $region53: #{_forward_padded.1} parent=1 // pred_fallthru
      _
    // Predicated region
    $region54: #{_forward_padded.1} parent=1 // pred_check
      _
    $region55: #{_forward_padded.1} parent=1 // pred_check_branch
      %3992 = sbr.rel (0) target = $region57
    $region56: #{_forward_padded.1} parent=1 // pred_region
      %3993 = dma.done [#allocation4], 128
    $region57: #{_forward_padded.1} parent=1 // pred_fallthru
      _
    %3994 = vsyncpa [#allocation3], 1
    %3995 = vsyncpa [#allocation6], 1
    %3996 = vsyncpa [#allocation9], 1
    %3997 = vsyncpa [#allocation4], 1

</llo_original>
